<compile_context>
chip_gen: v6e
topology: v6e:2x2x1
jax: 0.10.0
libtpu: 0.0.40
codegen_flags: <defaults>
</compile_context>

<pallas_src>
import functools

import jax
import jax.numpy as jnp
from jax.experimental import pallas as pl
from jax.experimental.pallas import tpu as pltpu

LN_EPS = 1e-5


def _layernorm(x, w, b):
    mu = jnp.mean(x, axis=-1, keepdims=True)
    var = jnp.mean((x - mu) ** 2, axis=-1, keepdims=True)
    return (x - mu) * jax.lax.rsqrt(var + LN_EPS) * w + b


# ----------------------------------------------------------------------------
# Fused kernel: all layers + mlp_enhance, one batch block per grid step.
# Weight refs are pre-transposed to (in, out) and stacked on a leading L axis.
# ----------------------------------------------------------------------------
def _fused_kernel(xt_ref, ctx_ref,
                  wq_ref, wk_ref, wv_ref, bq_ref, bk_ref, bv_ref,
                  wo_ref, bo_ref, ln1w_ref, ln1b_ref,
                  w1_ref, b1_ref, w2_ref, b2_ref, ln2w_ref, ln2b_ref,
                  mw1_ref, mb1_ref, mw2_ref, mb2_ref,
                  out_ref, *, depth, n_head, head_dim, mm_dtype):
    bb, S, D = xt_ref.shape
    Sc = ctx_ref.shape[1]
    scale = 1.0 / (float(head_dim) ** 0.5)

    def mm(a, b):  # 2-D matmul, f32 accumulation
        return jnp.dot(a.astype(mm_dtype), b.astype(mm_dtype),
                       preferred_element_type=jnp.float32)

    def bmm(eq, a, b):  # batched matmul over the leading batch dim
        return jnp.einsum(eq, a.astype(mm_dtype), b.astype(mm_dtype),
                          preferred_element_type=jnp.float32)

    xt = xt_ref[...].reshape(bb * S, D)      # query pos-embed rows
    ctx = ctx_ref[...].reshape(bb * Sc, D)   # key/value rows

    x = None  # residual stream; None == the initial "x = 0" of the PyTorch code
    for l in range(depth):  # static loop -> layer-0 dead work is elided
        q_in = xt if x is None else x + xt   # with_pos_embed

        # --- full-width q/k/v projections (one MXU pass each) -----------------
        q = (mm(q_in, wq_ref[l]) + bq_ref[l]).reshape(bb, S, D)
        k = (mm(ctx, wk_ref[l]) + bk_ref[l]).reshape(bb, Sc, D)
        v = (mm(ctx, wv_ref[l]) + bv_ref[l]).reshape(bb, Sc, D)

        # --- per-head attention, accumulated through the out-projection -------
        attn = jnp.zeros((bb * S, D), jnp.float32)
        for h in range(n_head):
            hs, he = h * head_dim, (h + 1) * head_dim
            s = bmm('bqd,bkd->bqk', q[:, :, hs:he], k[:, :, hs:he]) * scale
            s = s - jnp.max(s, axis=-1, keepdims=True)
            p = jnp.exp(s)
            p = p * pl.reciprocal(jnp.sum(p, axis=-1, keepdims=True),
                                  approx=True)
            oh = bmm('bqk,bkd->bqd', p, v[:, :, hs:he])        # (bb, S, hd)
            attn = attn + mm(oh.reshape(bb * S, head_dim),
                             wo_ref[l, hs:he, :])              # (bb*S, D)
        attn = attn + bo_ref[l]

        # --- residual + LayerNorm 1 -------------------------------------------
        res = attn if x is None else x + attn
        x = _layernorm(res, ln1w_ref[l], ln1b_ref[l])

        # --- FeedForwardReLU + residual + LayerNorm 2 ---------------------------
        f = jnp.maximum(mm(x, w1_ref[l]) + b1_ref[l], 0.0)
        f = mm(f, w2_ref[l]) + b2_ref[l]
        x = _layernorm(x + f, ln2w_ref[l], ln2b_ref[l])

    # --- mlp_enhance: Linear -> ReLU -> Linear --------------------------------
    h1 = jnp.maximum(mm(x, mw1_ref[...]) + mb1_ref[...], 0.0)
    y = mm(h1, mw2_ref[...]) + mb2_ref[...]
    out_ref[...] = y.reshape(bb, S, D).astype(out_ref.dtype)


# ----------------------------------------------------------------------------
# One-time parameter preparation (hoists all transposes / reshapes).
# ----------------------------------------------------------------------------
_WEIGHT_ORDER = ("wq", "wk", "wv", "bq", "bk", "bv", "wo", "bo",
                 "ln1w", "ln1b", "w1", "b1", "w2", "b2", "ln2w", "ln2b",
                 "mw1", "mb1", "mw2", "mb2")


def prepare_params(layer_params, mlp_params):
    D = layer_params[0]["wq"].shape[0]
    F = layer_params[0]["ff_b1"].shape[0]

    def stack(fn):
        return jnp.stack([fn(p) for p in layer_params], axis=0)

    return dict(
        wq=stack(lambda p: p["wq"].T), wk=stack(lambda p: p["wk"].T),
        wv=stack(lambda p: p["wv"].T),
        bq=stack(lambda p: p["bq"].reshape(1, D)),
        bk=stack(lambda p: p["bk"].reshape(1, D)),
        bv=stack(lambda p: p["bv"].reshape(1, D)),
        wo=stack(lambda p: p["wo"].T),
        bo=stack(lambda p: p["bo"].reshape(1, D)),
        ln1w=stack(lambda p: p["ln1_w"].reshape(1, D)),
        ln1b=stack(lambda p: p["ln1_b"].reshape(1, D)),
        w1=stack(lambda p: p["ff_w1"].T),
        b1=stack(lambda p: p["ff_b1"].reshape(1, F)),
        w2=stack(lambda p: p["ff_w2"].T),
        b2=stack(lambda p: p["ff_b2"].reshape(1, D)),
        ln2w=stack(lambda p: p["ln2_w"].reshape(1, D)),
        ln2b=stack(lambda p: p["ln2_b"].reshape(1, D)),
        mw1=mlp_params["w1"].T, mb1=mlp_params["b1"].reshape(1, D),
        mw2=mlp_params["w2"].T, mb2=mlp_params["b2"].reshape(1, D),
    )


# ----------------------------------------------------------------------------
# Wrapper: one pallas_call for the whole forward.
# ----------------------------------------------------------------------------
def cross_attender_forward(x_tgt, context, params, n_head, head_dim,
                           matmul_dtype=jnp.float32):
    B, S, D = x_tgt.shape
    Sc = context.shape[1]
    depth = params["wq"].shape[0]

    # 2-way parallel batch split so v7x's two TensorCores both get work;
    # single-TC chips simply run the two (all-layer) steps back-to-back.
    num_blocks = 2 if (B % 2 == 0 and B >= 2) else 1
    bb = B // num_blocks

    weight_args = [params[name] for name in _WEIGHT_ORDER]

    def batch_spec(seq):
        return pl.BlockSpec((bb, seq, D), lambda i: (i, 0, 0))

    def full_spec(a):
        # Whole array resident in VMEM; same block every grid step -> no re-DMA.
        return pl.BlockSpec(a.shape, lambda i, _nd=a.ndim: (0,) * _nd)

    kernel = functools.partial(_fused_kernel, depth=depth, n_head=n_head,
                               head_dim=head_dim, mm_dtype=matmul_dtype)
    return pl.pallas_call(
        kernel,
        out_shape=jax.ShapeDtypeStruct((B, S, D), jnp.float32),
        grid_spec=pltpu.PrefetchScalarGridSpec(
            num_scalar_prefetch=0,
            grid=(num_blocks,),
            in_specs=[batch_spec(S), batch_spec(Sc)]
                     + [full_spec(a) for a in weight_args],
            out_specs=batch_spec(S),
        ),
        compiler_params=pltpu.CompilerParams(dimension_semantics=("parallel",)),
    )(x_tgt, context, *weight_args)


# ----------------------------------------------------------------------------
# Deterministic synthetic parameter init (shapes mirror the PyTorch module).
# ----------------------------------------------------------------------------
def init_params(key, dim, depth, ff_dim):
    layers = []
    for _ in range(depth):
        key, k0, k1, k2, k3, k4, k5, k6, k7 = jax.random.split(key, 9)
        in_proj_w = 0.05 * jax.random.normal(k0, (3 * dim, dim), jnp.float32)
        in_proj_b = 0.05 * jax.random.normal(k1, (3 * dim,), jnp.float32)
        layers.append(dict(
            wq=in_proj_w[:dim], wk=in_proj_w[dim:2 * dim], wv=in_proj_w[2 * dim:],
            bq=in_proj_b[:dim], bk=in_proj_b[dim:2 * dim], bv=in_proj_b[2 * dim:],
            wo=0.05 * jax.random.normal(k2, (dim, dim), jnp.float32),
            bo=0.05 * jax.random.normal(k3, (dim,), jnp.float32),
            ln1_w=jnp.ones((dim,), jnp.float32), ln1_b=jnp.zeros((dim,), jnp.float32),
            ff_w1=0.05 * jax.random.normal(k4, (ff_dim, dim), jnp.float32),
            ff_b1=0.05 * jax.random.normal(k5, (ff_dim,), jnp.float32),
            ff_w2=0.05 * jax.random.normal(k6, (dim, ff_dim), jnp.float32),
            ff_b2=0.05 * jax.random.normal(k7, (dim,), jnp.float32),
            ln2_w=jnp.ones((dim,), jnp.float32), ln2_b=jnp.zeros((dim,), jnp.float32),
        ))
    key, k0, k1, k2, k3 = jax.random.split(key, 5)
    mlp = dict(
        w1=0.05 * jax.random.normal(k0, (dim, dim), jnp.float32),
        b1=0.05 * jax.random.normal(k1, (dim,), jnp.float32),
        w2=0.05 * jax.random.normal(k2, (dim, dim), jnp.float32),
        b2=0.05 * jax.random.normal(k3, (dim,), jnp.float32),
    )
    return layers, mlp


# ----------------------------------------------------------------------------
# Pure-JAX reference (mirrors the PyTorch math).
# ----------------------------------------------------------------------------
def reference(x_tgt, ctx, layers, mlp, n_head, head_dim):
    B, S, D = x_tgt.shape
    Sc = ctx.shape[1]
    x = jnp.zeros((B, S, D), jnp.float32)
    for p in layers:
        q = (x + x_tgt) @ p["wq"].T + p["bq"]
        k = ctx @ p["wk"].T + p["bk"]
        v = ctx @ p["wv"].T + p["bv"]
        qh = q.reshape(B, S, n_head, head_dim).transpose(0, 2, 1, 3)
        kh = k.reshape(B, Sc, n_head, head_dim).transpose(0, 2, 1, 3)
        vh = v.reshape(B, Sc, n_head, head_dim).transpose(0, 2, 1, 3)
        s = jnp.einsum('bhqd,bhkd->bhqk', qh, kh) / jnp.sqrt(float(head_dim))
        a = jax.nn.softmax(s, axis=-1)
        o = jnp.einsum('bhqk,bhkd->bhqd', a, vh).transpose(0, 2, 1, 3).reshape(B, S, D)
        attn = o @ p["wo"].T + p["bo"]
        x1 = _layernorm(x + attn, p["ln1_w"], p["ln1_b"])
        f = jax.nn.relu(x1 @ p["ff_w1"].T + p["ff_b1"]) @ p["ff_w2"].T + p["ff_b2"]
        x = _layernorm(x1 + f, p["ln2_w"], p["ln2_b"])
    h = jax.nn.relu(x @ mlp["w1"].T + mlp["b1"])
    return h @ mlp["w2"].T + mlp["b2"]


if __name__ == "__main__":
    B, S_TGT, S_CTX = 2, 8, 16
    DIM, DEPTH, N_HEAD, FF_DIM = 32, 2, 4, 64
    HEAD_DIM = DIM // N_HEAD  # nn.MultiheadAttention uses embed_dim // num_heads

    key = jax.random.PRNGKey(0)
    key, kx, kc = jax.random.split(key, 3)
    x_tgt = jax.random.normal(kx, (B, S_TGT, DIM), jnp.float32)
    context = jax.random.normal(kc, (B, S_CTX, DIM), jnp.float32)

    layer_params, mlp_params = init_params(key, DIM, DEPTH, FF_DIM)
    packed = prepare_params(layer_params, mlp_params)   # one-time prep

    ref = reference(x_tgt, context, layer_params, mlp_params, N_HEAD, HEAD_DIM)

    # f32 MXU operands (v5e-safe default).
    out_f32 = jax.block_until_ready(
        cross_attender_forward(x_tgt, context, packed, N_HEAD, HEAD_DIM,
                               matmul_dtype=jnp.float32))
    assert out_f32.shape == (B, S_TGT, DIM)
    assert jnp.allclose(out_f32, ref, atol=1e-2, rtol=1e-2)

    # bf16 MXU operands with f32 accumulation (v6e / v7x fast path).
    out_bf16 = jax.block_until_ready(
        cross_attender_forward(x_tgt, context, packed, N_HEAD, HEAD_DIM,
                               matmul_dtype=jnp.bfloat16))
    assert out_bf16.shape == (B, S_TGT, DIM)
    assert jnp.allclose(out_bf16, ref, atol=6e-2, rtol=6e-2)

    print("KERNEL_OK")
</pallas_src>

<mosaic_0001>
module attributes {stable_mosaic.version = 11 : i64} {
  func.func @_fused_kernel(%arg0: i32, %arg1: memref<1x8x32xf32, #tpu.memory_space<vmem>>, %arg2: memref<1x16x32xf32, #tpu.memory_space<vmem>>, %arg3: memref<2x32x32xf32, #tpu.memory_space<vmem>>, %arg4: memref<2x32x32xf32, #tpu.memory_space<vmem>>, %arg5: memref<2x32x32xf32, #tpu.memory_space<vmem>>, %arg6: memref<2x1x32xf32, #tpu.memory_space<vmem>>, %arg7: memref<2x1x32xf32, #tpu.memory_space<vmem>>, %arg8: memref<2x1x32xf32, #tpu.memory_space<vmem>>, %arg9: memref<2x32x32xf32, #tpu.memory_space<vmem>>, %arg10: memref<2x1x32xf32, #tpu.memory_space<vmem>>, %arg11: memref<2x1x32xf32, #tpu.memory_space<vmem>>, %arg12: memref<2x1x32xf32, #tpu.memory_space<vmem>>, %arg13: memref<2x32x64xf32, #tpu.memory_space<vmem>>, %arg14: memref<2x1x64xf32, #tpu.memory_space<vmem>>, %arg15: memref<2x64x32xf32, #tpu.memory_space<vmem>>, %arg16: memref<2x1x32xf32, #tpu.memory_space<vmem>>, %arg17: memref<2x1x32xf32, #tpu.memory_space<vmem>>, %arg18: memref<2x1x32xf32, #tpu.memory_space<vmem>>, %arg19: memref<32x32xf32, #tpu.memory_space<vmem>>, %arg20: memref<1x32xf32, #tpu.memory_space<vmem>>, %arg21: memref<32x32xf32, #tpu.memory_space<vmem>>, %arg22: memref<1x32xf32, #tpu.memory_space<vmem>>, %arg23: memref<1x8x32xf32, #tpu.memory_space<vmem>>) attributes {dimension_semantics = [#tpu.dimension_semantics<parallel>], iteration_bounds = array<i64: 2>, scalar_prefetch = 0 : i64, scratch_operands = 0 : i64, tpu.core_type = #tpu.core_type<tc>, window_params = [{transform_indices = @transform_0, window_bounds = array<i64: 1, 8, 32>}, {transform_indices = @transform_1, window_bounds = array<i64: 1, 16, 32>}, {pipeline_mode = #tpu.pipeline_mode<synchronous>, transform_indices = @transform_2, window_bounds = array<i64: 2, 32, 32>}, {pipeline_mode = #tpu.pipeline_mode<synchronous>, transform_indices = @transform_3, window_bounds = array<i64: 2, 32, 32>}, {pipeline_mode = #tpu.pipeline_mode<synchronous>, transform_indices = @transform_4, window_bounds = array<i64: 2, 32, 32>}, {pipeline_mode = #tpu.pipeline_mode<synchronous>, transform_indices = @transform_5, window_bounds = array<i64: 2, 1, 32>}, {pipeline_mode = #tpu.pipeline_mode<synchronous>, transform_indices = @transform_6, window_bounds = array<i64: 2, 1, 32>}, {pipeline_mode = #tpu.pipeline_mode<synchronous>, transform_indices = @transform_7, window_bounds = array<i64: 2, 1, 32>}, {pipeline_mode = #tpu.pipeline_mode<synchronous>, transform_indices = @transform_8, window_bounds = array<i64: 2, 32, 32>}, {pipeline_mode = #tpu.pipeline_mode<synchronous>, transform_indices = @transform_9, window_bounds = array<i64: 2, 1, 32>}, {pipeline_mode = #tpu.pipeline_mode<synchronous>, transform_indices = @transform_10, window_bounds = array<i64: 2, 1, 32>}, {pipeline_mode = #tpu.pipeline_mode<synchronous>, transform_indices = @transform_11, window_bounds = array<i64: 2, 1, 32>}, {pipeline_mode = #tpu.pipeline_mode<synchronous>, transform_indices = @transform_12, window_bounds = array<i64: 2, 32, 64>}, {pipeline_mode = #tpu.pipeline_mode<synchronous>, transform_indices = @transform_13, window_bounds = array<i64: 2, 1, 64>}, {pipeline_mode = #tpu.pipeline_mode<synchronous>, transform_indices = @transform_14, window_bounds = array<i64: 2, 64, 32>}, {pipeline_mode = #tpu.pipeline_mode<synchronous>, transform_indices = @transform_15, window_bounds = array<i64: 2, 1, 32>}, {pipeline_mode = #tpu.pipeline_mode<synchronous>, transform_indices = @transform_16, window_bounds = array<i64: 2, 1, 32>}, {pipeline_mode = #tpu.pipeline_mode<synchronous>, transform_indices = @transform_17, window_bounds = array<i64: 2, 1, 32>}, {pipeline_mode = #tpu.pipeline_mode<synchronous>, transform_indices = @transform_18, window_bounds = array<i64: 32, 32>}, {pipeline_mode = #tpu.pipeline_mode<synchronous>, transform_indices = @transform_19, window_bounds = array<i64: 1, 32>}, {pipeline_mode = #tpu.pipeline_mode<synchronous>, transform_indices = @transform_20, window_bounds = array<i64: 32, 32>}, {pipeline_mode = #tpu.pipeline_mode<synchronous>, transform_indices = @transform_21, window_bounds = array<i64: 1, 32>}, {transform_indices = @transform_22, window_bounds = array<i64: 1, 8, 32>}]} {
    %c0 = arith.constant 0 : index
    %c0_0 = arith.constant 0 : index
    %c0_1 = arith.constant 0 : index
    %0 = vector.load %arg1[%c0, %c0_0, %c0_1] : memref<1x8x32xf32, #tpu.memory_space<vmem>>, vector<1x8x32xf32>
    %1 = vector.shape_cast %0 : vector<1x8x32xf32> to vector<8x32xf32>
    %c0_2 = arith.constant 0 : index
    %c0_3 = arith.constant 0 : index
    %c0_4 = arith.constant 0 : index
    %2 = vector.load %arg2[%c0_2, %c0_3, %c0_4] : memref<1x16x32xf32, #tpu.memory_space<vmem>>, vector<1x16x32xf32>
    %3 = vector.shape_cast %2 : vector<1x16x32xf32> to vector<16x32xf32>
    %c0_5 = arith.constant 0 : index
    %c0_6 = arith.constant 0 : index
    %c0_7 = arith.constant 0 : index
    %4 = vector.load %arg3[%c0_5, %c0_6, %c0_7] : memref<2x32x32xf32, #tpu.memory_space<vmem>>, vector<1x32x32xf32>
    %5 = vector.shape_cast %4 : vector<1x32x32xf32> to vector<32x32xf32>
    %cst = arith.constant dense<0.000000e+00> : vector<8x32xf32>
    %6 = tpu.matmul %1, %5, %cst {dimension_numbers = #tpu.dot_dimension_numbers<[1], [0], [0], [1], [0, 0, 1, 1], [], []>} : vector<8x32xf32>, vector<32x32xf32>, vector<8x32xf32> -> vector<8x32xf32>
    %c0_8 = arith.constant 0 : index
    %c0_9 = arith.constant 0 : index
    %c0_10 = arith.constant 0 : index
    %7 = vector.load %arg6[%c0_8, %c0_9, %c0_10] : memref<2x1x32xf32, #tpu.memory_space<vmem>>, vector<1x1x32xf32>
    %8 = vector.shape_cast %7 : vector<1x1x32xf32> to vector<1x32xf32>
    %9 = vector.broadcast %8 : vector<1x32xf32> to vector<8x32xf32>
    %10 = arith.addf %6, %9 : vector<8x32xf32>
    %11 = vector.shape_cast %10 : vector<8x32xf32> to vector<1x8x32xf32>
    %c0_11 = arith.constant 0 : index
    %c0_12 = arith.constant 0 : index
    %c0_13 = arith.constant 0 : index
    %12 = vector.load %arg4[%c0_11, %c0_12, %c0_13] : memref<2x32x32xf32, #tpu.memory_space<vmem>>, vector<1x32x32xf32>
    %13 = vector.shape_cast %12 : vector<1x32x32xf32> to vector<32x32xf32>
    %cst_14 = arith.constant dense<0.000000e+00> : vector<16x32xf32>
    %14 = tpu.matmul %3, %13, %cst_14 {dimension_numbers = #tpu.dot_dimension_numbers<[1], [0], [0], [1], [0, 0, 1, 1], [], []>} : vector<16x32xf32>, vector<32x32xf32>, vector<16x32xf32> -> vector<16x32xf32>
    %c0_15 = arith.constant 0 : index
    %c0_16 = arith.constant 0 : index
    %c0_17 = arith.constant 0 : index
    %15 = vector.load %arg7[%c0_15, %c0_16, %c0_17] : memref<2x1x32xf32, #tpu.memory_space<vmem>>, vector<1x1x32xf32>
    %16 = vector.shape_cast %15 : vector<1x1x32xf32> to vector<1x32xf32>
    %17 = vector.broadcast %16 : vector<1x32xf32> to vector<16x32xf32>
    %18 = arith.addf %14, %17 : vector<16x32xf32>
    %19 = vector.shape_cast %18 : vector<16x32xf32> to vector<1x16x32xf32>
    %c0_18 = arith.constant 0 : index
    %c0_19 = arith.constant 0 : index
    %c0_20 = arith.constant 0 : index
    %20 = vector.load %arg5[%c0_18, %c0_19, %c0_20] : memref<2x32x32xf32, #tpu.memory_space<vmem>>, vector<1x32x32xf32>
    %21 = vector.shape_cast %20 : vector<1x32x32xf32> to vector<32x32xf32>
    %cst_21 = arith.constant dense<0.000000e+00> : vector<16x32xf32>
    %22 = tpu.matmul %3, %21, %cst_21 {dimension_numbers = #tpu.dot_dimension_numbers<[1], [0], [0], [1], [0, 0, 1, 1], [], []>} : vector<16x32xf32>, vector<32x32xf32>, vector<16x32xf32> -> vector<16x32xf32>
    %c0_22 = arith.constant 0 : index
    %c0_23 = arith.constant 0 : index
    %c0_24 = arith.constant 0 : index
    %23 = vector.load %arg8[%c0_22, %c0_23, %c0_24] : memref<2x1x32xf32, #tpu.memory_space<vmem>>, vector<1x1x32xf32>
    %24 = vector.shape_cast %23 : vector<1x1x32xf32> to vector<1x32xf32>
    %25 = vector.broadcast %24 : vector<1x32xf32> to vector<16x32xf32>
    %26 = arith.addf %22, %25 : vector<16x32xf32>
    %27 = vector.shape_cast %26 : vector<16x32xf32> to vector<1x16x32xf32>
    %cst_25 = arith.constant 0.000000e+00 : f32
    %28 = vector.broadcast %cst_25 : f32 to vector<8x32xf32>
    %29 = vector.extract_strided_slice %11 {offsets = [0, 0, 0], sizes = [1, 8, 8], strides = [1, 1, 1]} : vector<1x8x32xf32> to vector<1x8x8xf32>
    %30 = vector.extract_strided_slice %19 {offsets = [0, 0, 0], sizes = [1, 16, 8], strides = [1, 1, 1]} : vector<1x16x32xf32> to vector<1x16x8xf32>
    "tpu.trace_start"() <{level = 10 : i32, message = "bqd,bkd->bqk"}> : () -> ()
    %cst_26 = arith.constant dense<0.000000e+00> : vector<1x8x16xf32>
    %31 = tpu.matmul %29, %30, %cst_26 {dimension_numbers = #tpu.dot_dimension_numbers<[2], [2], [1], [1], [0, 0, 0, 1, 1, 1], [0], [0]>} : vector<1x8x8xf32>, vector<1x16x8xf32>, vector<1x8x16xf32> -> vector<1x8x16xf32>
    "tpu.trace_stop"() : () -> ()
    %cst_27 = arith.constant 0.353553385 : f32
    %32 = vector.broadcast %cst_27 : f32 to vector<1x8x16xf32>
    %33 = arith.mulf %31, %32 : vector<1x8x16xf32>
    %cst_28 = arith.constant dense<0xFF800000> : vector<1x8xf32>
    %34 = vector.multi_reduction <maximumf>, %33, %cst_28 [2] : vector<1x8x16xf32> to vector<1x8xf32>
    %35 = vector.shape_cast %34 : vector<1x8xf32> to vector<1x8x1xf32>
    %36 = vector.broadcast %35 : vector<1x8x1xf32> to vector<1x8x16xf32>
    %37 = arith.subf %33, %36 : vector<1x8x16xf32>
    %38 = math.exp %37 : vector<1x8x16xf32>
    %cst_29 = arith.constant dense<0.000000e+00> : vector<1x8xf32>
    %39 = vector.multi_reduction <add>, %38, %cst_29 [2] : vector<1x8x16xf32> to vector<1x8xf32>
    %40 = vector.shape_cast %39 : vector<1x8xf32> to vector<1x8x1xf32>
    %41 = tpu.reciprocal %40 {approx = true} : vector<1x8x1xf32> -> vector<1x8x1xf32>
    %42 = vector.broadcast %41 : vector<1x8x1xf32> to vector<1x8x16xf32>
    %43 = arith.mulf %38, %42 : vector<1x8x16xf32>
    %44 = vector.extract_strided_slice %27 {offsets = [0, 0, 0], sizes = [1, 16, 8], strides = [1, 1, 1]} : vector<1x16x32xf32> to vector<1x16x8xf32>
    "tpu.trace_start"() <{level = 10 : i32, message = "bqk,bkd->bqd"}> : () -> ()
    %cst_30 = arith.constant dense<0.000000e+00> : vector<1x8x8xf32>
    %45 = tpu.matmul %43, %44, %cst_30 {dimension_numbers = #tpu.dot_dimension_numbers<[2], [1], [1], [2], [0, 0, 0, 1, 1, 2], [0], [0]>} : vector<1x8x16xf32>, vector<1x16x8xf32>, vector<1x8x8xf32> -> vector<1x8x8xf32>
    "tpu.trace_stop"() : () -> ()
    %46 = vector.shape_cast %45 : vector<1x8x8xf32> to vector<8x8xf32>
    %c0_31 = arith.constant 0 : index
    %c0_32 = arith.constant 0 : index
    %c0_33 = arith.constant 0 : index
    %47 = vector.load %arg9[%c0_31, %c0_32, %c0_33] : memref<2x32x32xf32, #tpu.memory_space<vmem>>, vector<1x8x32xf32>
    %48 = vector.shape_cast %47 : vector<1x8x32xf32> to vector<8x32xf32>
    %cst_34 = arith.constant dense<0.000000e+00> : vector<8x32xf32>
    %49 = tpu.matmul %46, %48, %cst_34 {dimension_numbers = #tpu.dot_dimension_numbers<[1], [0], [0], [1], [0, 0, 1, 1], [], []>} : vector<8x8xf32>, vector<8x32xf32>, vector<8x32xf32> -> vector<8x32xf32>
    %50 = arith.addf %28, %49 : vector<8x32xf32>
    %51 = vector.extract_strided_slice %11 {offsets = [0, 0, 8], sizes = [1, 8, 8], strides = [1, 1, 1]} : vector<1x8x32xf32> to vector<1x8x8xf32>
    %52 = vector.extract_strided_slice %19 {offsets = [0, 0, 8], sizes = [1, 16, 8], strides = [1, 1, 1]} : vector<1x16x32xf32> to vector<1x16x8xf32>
    "tpu.trace_start"() <{level = 10 : i32, message = "bqd,bkd->bqk"}> : () -> ()
    %cst_35 = arith.constant dense<0.000000e+00> : vector<1x8x16xf32>
    %53 = tpu.matmul %51, %52, %cst_35 {dimension_numbers = #tpu.dot_dimension_numbers<[2], [2], [1], [1], [0, 0, 0, 1, 1, 1], [0], [0]>} : vector<1x8x8xf32>, vector<1x16x8xf32>, vector<1x8x16xf32> -> vector<1x8x16xf32>
    "tpu.trace_stop"() : () -> ()
    %cst_36 = arith.constant 0.353553385 : f32
    %54 = vector.broadcast %cst_36 : f32 to vector<1x8x16xf32>
    %55 = arith.mulf %53, %54 : vector<1x8x16xf32>
    %cst_37 = arith.constant dense<0xFF800000> : vector<1x8xf32>
    %56 = vector.multi_reduction <maximumf>, %55, %cst_37 [2] : vector<1x8x16xf32> to vector<1x8xf32>
    %57 = vector.shape_cast %56 : vector<1x8xf32> to vector<1x8x1xf32>
    %58 = vector.broadcast %57 : vector<1x8x1xf32> to vector<1x8x16xf32>
    %59 = arith.subf %55, %58 : vector<1x8x16xf32>
    %60 = math.exp %59 : vector<1x8x16xf32>
    %cst_38 = arith.constant dense<0.000000e+00> : vector<1x8xf32>
    %61 = vector.multi_reduction <add>, %60, %cst_38 [2] : vector<1x8x16xf32> to vector<1x8xf32>
    %62 = vector.shape_cast %61 : vector<1x8xf32> to vector<1x8x1xf32>
    %63 = tpu.reciprocal %62 {approx = true} : vector<1x8x1xf32> -> vector<1x8x1xf32>
    %64 = vector.broadcast %63 : vector<1x8x1xf32> to vector<1x8x16xf32>
    %65 = arith.mulf %60, %64 : vector<1x8x16xf32>
    %66 = vector.extract_strided_slice %27 {offsets = [0, 0, 8], sizes = [1, 16, 8], strides = [1, 1, 1]} : vector<1x16x32xf32> to vector<1x16x8xf32>
    "tpu.trace_start"() <{level = 10 : i32, message = "bqk,bkd->bqd"}> : () -> ()
    %cst_39 = arith.constant dense<0.000000e+00> : vector<1x8x8xf32>
    %67 = tpu.matmul %65, %66, %cst_39 {dimension_numbers = #tpu.dot_dimension_numbers<[2], [1], [1], [2], [0, 0, 0, 1, 1, 2], [0], [0]>} : vector<1x8x16xf32>, vector<1x16x8xf32>, vector<1x8x8xf32> -> vector<1x8x8xf32>
    "tpu.trace_stop"() : () -> ()
    %68 = vector.shape_cast %67 : vector<1x8x8xf32> to vector<8x8xf32>
    %c0_40 = arith.constant 0 : index
    %c8 = arith.constant 8 : index
    %c0_41 = arith.constant 0 : index
    %69 = vector.load %arg9[%c0_40, %c8, %c0_41] : memref<2x32x32xf32, #tpu.memory_space<vmem>>, vector<1x8x32xf32>
    %70 = vector.shape_cast %69 : vector<1x8x32xf32> to vector<8x32xf32>
    %cst_42 = arith.constant dense<0.000000e+00> : vector<8x32xf32>
    %71 = tpu.matmul %68, %70, %cst_42 {dimension_numbers = #tpu.dot_dimension_numbers<[1], [0], [0], [1], [0, 0, 1, 1], [], []>} : vector<8x8xf32>, vector<8x32xf32>, vector<8x32xf32> -> vector<8x32xf32>
    %72 = arith.addf %50, %71 : vector<8x32xf32>
    %73 = vector.extract_strided_slice %11 {offsets = [0, 0, 16], sizes = [1, 8, 8], strides = [1, 1, 1]} : vector<1x8x32xf32> to vector<1x8x8xf32>
    %74 = vector.extract_strided_slice %19 {offsets = [0, 0, 16], sizes = [1, 16, 8], strides = [1, 1, 1]} : vector<1x16x32xf32> to vector<1x16x8xf32>
    "tpu.trace_start"() <{level = 10 : i32, message = "bqd,bkd->bqk"}> : () -> ()
    %cst_43 = arith.constant dense<0.000000e+00> : vector<1x8x16xf32>
    %75 = tpu.matmul %73, %74, %cst_43 {dimension_numbers = #tpu.dot_dimension_numbers<[2], [2], [1], [1], [0, 0, 0, 1, 1, 1], [0], [0]>} : vector<1x8x8xf32>, vector<1x16x8xf32>, vector<1x8x16xf32> -> vector<1x8x16xf32>
    "tpu.trace_stop"() : () -> ()
    %cst_44 = arith.constant 0.353553385 : f32
    %76 = vector.broadcast %cst_44 : f32 to vector<1x8x16xf32>
    %77 = arith.mulf %75, %76 : vector<1x8x16xf32>
    %cst_45 = arith.constant dense<0xFF800000> : vector<1x8xf32>
    %78 = vector.multi_reduction <maximumf>, %77, %cst_45 [2] : vector<1x8x16xf32> to vector<1x8xf32>
    %79 = vector.shape_cast %78 : vector<1x8xf32> to vector<1x8x1xf32>
    %80 = vector.broadcast %79 : vector<1x8x1xf32> to vector<1x8x16xf32>
    %81 = arith.subf %77, %80 : vector<1x8x16xf32>
    %82 = math.exp %81 : vector<1x8x16xf32>
    %cst_46 = arith.constant dense<0.000000e+00> : vector<1x8xf32>
    %83 = vector.multi_reduction <add>, %82, %cst_46 [2] : vector<1x8x16xf32> to vector<1x8xf32>
    %84 = vector.shape_cast %83 : vector<1x8xf32> to vector<1x8x1xf32>
    %85 = tpu.reciprocal %84 {approx = true} : vector<1x8x1xf32> -> vector<1x8x1xf32>
    %86 = vector.broadcast %85 : vector<1x8x1xf32> to vector<1x8x16xf32>
    %87 = arith.mulf %82, %86 : vector<1x8x16xf32>
    %88 = vector.extract_strided_slice %27 {offsets = [0, 0, 16], sizes = [1, 16, 8], strides = [1, 1, 1]} : vector<1x16x32xf32> to vector<1x16x8xf32>
    "tpu.trace_start"() <{level = 10 : i32, message = "bqk,bkd->bqd"}> : () -> ()
    %cst_47 = arith.constant dense<0.000000e+00> : vector<1x8x8xf32>
    %89 = tpu.matmul %87, %88, %cst_47 {dimension_numbers = #tpu.dot_dimension_numbers<[2], [1], [1], [2], [0, 0, 0, 1, 1, 2], [0], [0]>} : vector<1x8x16xf32>, vector<1x16x8xf32>, vector<1x8x8xf32> -> vector<1x8x8xf32>
    "tpu.trace_stop"() : () -> ()
    %90 = vector.shape_cast %89 : vector<1x8x8xf32> to vector<8x8xf32>
    %c0_48 = arith.constant 0 : index
    %c16 = arith.constant 16 : index
    %c0_49 = arith.constant 0 : index
    %91 = vector.load %arg9[%c0_48, %c16, %c0_49] : memref<2x32x32xf32, #tpu.memory_space<vmem>>, vector<1x8x32xf32>
    %92 = vector.shape_cast %91 : vector<1x8x32xf32> to vector<8x32xf32>
    %cst_50 = arith.constant dense<0.000000e+00> : vector<8x32xf32>
    %93 = tpu.matmul %90, %92, %cst_50 {dimension_numbers = #tpu.dot_dimension_numbers<[1], [0], [0], [1], [0, 0, 1, 1], [], []>} : vector<8x8xf32>, vector<8x32xf32>, vector<8x32xf32> -> vector<8x32xf32>
    %94 = arith.addf %72, %93 : vector<8x32xf32>
    %95 = vector.extract_strided_slice %11 {offsets = [0, 0, 24], sizes = [1, 8, 8], strides = [1, 1, 1]} : vector<1x8x32xf32> to vector<1x8x8xf32>
    %96 = vector.extract_strided_slice %19 {offsets = [0, 0, 24], sizes = [1, 16, 8], strides = [1, 1, 1]} : vector<1x16x32xf32> to vector<1x16x8xf32>
    "tpu.trace_start"() <{level = 10 : i32, message = "bqd,bkd->bqk"}> : () -> ()
    %cst_51 = arith.constant dense<0.000000e+00> : vector<1x8x16xf32>
    %97 = tpu.matmul %95, %96, %cst_51 {dimension_numbers = #tpu.dot_dimension_numbers<[2], [2], [1], [1], [0, 0, 0, 1, 1, 1], [0], [0]>} : vector<1x8x8xf32>, vector<1x16x8xf32>, vector<1x8x16xf32> -> vector<1x8x16xf32>
    "tpu.trace_stop"() : () -> ()
    %cst_52 = arith.constant 0.353553385 : f32
    %98 = vector.broadcast %cst_52 : f32 to vector<1x8x16xf32>
    %99 = arith.mulf %97, %98 : vector<1x8x16xf32>
    %cst_53 = arith.constant dense<0xFF800000> : vector<1x8xf32>
    %100 = vector.multi_reduction <maximumf>, %99, %cst_53 [2] : vector<1x8x16xf32> to vector<1x8xf32>
    %101 = vector.shape_cast %100 : vector<1x8xf32> to vector<1x8x1xf32>
    %102 = vector.broadcast %101 : vector<1x8x1xf32> to vector<1x8x16xf32>
    %103 = arith.subf %99, %102 : vector<1x8x16xf32>
    %104 = math.exp %103 : vector<1x8x16xf32>
    %cst_54 = arith.constant dense<0.000000e+00> : vector<1x8xf32>
    %105 = vector.multi_reduction <add>, %104, %cst_54 [2] : vector<1x8x16xf32> to vector<1x8xf32>
    %106 = vector.shape_cast %105 : vector<1x8xf32> to vector<1x8x1xf32>
    %107 = tpu.reciprocal %106 {approx = true} : vector<1x8x1xf32> -> vector<1x8x1xf32>
    %108 = vector.broadcast %107 : vector<1x8x1xf32> to vector<1x8x16xf32>
    %109 = arith.mulf %104, %108 : vector<1x8x16xf32>
    %110 = vector.extract_strided_slice %27 {offsets = [0, 0, 24], sizes = [1, 16, 8], strides = [1, 1, 1]} : vector<1x16x32xf32> to vector<1x16x8xf32>
    "tpu.trace_start"() <{level = 10 : i32, message = "bqk,bkd->bqd"}> : () -> ()
    %cst_55 = arith.constant dense<0.000000e+00> : vector<1x8x8xf32>
    %111 = tpu.matmul %109, %110, %cst_55 {dimension_numbers = #tpu.dot_dimension_numbers<[2], [1], [1], [2], [0, 0, 0, 1, 1, 2], [0], [0]>} : vector<1x8x16xf32>, vector<1x16x8xf32>, vector<1x8x8xf32> -> vector<1x8x8xf32>
    "tpu.trace_stop"() : () -> ()
    %112 = vector.shape_cast %111 : vector<1x8x8xf32> to vector<8x8xf32>
    %c0_56 = arith.constant 0 : index
    %c24 = arith.constant 24 : index
    %c0_57 = arith.constant 0 : index
    %113 = vector.load %arg9[%c0_56, %c24, %c0_57] : memref<2x32x32xf32, #tpu.memory_space<vmem>>, vector<1x8x32xf32>
    %114 = vector.shape_cast %113 : vector<1x8x32xf32> to vector<8x32xf32>
    %cst_58 = arith.constant dense<0.000000e+00> : vector<8x32xf32>
    %115 = tpu.matmul %112, %114, %cst_58 {dimension_numbers = #tpu.dot_dimension_numbers<[1], [0], [0], [1], [0, 0, 1, 1], [], []>} : vector<8x8xf32>, vector<8x32xf32>, vector<8x32xf32> -> vector<8x32xf32>
    %116 = arith.addf %94, %115 : vector<8x32xf32>
    %c0_59 = arith.constant 0 : index
    %c0_60 = arith.constant 0 : index
    %c0_61 = arith.constant 0 : index
    %117 = vector.load %arg10[%c0_59, %c0_60, %c0_61] : memref<2x1x32xf32, #tpu.memory_space<vmem>>, vector<1x1x32xf32>
    %118 = vector.shape_cast %117 : vector<1x1x32xf32> to vector<1x32xf32>
    %119 = vector.broadcast %118 : vector<1x32xf32> to vector<8x32xf32>
    %120 = arith.addf %116, %119 : vector<8x32xf32>
    %c0_62 = arith.constant 0 : index
    %c0_63 = arith.constant 0 : index
    %c0_64 = arith.constant 0 : index
    %121 = vector.load %arg11[%c0_62, %c0_63, %c0_64] : memref<2x1x32xf32, #tpu.memory_space<vmem>>, vector<1x1x32xf32>
    %122 = vector.shape_cast %121 : vector<1x1x32xf32> to vector<1x32xf32>
    %c0_65 = arith.constant 0 : index
    %c0_66 = arith.constant 0 : index
    %c0_67 = arith.constant 0 : index
    %123 = vector.load %arg12[%c0_65, %c0_66, %c0_67] : memref<2x1x32xf32, #tpu.memory_space<vmem>>, vector<1x1x32xf32>
    %124 = vector.shape_cast %123 : vector<1x1x32xf32> to vector<1x32xf32>
    %cst_68 = arith.constant dense<0.000000e+00> : vector<8xf32>
    %125 = vector.multi_reduction <add>, %120, %cst_68 [1] : vector<8x32xf32> to vector<8xf32>
    %126 = vector.shape_cast %125 : vector<8xf32> to vector<8x1xf32>
    %cst_69 = arith.constant 3.200000e+01 : f32
    %127 = vector.broadcast %cst_69 : f32 to vector<8x1xf32>
    %128 = arith.divf %126, %127 : vector<8x1xf32>
    %129 = vector.broadcast %128 : vector<8x1xf32> to vector<8x32xf32>
    %130 = arith.subf %120, %129 : vector<8x32xf32>
    %131 = arith.mulf %130, %130 : vector<8x32xf32>
    %cst_70 = arith.constant dense<0.000000e+00> : vector<8xf32>
    %132 = vector.multi_reduction <add>, %131, %cst_70 [1] : vector<8x32xf32> to vector<8xf32>
    %133 = vector.shape_cast %132 : vector<8xf32> to vector<8x1xf32>
    %cst_71 = arith.constant 3.200000e+01 : f32
    %134 = vector.broadcast %cst_71 : f32 to vector<8x1xf32>
    %135 = arith.divf %133, %134 : vector<8x1xf32>
    %136 = vector.broadcast %128 : vector<8x1xf32> to vector<8x32xf32>
    %137 = arith.subf %120, %136 : vector<8x32xf32>
    %cst_72 = arith.constant 9.99999974E-6 : f32
    %138 = vector.broadcast %cst_72 : f32 to vector<8x1xf32>
    %139 = arith.addf %135, %138 : vector<8x1xf32>
    %140 = math.rsqrt %139 : vector<8x1xf32>
    %141 = vector.broadcast %140 : vector<8x1xf32> to vector<8x32xf32>
    %142 = arith.mulf %137, %141 : vector<8x32xf32>
    %143 = vector.broadcast %122 : vector<1x32xf32> to vector<8x32xf32>
    %144 = arith.mulf %142, %143 : vector<8x32xf32>
    %145 = vector.broadcast %124 : vector<1x32xf32> to vector<8x32xf32>
    %146 = arith.addf %144, %145 : vector<8x32xf32>
    %c0_73 = arith.constant 0 : index
    %c0_74 = arith.constant 0 : index
    %c0_75 = arith.constant 0 : index
    %147 = vector.load %arg13[%c0_73, %c0_74, %c0_75] : memref<2x32x64xf32, #tpu.memory_space<vmem>>, vector<1x32x64xf32>
    %148 = vector.shape_cast %147 : vector<1x32x64xf32> to vector<32x64xf32>
    %cst_76 = arith.constant dense<0.000000e+00> : vector<8x64xf32>
    %149 = tpu.matmul %146, %148, %cst_76 {dimension_numbers = #tpu.dot_dimension_numbers<[1], [0], [0], [1], [0, 0, 1, 1], [], []>} : vector<8x32xf32>, vector<32x64xf32>, vector<8x64xf32> -> vector<8x64xf32>
    %c0_77 = arith.constant 0 : index
    %c0_78 = arith.constant 0 : index
    %c0_79 = arith.constant 0 : index
    %150 = vector.load %arg14[%c0_77, %c0_78, %c0_79] : memref<2x1x64xf32, #tpu.memory_space<vmem>>, vector<1x1x64xf32>
    %151 = vector.shape_cast %150 : vector<1x1x64xf32> to vector<1x64xf32>
    %152 = vector.broadcast %151 : vector<1x64xf32> to vector<8x64xf32>
    %153 = arith.addf %149, %152 : vector<8x64xf32>
    %cst_80 = arith.constant 0.000000e+00 : f32
    %154 = vector.broadcast %cst_80 : f32 to vector<8x64xf32>
    %155 = arith.maximumf %153, %154 : vector<8x64xf32>
    %c0_81 = arith.constant 0 : index
    %c0_82 = arith.constant 0 : index
    %c0_83 = arith.constant 0 : index
    %156 = vector.load %arg15[%c0_81, %c0_82, %c0_83] : memref<2x64x32xf32, #tpu.memory_space<vmem>>, vector<1x64x32xf32>
    %157 = vector.shape_cast %156 : vector<1x64x32xf32> to vector<64x32xf32>
    %cst_84 = arith.constant dense<0.000000e+00> : vector<8x32xf32>
    %158 = tpu.matmul %155, %157, %cst_84 {dimension_numbers = #tpu.dot_dimension_numbers<[1], [0], [0], [1], [0, 0, 1, 1], [], []>} : vector<8x64xf32>, vector<64x32xf32>, vector<8x32xf32> -> vector<8x32xf32>
    %c0_85 = arith.constant 0 : index
    %c0_86 = arith.constant 0 : index
    %c0_87 = arith.constant 0 : index
    %159 = vector.load %arg16[%c0_85, %c0_86, %c0_87] : memref<2x1x32xf32, #tpu.memory_space<vmem>>, vector<1x1x32xf32>
    %160 = vector.shape_cast %159 : vector<1x1x32xf32> to vector<1x32xf32>
    %161 = vector.broadcast %160 : vector<1x32xf32> to vector<8x32xf32>
    %162 = arith.addf %158, %161 : vector<8x32xf32>
    %163 = arith.addf %146, %162 : vector<8x32xf32>
    %c0_88 = arith.constant 0 : index
    %c0_89 = arith.constant 0 : index
    %c0_90 = arith.constant 0 : index
    %164 = vector.load %arg17[%c0_88, %c0_89, %c0_90] : memref<2x1x32xf32, #tpu.memory_space<vmem>>, vector<1x1x32xf32>
    %165 = vector.shape_cast %164 : vector<1x1x32xf32> to vector<1x32xf32>
    %c0_91 = arith.constant 0 : index
    %c0_92 = arith.constant 0 : index
    %c0_93 = arith.constant 0 : index
    %166 = vector.load %arg18[%c0_91, %c0_92, %c0_93] : memref<2x1x32xf32, #tpu.memory_space<vmem>>, vector<1x1x32xf32>
    %167 = vector.shape_cast %166 : vector<1x1x32xf32> to vector<1x32xf32>
    %cst_94 = arith.constant dense<0.000000e+00> : vector<8xf32>
    %168 = vector.multi_reduction <add>, %163, %cst_94 [1] : vector<8x32xf32> to vector<8xf32>
    %169 = vector.shape_cast %168 : vector<8xf32> to vector<8x1xf32>
    %cst_95 = arith.constant 3.200000e+01 : f32
    %170 = vector.broadcast %cst_95 : f32 to vector<8x1xf32>
    %171 = arith.divf %169, %170 : vector<8x1xf32>
    %172 = vector.broadcast %171 : vector<8x1xf32> to vector<8x32xf32>
    %173 = arith.subf %163, %172 : vector<8x32xf32>
    %174 = arith.mulf %173, %173 : vector<8x32xf32>
    %cst_96 = arith.constant dense<0.000000e+00> : vector<8xf32>
    %175 = vector.multi_reduction <add>, %174, %cst_96 [1] : vector<8x32xf32> to vector<8xf32>
    %176 = vector.shape_cast %175 : vector<8xf32> to vector<8x1xf32>
    %cst_97 = arith.constant 3.200000e+01 : f32
    %177 = vector.broadcast %cst_97 : f32 to vector<8x1xf32>
    %178 = arith.divf %176, %177 : vector<8x1xf32>
    %179 = vector.broadcast %171 : vector<8x1xf32> to vector<8x32xf32>
    %180 = arith.subf %163, %179 : vector<8x32xf32>
    %cst_98 = arith.constant 9.99999974E-6 : f32
    %181 = vector.broadcast %cst_98 : f32 to vector<8x1xf32>
    %182 = arith.addf %178, %181 : vector<8x1xf32>
    %183 = math.rsqrt %182 : vector<8x1xf32>
    %184 = vector.broadcast %183 : vector<8x1xf32> to vector<8x32xf32>
    %185 = arith.mulf %180, %184 : vector<8x32xf32>
    %186 = vector.broadcast %165 : vector<1x32xf32> to vector<8x32xf32>
    %187 = arith.mulf %185, %186 : vector<8x32xf32>
    %188 = vector.broadcast %167 : vector<1x32xf32> to vector<8x32xf32>
    %189 = arith.addf %187, %188 : vector<8x32xf32>
    %190 = arith.addf %189, %1 : vector<8x32xf32>
    %c1 = arith.constant 1 : index
    %c0_99 = arith.constant 0 : index
    %c0_100 = arith.constant 0 : index
    %191 = vector.load %arg3[%c1, %c0_99, %c0_100] : memref<2x32x32xf32, #tpu.memory_space<vmem>>, vector<1x32x32xf32>
    %192 = vector.shape_cast %191 : vector<1x32x32xf32> to vector<32x32xf32>
    %cst_101 = arith.constant dense<0.000000e+00> : vector<8x32xf32>
    %193 = tpu.matmul %190, %192, %cst_101 {dimension_numbers = #tpu.dot_dimension_numbers<[1], [0], [0], [1], [0, 0, 1, 1], [], []>} : vector<8x32xf32>, vector<32x32xf32>, vector<8x32xf32> -> vector<8x32xf32>
    %c1_102 = arith.constant 1 : index
    %c0_103 = arith.constant 0 : index
    %c0_104 = arith.constant 0 : index
    %194 = vector.load %arg6[%c1_102, %c0_103, %c0_104] : memref<2x1x32xf32, #tpu.memory_space<vmem>>, vector<1x1x32xf32>
    %195 = vector.shape_cast %194 : vector<1x1x32xf32> to vector<1x32xf32>
    %196 = vector.broadcast %195 : vector<1x32xf32> to vector<8x32xf32>
    %197 = arith.addf %193, %196 : vector<8x32xf32>
    %198 = vector.shape_cast %197 : vector<8x32xf32> to vector<1x8x32xf32>
    %c1_105 = arith.constant 1 : index
    %c0_106 = arith.constant 0 : index
    %c0_107 = arith.constant 0 : index
    %199 = vector.load %arg4[%c1_105, %c0_106, %c0_107] : memref<2x32x32xf32, #tpu.memory_space<vmem>>, vector<1x32x32xf32>
    %200 = vector.shape_cast %199 : vector<1x32x32xf32> to vector<32x32xf32>
    %cst_108 = arith.constant dense<0.000000e+00> : vector<16x32xf32>
    %201 = tpu.matmul %3, %200, %cst_108 {dimension_numbers = #tpu.dot_dimension_numbers<[1], [0], [0], [1], [0, 0, 1, 1], [], []>} : vector<16x32xf32>, vector<32x32xf32>, vector<16x32xf32> -> vector<16x32xf32>
    %c1_109 = arith.constant 1 : index
    %c0_110 = arith.constant 0 : index
    %c0_111 = arith.constant 0 : index
    %202 = vector.load %arg7[%c1_109, %c0_110, %c0_111] : memref<2x1x32xf32, #tpu.memory_space<vmem>>, vector<1x1x32xf32>
    %203 = vector.shape_cast %202 : vector<1x1x32xf32> to vector<1x32xf32>
    %204 = vector.broadcast %203 : vector<1x32xf32> to vector<16x32xf32>
    %205 = arith.addf %201, %204 : vector<16x32xf32>
    %206 = vector.shape_cast %205 : vector<16x32xf32> to vector<1x16x32xf32>
    %c1_112 = arith.constant 1 : index
    %c0_113 = arith.constant 0 : index
    %c0_114 = arith.constant 0 : index
    %207 = vector.load %arg5[%c1_112, %c0_113, %c0_114] : memref<2x32x32xf32, #tpu.memory_space<vmem>>, vector<1x32x32xf32>
    %208 = vector.shape_cast %207 : vector<1x32x32xf32> to vector<32x32xf32>
    %cst_115 = arith.constant dense<0.000000e+00> : vector<16x32xf32>
    %209 = tpu.matmul %3, %208, %cst_115 {dimension_numbers = #tpu.dot_dimension_numbers<[1], [0], [0], [1], [0, 0, 1, 1], [], []>} : vector<16x32xf32>, vector<32x32xf32>, vector<16x32xf32> -> vector<16x32xf32>
    %c1_116 = arith.constant 1 : index
    %c0_117 = arith.constant 0 : index
    %c0_118 = arith.constant 0 : index
    %210 = vector.load %arg8[%c1_116, %c0_117, %c0_118] : memref<2x1x32xf32, #tpu.memory_space<vmem>>, vector<1x1x32xf32>
    %211 = vector.shape_cast %210 : vector<1x1x32xf32> to vector<1x32xf32>
    %212 = vector.broadcast %211 : vector<1x32xf32> to vector<16x32xf32>
    %213 = arith.addf %209, %212 : vector<16x32xf32>
    %214 = vector.shape_cast %213 : vector<16x32xf32> to vector<1x16x32xf32>
    %cst_119 = arith.constant 0.000000e+00 : f32
    %215 = vector.broadcast %cst_119 : f32 to vector<8x32xf32>
    %216 = vector.extract_strided_slice %198 {offsets = [0, 0, 0], sizes = [1, 8, 8], strides = [1, 1, 1]} : vector<1x8x32xf32> to vector<1x8x8xf32>
    %217 = vector.extract_strided_slice %206 {offsets = [0, 0, 0], sizes = [1, 16, 8], strides = [1, 1, 1]} : vector<1x16x32xf32> to vector<1x16x8xf32>
    "tpu.trace_start"() <{level = 10 : i32, message = "bqd,bkd->bqk"}> : () -> ()
    %cst_120 = arith.constant dense<0.000000e+00> : vector<1x8x16xf32>
    %218 = tpu.matmul %216, %217, %cst_120 {dimension_numbers = #tpu.dot_dimension_numbers<[2], [2], [1], [1], [0, 0, 0, 1, 1, 1], [0], [0]>} : vector<1x8x8xf32>, vector<1x16x8xf32>, vector<1x8x16xf32> -> vector<1x8x16xf32>
    "tpu.trace_stop"() : () -> ()
    %cst_121 = arith.constant 0.353553385 : f32
    %219 = vector.broadcast %cst_121 : f32 to vector<1x8x16xf32>
    %220 = arith.mulf %218, %219 : vector<1x8x16xf32>
    %cst_122 = arith.constant dense<0xFF800000> : vector<1x8xf32>
    %221 = vector.multi_reduction <maximumf>, %220, %cst_122 [2] : vector<1x8x16xf32> to vector<1x8xf32>
    %222 = vector.shape_cast %221 : vector<1x8xf32> to vector<1x8x1xf32>
    %223 = vector.broadcast %222 : vector<1x8x1xf32> to vector<1x8x16xf32>
    %224 = arith.subf %220, %223 : vector<1x8x16xf32>
    %225 = math.exp %224 : vector<1x8x16xf32>
    %cst_123 = arith.constant dense<0.000000e+00> : vector<1x8xf32>
    %226 = vector.multi_reduction <add>, %225, %cst_123 [2] : vector<1x8x16xf32> to vector<1x8xf32>
    %227 = vector.shape_cast %226 : vector<1x8xf32> to vector<1x8x1xf32>
    %228 = tpu.reciprocal %227 {approx = true} : vector<1x8x1xf32> -> vector<1x8x1xf32>
    %229 = vector.broadcast %228 : vector<1x8x1xf32> to vector<1x8x16xf32>
    %230 = arith.mulf %225, %229 : vector<1x8x16xf32>
    %231 = vector.extract_strided_slice %214 {offsets = [0, 0, 0], sizes = [1, 16, 8], strides = [1, 1, 1]} : vector<1x16x32xf32> to vector<1x16x8xf32>
    "tpu.trace_start"() <{level = 10 : i32, message = "bqk,bkd->bqd"}> : () -> ()
    %cst_124 = arith.constant dense<0.000000e+00> : vector<1x8x8xf32>
    %232 = tpu.matmul %230, %231, %cst_124 {dimension_numbers = #tpu.dot_dimension_numbers<[2], [1], [1], [2], [0, 0, 0, 1, 1, 2], [0], [0]>} : vector<1x8x16xf32>, vector<1x16x8xf32>, vector<1x8x8xf32> -> vector<1x8x8xf32>
    "tpu.trace_stop"() : () -> ()
    %233 = vector.shape_cast %232 : vector<1x8x8xf32> to vector<8x8xf32>
    %c1_125 = arith.constant 1 : index
    %c0_126 = arith.constant 0 : index
    %c0_127 = arith.constant 0 : index
    %234 = vector.load %arg9[%c1_125, %c0_126, %c0_127] : memref<2x32x32xf32, #tpu.memory_space<vmem>>, vector<1x8x32xf32>
    %235 = vector.shape_cast %234 : vector<1x8x32xf32> to vector<8x32xf32>
    %cst_128 = arith.constant dense<0.000000e+00> : vector<8x32xf32>
    %236 = tpu.matmul %233, %235, %cst_128 {dimension_numbers = #tpu.dot_dimension_numbers<[1], [0], [0], [1], [0, 0, 1, 1], [], []>} : vector<8x8xf32>, vector<8x32xf32>, vector<8x32xf32> -> vector<8x32xf32>
    %237 = arith.addf %215, %236 : vector<8x32xf32>
    %238 = vector.extract_strided_slice %198 {offsets = [0, 0, 8], sizes = [1, 8, 8], strides = [1, 1, 1]} : vector<1x8x32xf32> to vector<1x8x8xf32>
    %239 = vector.extract_strided_slice %206 {offsets = [0, 0, 8], sizes = [1, 16, 8], strides = [1, 1, 1]} : vector<1x16x32xf32> to vector<1x16x8xf32>
    "tpu.trace_start"() <{level = 10 : i32, message = "bqd,bkd->bqk"}> : () -> ()
    %cst_129 = arith.constant dense<0.000000e+00> : vector<1x8x16xf32>
    %240 = tpu.matmul %238, %239, %cst_129 {dimension_numbers = #tpu.dot_dimension_numbers<[2], [2], [1], [1], [0, 0, 0, 1, 1, 1], [0], [0]>} : vector<1x8x8xf32>, vector<1x16x8xf32>, vector<1x8x16xf32> -> vector<1x8x16xf32>
    "tpu.trace_stop"() : () -> ()
    %cst_130 = arith.constant 0.353553385 : f32
    %241 = vector.broadcast %cst_130 : f32 to vector<1x8x16xf32>
    %242 = arith.mulf %240, %241 : vector<1x8x16xf32>
    %cst_131 = arith.constant dense<0xFF800000> : vector<1x8xf32>
    %243 = vector.multi_reduction <maximumf>, %242, %cst_131 [2] : vector<1x8x16xf32> to vector<1x8xf32>
    %244 = vector.shape_cast %243 : vector<1x8xf32> to vector<1x8x1xf32>
    %245 = vector.broadcast %244 : vector<1x8x1xf32> to vector<1x8x16xf32>
    %246 = arith.subf %242, %245 : vector<1x8x16xf32>
    %247 = math.exp %246 : vector<1x8x16xf32>
    %cst_132 = arith.constant dense<0.000000e+00> : vector<1x8xf32>
    %248 = vector.multi_reduction <add>, %247, %cst_132 [2] : vector<1x8x16xf32> to vector<1x8xf32>
    %249 = vector.shape_cast %248 : vector<1x8xf32> to vector<1x8x1xf32>
    %250 = tpu.reciprocal %249 {approx = true} : vector<1x8x1xf32> -> vector<1x8x1xf32>
    %251 = vector.broadcast %250 : vector<1x8x1xf32> to vector<1x8x16xf32>
    %252 = arith.mulf %247, %251 : vector<1x8x16xf32>
    %253 = vector.extract_strided_slice %214 {offsets = [0, 0, 8], sizes = [1, 16, 8], strides = [1, 1, 1]} : vector<1x16x32xf32> to vector<1x16x8xf32>
    "tpu.trace_start"() <{level = 10 : i32, message = "bqk,bkd->bqd"}> : () -> ()
    %cst_133 = arith.constant dense<0.000000e+00> : vector<1x8x8xf32>
    %254 = tpu.matmul %252, %253, %cst_133 {dimension_numbers = #tpu.dot_dimension_numbers<[2], [1], [1], [2], [0, 0, 0, 1, 1, 2], [0], [0]>} : vector<1x8x16xf32>, vector<1x16x8xf32>, vector<1x8x8xf32> -> vector<1x8x8xf32>
    "tpu.trace_stop"() : () -> ()
    %255 = vector.shape_cast %254 : vector<1x8x8xf32> to vector<8x8xf32>
    %c1_134 = arith.constant 1 : index
    %c8_135 = arith.constant 8 : index
    %c0_136 = arith.constant 0 : index
    %256 = vector.load %arg9[%c1_134, %c8_135, %c0_136] : memref<2x32x32xf32, #tpu.memory_space<vmem>>, vector<1x8x32xf32>
    %257 = vector.shape_cast %256 : vector<1x8x32xf32> to vector<8x32xf32>
    %cst_137 = arith.constant dense<0.000000e+00> : vector<8x32xf32>
    %258 = tpu.matmul %255, %257, %cst_137 {dimension_numbers = #tpu.dot_dimension_numbers<[1], [0], [0], [1], [0, 0, 1, 1], [], []>} : vector<8x8xf32>, vector<8x32xf32>, vector<8x32xf32> -> vector<8x32xf32>
    %259 = arith.addf %237, %258 : vector<8x32xf32>
    %260 = vector.extract_strided_slice %198 {offsets = [0, 0, 16], sizes = [1, 8, 8], strides = [1, 1, 1]} : vector<1x8x32xf32> to vector<1x8x8xf32>
    %261 = vector.extract_strided_slice %206 {offsets = [0, 0, 16], sizes = [1, 16, 8], strides = [1, 1, 1]} : vector<1x16x32xf32> to vector<1x16x8xf32>
    "tpu.trace_start"() <{level = 10 : i32, message = "bqd,bkd->bqk"}> : () -> ()
    %cst_138 = arith.constant dense<0.000000e+00> : vector<1x8x16xf32>
    %262 = tpu.matmul %260, %261, %cst_138 {dimension_numbers = #tpu.dot_dimension_numbers<[2], [2], [1], [1], [0, 0, 0, 1, 1, 1], [0], [0]>} : vector<1x8x8xf32>, vector<1x16x8xf32>, vector<1x8x16xf32> -> vector<1x8x16xf32>
    "tpu.trace_stop"() : () -> ()
    %cst_139 = arith.constant 0.353553385 : f32
    %263 = vector.broadcast %cst_139 : f32 to vector<1x8x16xf32>
    %264 = arith.mulf %262, %263 : vector<1x8x16xf32>
    %cst_140 = arith.constant dense<0xFF800000> : vector<1x8xf32>
    %265 = vector.multi_reduction <maximumf>, %264, %cst_140 [2] : vector<1x8x16xf32> to vector<1x8xf32>
    %266 = vector.shape_cast %265 : vector<1x8xf32> to vector<1x8x1xf32>
    %267 = vector.broadcast %266 : vector<1x8x1xf32> to vector<1x8x16xf32>
    %268 = arith.subf %264, %267 : vector<1x8x16xf32>
    %269 = math.exp %268 : vector<1x8x16xf32>
    %cst_141 = arith.constant dense<0.000000e+00> : vector<1x8xf32>
    %270 = vector.multi_reduction <add>, %269, %cst_141 [2] : vector<1x8x16xf32> to vector<1x8xf32>
    %271 = vector.shape_cast %270 : vector<1x8xf32> to vector<1x8x1xf32>
    %272 = tpu.reciprocal %271 {approx = true} : vector<1x8x1xf32> -> vector<1x8x1xf32>
    %273 = vector.broadcast %272 : vector<1x8x1xf32> to vector<1x8x16xf32>
    %274 = arith.mulf %269, %273 : vector<1x8x16xf32>
    %275 = vector.extract_strided_slice %214 {offsets = [0, 0, 16], sizes = [1, 16, 8], strides = [1, 1, 1]} : vector<1x16x32xf32> to vector<1x16x8xf32>
    "tpu.trace_start"() <{level = 10 : i32, message = "bqk,bkd->bqd"}> : () -> ()
    %cst_142 = arith.constant dense<0.000000e+00> : vector<1x8x8xf32>
    %276 = tpu.matmul %274, %275, %cst_142 {dimension_numbers = #tpu.dot_dimension_numbers<[2], [1], [1], [2], [0, 0, 0, 1, 1, 2], [0], [0]>} : vector<1x8x16xf32>, vector<1x16x8xf32>, vector<1x8x8xf32> -> vector<1x8x8xf32>
    "tpu.trace_stop"() : () -> ()
    %277 = vector.shape_cast %276 : vector<1x8x8xf32> to vector<8x8xf32>
    %c1_143 = arith.constant 1 : index
    %c16_144 = arith.constant 16 : index
    %c0_145 = arith.constant 0 : index
    %278 = vector.load %arg9[%c1_143, %c16_144, %c0_145] : memref<2x32x32xf32, #tpu.memory_space<vmem>>, vector<1x8x32xf32>
    %279 = vector.shape_cast %278 : vector<1x8x32xf32> to vector<8x32xf32>
    %cst_146 = arith.constant dense<0.000000e+00> : vector<8x32xf32>
    %280 = tpu.matmul %277, %279, %cst_146 {dimension_numbers = #tpu.dot_dimension_numbers<[1], [0], [0], [1], [0, 0, 1, 1], [], []>} : vector<8x8xf32>, vector<8x32xf32>, vector<8x32xf32> -> vector<8x32xf32>
    %281 = arith.addf %259, %280 : vector<8x32xf32>
    %282 = vector.extract_strided_slice %198 {offsets = [0, 0, 24], sizes = [1, 8, 8], strides = [1, 1, 1]} : vector<1x8x32xf32> to vector<1x8x8xf32>
    %283 = vector.extract_strided_slice %206 {offsets = [0, 0, 24], sizes = [1, 16, 8], strides = [1, 1, 1]} : vector<1x16x32xf32> to vector<1x16x8xf32>
    "tpu.trace_start"() <{level = 10 : i32, message = "bqd,bkd->bqk"}> : () -> ()
    %cst_147 = arith.constant dense<0.000000e+00> : vector<1x8x16xf32>
    %284 = tpu.matmul %282, %283, %cst_147 {dimension_numbers = #tpu.dot_dimension_numbers<[2], [2], [1], [1], [0, 0, 0, 1, 1, 1], [0], [0]>} : vector<1x8x8xf32>, vector<1x16x8xf32>, vector<1x8x16xf32> -> vector<1x8x16xf32>
    "tpu.trace_stop"() : () -> ()
    %cst_148 = arith.constant 0.353553385 : f32
    %285 = vector.broadcast %cst_148 : f32 to vector<1x8x16xf32>
    %286 = arith.mulf %284, %285 : vector<1x8x16xf32>
    %cst_149 = arith.constant dense<0xFF800000> : vector<1x8xf32>
    %287 = vector.multi_reduction <maximumf>, %286, %cst_149 [2] : vector<1x8x16xf32> to vector<1x8xf32>
    %288 = vector.shape_cast %287 : vector<1x8xf32> to vector<1x8x1xf32>
    %289 = vector.broadcast %288 : vector<1x8x1xf32> to vector<1x8x16xf32>
    %290 = arith.subf %286, %289 : vector<1x8x16xf32>
    %291 = math.exp %290 : vector<1x8x16xf32>
    %cst_150 = arith.constant dense<0.000000e+00> : vector<1x8xf32>
    %292 = vector.multi_reduction <add>, %291, %cst_150 [2] : vector<1x8x16xf32> to vector<1x8xf32>
    %293 = vector.shape_cast %292 : vector<1x8xf32> to vector<1x8x1xf32>
    %294 = tpu.reciprocal %293 {approx = true} : vector<1x8x1xf32> -> vector<1x8x1xf32>
    %295 = vector.broadcast %294 : vector<1x8x1xf32> to vector<1x8x16xf32>
    %296 = arith.mulf %291, %295 : vector<1x8x16xf32>
    %297 = vector.extract_strided_slice %214 {offsets = [0, 0, 24], sizes = [1, 16, 8], strides = [1, 1, 1]} : vector<1x16x32xf32> to vector<1x16x8xf32>
    "tpu.trace_start"() <{level = 10 : i32, message = "bqk,bkd->bqd"}> : () -> ()
    %cst_151 = arith.constant dense<0.000000e+00> : vector<1x8x8xf32>
    %298 = tpu.matmul %296, %297, %cst_151 {dimension_numbers = #tpu.dot_dimension_numbers<[2], [1], [1], [2], [0, 0, 0, 1, 1, 2], [0], [0]>} : vector<1x8x16xf32>, vector<1x16x8xf32>, vector<1x8x8xf32> -> vector<1x8x8xf32>
    "tpu.trace_stop"() : () -> ()
    %299 = vector.shape_cast %298 : vector<1x8x8xf32> to vector<8x8xf32>
    %c1_152 = arith.constant 1 : index
    %c24_153 = arith.constant 24 : index
    %c0_154 = arith.constant 0 : index
    %300 = vector.load %arg9[%c1_152, %c24_153, %c0_154] : memref<2x32x32xf32, #tpu.memory_space<vmem>>, vector<1x8x32xf32>
    %301 = vector.shape_cast %300 : vector<1x8x32xf32> to vector<8x32xf32>
    %cst_155 = arith.constant dense<0.000000e+00> : vector<8x32xf32>
    %302 = tpu.matmul %299, %301, %cst_155 {dimension_numbers = #tpu.dot_dimension_numbers<[1], [0], [0], [1], [0, 0, 1, 1], [], []>} : vector<8x8xf32>, vector<8x32xf32>, vector<8x32xf32> -> vector<8x32xf32>
    %303 = arith.addf %281, %302 : vector<8x32xf32>
    %c1_156 = arith.constant 1 : index
    %c0_157 = arith.constant 0 : index
    %c0_158 = arith.constant 0 : index
    %304 = vector.load %arg10[%c1_156, %c0_157, %c0_158] : memref<2x1x32xf32, #tpu.memory_space<vmem>>, vector<1x1x32xf32>
    %305 = vector.shape_cast %304 : vector<1x1x32xf32> to vector<1x32xf32>
    %306 = vector.broadcast %305 : vector<1x32xf32> to vector<8x32xf32>
    %307 = arith.addf %303, %306 : vector<8x32xf32>
    %308 = arith.addf %189, %307 : vector<8x32xf32>
    %c1_159 = arith.constant 1 : index
    %c0_160 = arith.constant 0 : index
    %c0_161 = arith.constant 0 : index
    %309 = vector.load %arg11[%c1_159, %c0_160, %c0_161] : memref<2x1x32xf32, #tpu.memory_space<vmem>>, vector<1x1x32xf32>
    %310 = vector.shape_cast %309 : vector<1x1x32xf32> to vector<1x32xf32>
    %c1_162 = arith.constant 1 : index
    %c0_163 = arith.constant 0 : index
    %c0_164 = arith.constant 0 : index
    %311 = vector.load %arg12[%c1_162, %c0_163, %c0_164] : memref<2x1x32xf32, #tpu.memory_space<vmem>>, vector<1x1x32xf32>
    %312 = vector.shape_cast %311 : vector<1x1x32xf32> to vector<1x32xf32>
    %cst_165 = arith.constant dense<0.000000e+00> : vector<8xf32>
    %313 = vector.multi_reduction <add>, %308, %cst_165 [1] : vector<8x32xf32> to vector<8xf32>
    %314 = vector.shape_cast %313 : vector<8xf32> to vector<8x1xf32>
    %cst_166 = arith.constant 3.200000e+01 : f32
    %315 = vector.broadcast %cst_166 : f32 to vector<8x1xf32>
    %316 = arith.divf %314, %315 : vector<8x1xf32>
    %317 = vector.broadcast %316 : vector<8x1xf32> to vector<8x32xf32>
    %318 = arith.subf %308, %317 : vector<8x32xf32>
    %319 = arith.mulf %318, %318 : vector<8x32xf32>
    %cst_167 = arith.constant dense<0.000000e+00> : vector<8xf32>
    %320 = vector.multi_reduction <add>, %319, %cst_167 [1] : vector<8x32xf32> to vector<8xf32>
    %321 = vector.shape_cast %320 : vector<8xf32> to vector<8x1xf32>
    %cst_168 = arith.constant 3.200000e+01 : f32
    %322 = vector.broadcast %cst_168 : f32 to vector<8x1xf32>
    %323 = arith.divf %321, %322 : vector<8x1xf32>
    %324 = vector.broadcast %316 : vector<8x1xf32> to vector<8x32xf32>
    %325 = arith.subf %308, %324 : vector<8x32xf32>
    %cst_169 = arith.constant 9.99999974E-6 : f32
    %326 = vector.broadcast %cst_169 : f32 to vector<8x1xf32>
    %327 = arith.addf %323, %326 : vector<8x1xf32>
    %328 = math.rsqrt %327 : vector<8x1xf32>
    %329 = vector.broadcast %328 : vector<8x1xf32> to vector<8x32xf32>
    %330 = arith.mulf %325, %329 : vector<8x32xf32>
    %331 = vector.broadcast %310 : vector<1x32xf32> to vector<8x32xf32>
    %332 = arith.mulf %330, %331 : vector<8x32xf32>
    %333 = vector.broadcast %312 : vector<1x32xf32> to vector<8x32xf32>
    %334 = arith.addf %332, %333 : vector<8x32xf32>
    %c1_170 = arith.constant 1 : index
    %c0_171 = arith.constant 0 : index
    %c0_172 = arith.constant 0 : index
    %335 = vector.load %arg13[%c1_170, %c0_171, %c0_172] : memref<2x32x64xf32, #tpu.memory_space<vmem>>, vector<1x32x64xf32>
    %336 = vector.shape_cast %335 : vector<1x32x64xf32> to vector<32x64xf32>
    %cst_173 = arith.constant dense<0.000000e+00> : vector<8x64xf32>
    %337 = tpu.matmul %334, %336, %cst_173 {dimension_numbers = #tpu.dot_dimension_numbers<[1], [0], [0], [1], [0, 0, 1, 1], [], []>} : vector<8x32xf32>, vector<32x64xf32>, vector<8x64xf32> -> vector<8x64xf32>
    %c1_174 = arith.constant 1 : index
    %c0_175 = arith.constant 0 : index
    %c0_176 = arith.constant 0 : index
    %338 = vector.load %arg14[%c1_174, %c0_175, %c0_176] : memref<2x1x64xf32, #tpu.memory_space<vmem>>, vector<1x1x64xf32>
    %339 = vector.shape_cast %338 : vector<1x1x64xf32> to vector<1x64xf32>
    %340 = vector.broadcast %339 : vector<1x64xf32> to vector<8x64xf32>
    %341 = arith.addf %337, %340 : vector<8x64xf32>
    %cst_177 = arith.constant 0.000000e+00 : f32
    %342 = vector.broadcast %cst_177 : f32 to vector<8x64xf32>
    %343 = arith.maximumf %341, %342 : vector<8x64xf32>
    %c1_178 = arith.constant 1 : index
    %c0_179 = arith.constant 0 : index
    %c0_180 = arith.constant 0 : index
    %344 = vector.load %arg15[%c1_178, %c0_179, %c0_180] : memref<2x64x32xf32, #tpu.memory_space<vmem>>, vector<1x64x32xf32>
    %345 = vector.shape_cast %344 : vector<1x64x32xf32> to vector<64x32xf32>
    %cst_181 = arith.constant dense<0.000000e+00> : vector<8x32xf32>
    %346 = tpu.matmul %343, %345, %cst_181 {dimension_numbers = #tpu.dot_dimension_numbers<[1], [0], [0], [1], [0, 0, 1, 1], [], []>} : vector<8x64xf32>, vector<64x32xf32>, vector<8x32xf32> -> vector<8x32xf32>
    %c1_182 = arith.constant 1 : index
    %c0_183 = arith.constant 0 : index
    %c0_184 = arith.constant 0 : index
    %347 = vector.load %arg16[%c1_182, %c0_183, %c0_184] : memref<2x1x32xf32, #tpu.memory_space<vmem>>, vector<1x1x32xf32>
    %348 = vector.shape_cast %347 : vector<1x1x32xf32> to vector<1x32xf32>
    %349 = vector.broadcast %348 : vector<1x32xf32> to vector<8x32xf32>
    %350 = arith.addf %346, %349 : vector<8x32xf32>
    %351 = arith.addf %334, %350 : vector<8x32xf32>
    %c1_185 = arith.constant 1 : index
    %c0_186 = arith.constant 0 : index
    %c0_187 = arith.constant 0 : index
    %352 = vector.load %arg17[%c1_185, %c0_186, %c0_187] : memref<2x1x32xf32, #tpu.memory_space<vmem>>, vector<1x1x32xf32>
    %353 = vector.shape_cast %352 : vector<1x1x32xf32> to vector<1x32xf32>
    %c1_188 = arith.constant 1 : index
    %c0_189 = arith.constant 0 : index
    %c0_190 = arith.constant 0 : index
    %354 = vector.load %arg18[%c1_188, %c0_189, %c0_190] : memref<2x1x32xf32, #tpu.memory_space<vmem>>, vector<1x1x32xf32>
    %355 = vector.shape_cast %354 : vector<1x1x32xf32> to vector<1x32xf32>
    %cst_191 = arith.constant dense<0.000000e+00> : vector<8xf32>
    %356 = vector.multi_reduction <add>, %351, %cst_191 [1] : vector<8x32xf32> to vector<8xf32>
    %357 = vector.shape_cast %356 : vector<8xf32> to vector<8x1xf32>
    %cst_192 = arith.constant 3.200000e+01 : f32
    %358 = vector.broadcast %cst_192 : f32 to vector<8x1xf32>
    %359 = arith.divf %357, %358 : vector<8x1xf32>
    %360 = vector.broadcast %359 : vector<8x1xf32> to vector<8x32xf32>
    %361 = arith.subf %351, %360 : vector<8x32xf32>
    %362 = arith.mulf %361, %361 : vector<8x32xf32>
    %cst_193 = arith.constant dense<0.000000e+00> : vector<8xf32>
    %363 = vector.multi_reduction <add>, %362, %cst_193 [1] : vector<8x32xf32> to vector<8xf32>
    %364 = vector.shape_cast %363 : vector<8xf32> to vector<8x1xf32>
    %cst_194 = arith.constant 3.200000e+01 : f32
    %365 = vector.broadcast %cst_194 : f32 to vector<8x1xf32>
    %366 = arith.divf %364, %365 : vector<8x1xf32>
    %367 = vector.broadcast %359 : vector<8x1xf32> to vector<8x32xf32>
    %368 = arith.subf %351, %367 : vector<8x32xf32>
    %cst_195 = arith.constant 9.99999974E-6 : f32
    %369 = vector.broadcast %cst_195 : f32 to vector<8x1xf32>
    %370 = arith.addf %366, %369 : vector<8x1xf32>
    %371 = math.rsqrt %370 : vector<8x1xf32>
    %372 = vector.broadcast %371 : vector<8x1xf32> to vector<8x32xf32>
    %373 = arith.mulf %368, %372 : vector<8x32xf32>
    %374 = vector.broadcast %353 : vector<1x32xf32> to vector<8x32xf32>
    %375 = arith.mulf %373, %374 : vector<8x32xf32>
    %376 = vector.broadcast %355 : vector<1x32xf32> to vector<8x32xf32>
    %377 = arith.addf %375, %376 : vector<8x32xf32>
    %c0_196 = arith.constant 0 : index
    %c0_197 = arith.constant 0 : index
    %378 = vector.load %arg19[%c0_196, %c0_197] : memref<32x32xf32, #tpu.memory_space<vmem>>, vector<32x32xf32>
    %cst_198 = arith.constant dense<0.000000e+00> : vector<8x32xf32>
    %379 = tpu.matmul %377, %378, %cst_198 {dimension_numbers = #tpu.dot_dimension_numbers<[1], [0], [0], [1], [0, 0, 1, 1], [], []>} : vector<8x32xf32>, vector<32x32xf32>, vector<8x32xf32> -> vector<8x32xf32>
    %c0_199 = arith.constant 0 : index
    %c0_200 = arith.constant 0 : index
    %380 = vector.load %arg20[%c0_199, %c0_200] : memref<1x32xf32, #tpu.memory_space<vmem>>, vector<1x32xf32>
    %381 = vector.broadcast %380 : vector<1x32xf32> to vector<8x32xf32>
    %382 = arith.addf %379, %381 : vector<8x32xf32>
    %cst_201 = arith.constant 0.000000e+00 : f32
    %383 = vector.broadcast %cst_201 : f32 to vector<8x32xf32>
    %384 = arith.maximumf %382, %383 : vector<8x32xf32>
    %c0_202 = arith.constant 0 : index
    %c0_203 = arith.constant 0 : index
    %385 = vector.load %arg21[%c0_202, %c0_203] : memref<32x32xf32, #tpu.memory_space<vmem>>, vector<32x32xf32>
    %cst_204 = arith.constant dense<0.000000e+00> : vector<8x32xf32>
    %386 = tpu.matmul %384, %385, %cst_204 {dimension_numbers = #tpu.dot_dimension_numbers<[1], [0], [0], [1], [0, 0, 1, 1], [], []>} : vector<8x32xf32>, vector<32x32xf32>, vector<8x32xf32> -> vector<8x32xf32>
    %c0_205 = arith.constant 0 : index
    %c0_206 = arith.constant 0 : index
    %387 = vector.load %arg22[%c0_205, %c0_206] : memref<1x32xf32, #tpu.memory_space<vmem>>, vector<1x32xf32>
    %388 = vector.broadcast %387 : vector<1x32xf32> to vector<8x32xf32>
    %389 = arith.addf %386, %388 : vector<8x32xf32>
    %390 = vector.shape_cast %389 : vector<8x32xf32> to vector<1x8x32xf32>
    %c0_207 = arith.constant 0 : index
    %c0_208 = arith.constant 0 : index
    %c0_209 = arith.constant 0 : index
    %391 = vector.load %arg23[%c0_207, %c0_208, %c0_209] : memref<1x8x32xf32, #tpu.memory_space<vmem>>, vector<1x8x32xf32>
    tpu.vector_store %arg23[%c0_207, %c0_208, %c0_209], %390 {strides = array<i32>} : memref<1x8x32xf32, #tpu.memory_space<vmem>>, vector<1x8x32xf32>,
    return
  }
  func.func @transform_0(%arg0: i32) -> (i32, i32, i32) {
    %c0_i32 = arith.constant 0 : i32
    %c0_i32_0 = arith.constant 0 : i32
    %c0_i32_1 = arith.constant 0 : i32
    return %arg0, %c0_i32, %c0_i32_0 : i32, i32, i32
  }
  func.func @transform_1(%arg0: i32) -> (i32, i32, i32) {
    %c0_i32 = arith.constant 0 : i32
    %c0_i32_0 = arith.constant 0 : i32
    %c0_i32_1 = arith.constant 0 : i32
    return %arg0, %c0_i32, %c0_i32_0 : i32, i32, i32
  }
  func.func @transform_2(%arg0: i32) -> (i32, i32, i32) {
    %c0_i32 = arith.constant 0 : i32
    %c0_i32_0 = arith.constant 0 : i32
    %c0_i32_1 = arith.constant 0 : i32
    %c0_i32_2 = arith.constant 0 : i32
    return %c0_i32, %c0_i32_0, %c0_i32_1 : i32, i32, i32
  }
  func.func @transform_3(%arg0: i32) -> (i32, i32, i32) {
    %c0_i32 = arith.constant 0 : i32
    %c0_i32_0 = arith.constant 0 : i32
    %c0_i32_1 = arith.constant 0 : i32
    %c0_i32_2 = arith.constant 0 : i32
    return %c0_i32, %c0_i32_0, %c0_i32_1 : i32, i32, i32
  }
  func.func @transform_4(%arg0: i32) -> (i32, i32, i32) {
    %c0_i32 = arith.constant 0 : i32
    %c0_i32_0 = arith.constant 0 : i32
    %c0_i32_1 = arith.constant 0 : i32
    %c0_i32_2 = arith.constant 0 : i32
    return %c0_i32, %c0_i32_0, %c0_i32_1 : i32, i32, i32
  }
  func.func @transform_5(%arg0: i32) -> (i32, i32, i32) {
    %c0_i32 = arith.constant 0 : i32
    %c0_i32_0 = arith.constant 0 : i32
    %c0_i32_1 = arith.constant 0 : i32
    %c0_i32_2 = arith.constant 0 : i32
    return %c0_i32, %c0_i32_0, %c0_i32_1 : i32, i32, i32
  }
  func.func @transform_6(%arg0: i32) -> (i32, i32, i32) {
    %c0_i32 = arith.constant 0 : i32
    %c0_i32_0 = arith.constant 0 : i32
    %c0_i32_1 = arith.constant 0 : i32
    %c0_i32_2 = arith.constant 0 : i32
    return %c0_i32, %c0_i32_0, %c0_i32_1 : i32, i32, i32
  }
  func.func @transform_7(%arg0: i32) -> (i32, i32, i32) {
    %c0_i32 = arith.constant 0 : i32
    %c0_i32_0 = arith.constant 0 : i32
    %c0_i32_1 = arith.constant 0 : i32
    %c0_i32_2 = arith.constant 0 : i32
    return %c0_i32, %c0_i32_0, %c0_i32_1 : i32, i32, i32
  }
  func.func @transform_8(%arg0: i32) -> (i32, i32, i32) {
    %c0_i32 = arith.constant 0 : i32
    %c0_i32_0 = arith.constant 0 : i32
    %c0_i32_1 = arith.constant 0 : i32
    %c0_i32_2 = arith.constant 0 : i32
    return %c0_i32, %c0_i32_0, %c0_i32_1 : i32, i32, i32
  }
  func.func @transform_9(%arg0: i32) -> (i32, i32, i32) {
    %c0_i32 = arith.constant 0 : i32
    %c0_i32_0 = arith.constant 0 : i32
    %c0_i32_1 = arith.constant 0 : i32
    %c0_i32_2 = arith.constant 0 : i32
    return %c0_i32, %c0_i32_0, %c0_i32_1 : i32, i32, i32
  }
  func.func @transform_10(%arg0: i32) -> (i32, i32, i32) {
    %c0_i32 = arith.constant 0 : i32
    %c0_i32_0 = arith.constant 0 : i32
    %c0_i32_1 = arith.constant 0 : i32
    %c0_i32_2 = arith.constant 0 : i32
    return %c0_i32, %c0_i32_0, %c0_i32_1 : i32, i32, i32
  }
  func.func @transform_11(%arg0: i32) -> (i32, i32, i32) {
    %c0_i32 = arith.constant 0 : i32
    %c0_i32_0 = arith.constant 0 : i32
    %c0_i32_1 = arith.constant 0 : i32
    %c0_i32_2 = arith.constant 0 : i32
    return %c0_i32, %c0_i32_0, %c0_i32_1 : i32, i32, i32
  }
  func.func @transform_12(%arg0: i32) -> (i32, i32, i32) {
    %c0_i32 = arith.constant 0 : i32
    %c0_i32_0 = arith.constant 0 : i32
    %c0_i32_1 = arith.constant 0 : i32
    %c0_i32_2 = arith.constant 0 : i32
    return %c0_i32, %c0_i32_0, %c0_i32_1 : i32, i32, i32
  }
  func.func @transform_13(%arg0: i32) -> (i32, i32, i32) {
    %c0_i32 = arith.constant 0 : i32
    %c0_i32_0 = arith.constant 0 : i32
    %c0_i32_1 = arith.constant 0 : i32
    %c0_i32_2 = arith.constant 0 : i32
    return %c0_i32, %c0_i32_0, %c0_i32_1 : i32, i32, i32
  }
  func.func @transform_14(%arg0: i32) -> (i32, i32, i32) {
    %c0_i32 = arith.constant 0 : i32
    %c0_i32_0 = arith.constant 0 : i32
    %c0_i32_1 = arith.constant 0 : i32
    %c0_i32_2 = arith.constant 0 : i32
    return %c0_i32, %c0_i32_0, %c0_i32_1 : i32, i32, i32
  }
  func.func @transform_15(%arg0: i32) -> (i32, i32, i32) {
    %c0_i32 = arith.constant 0 : i32
    %c0_i32_0 = arith.constant 0 : i32
    %c0_i32_1 = arith.constant 0 : i32
    %c0_i32_2 = arith.constant 0 : i32
    return %c0_i32, %c0_i32_0, %c0_i32_1 : i32, i32, i32
  }
  func.func @transform_16(%arg0: i32) -> (i32, i32, i32) {
    %c0_i32 = arith.constant 0 : i32
    %c0_i32_0 = arith.constant 0 : i32
    %c0_i32_1 = arith.constant 0 : i32
    %c0_i32_2 = arith.constant 0 : i32
    return %c0_i32, %c0_i32_0, %c0_i32_1 : i32, i32, i32
  }
  func.func @transform_17(%arg0: i32) -> (i32, i32, i32) {
    %c0_i32 = arith.constant 0 : i32
    %c0_i32_0 = arith.constant 0 : i32
    %c0_i32_1 = arith.constant 0 : i32
    %c0_i32_2 = arith.constant 0 : i32
    return %c0_i32, %c0_i32_0, %c0_i32_1 : i32, i32, i32
  }
  func.func @transform_18(%arg0: i32) -> (i32, i32) {
    %c0_i32 = arith.constant 0 : i32
    %c0_i32_0 = arith.constant 0 : i32
    %c0_i32_1 = arith.constant 0 : i32
    return %c0_i32, %c0_i32_0 : i32, i32
  }
  func.func @transform_19(%arg0: i32) -> (i32, i32) {
    %c0_i32 = arith.constant 0 : i32
    %c0_i32_0 = arith.constant 0 : i32
    %c0_i32_1 = arith.constant 0 : i32
    return %c0_i32, %c0_i32_0 : i32, i32
  }
  func.func @transform_20(%arg0: i32) -> (i32, i32) {
    %c0_i32 = arith.constant 0 : i32
    %c0_i32_0 = arith.constant 0 : i32
    %c0_i32_1 = arith.constant 0 : i32
    return %c0_i32, %c0_i32_0 : i32, i32
  }
  func.func @transform_21(%arg0: i32) -> (i32, i32) {
    %c0_i32 = arith.constant 0 : i32
    %c0_i32_0 = arith.constant 0 : i32
    %c0_i32_1 = arith.constant 0 : i32
    return %c0_i32, %c0_i32_0 : i32, i32
  }
  func.func @transform_22(%arg0: i32) -> (i32, i32, i32) {
    %c0_i32 = arith.constant 0 : i32
    %c0_i32_0 = arith.constant 0 : i32
    %c0_i32_1 = arith.constant 0 : i32
    return %arg0, %c0_i32, %c0_i32_0 : i32, i32, i32
  }
}

</mosaic_0001>

<llo_original>
// kernel: tpu_custom_call.1
$region0: #{tpu_custom_call.1}
  #allocation0 [shape = 'u32[]', space=smem, size = 0x4, offset = 0x4, fixed_abs, tag = 'smem constant byte address 0x4 - core index']
  #allocation1 [shape = 'u32[144,128]{1,0:T(1,128)}', space=vmem, size = 0x12000, scoped, tag = 'internal scratch']
  %s0 = inlined_call_operand.hbm [shape: f32[2,8,32], index: 0, kind: input, shape index: {}]
  %s1 = inlined_call_operand.hbm [shape: f32[2,16,32], index: 1, kind: input, shape index: {}]
  %s2 = inlined_call_operand.vmem [shape: f32[2,32,32], index: 2, kind: input, shape index: {}]
  %s3 = inlined_call_operand.vmem [shape: f32[2,32,32], index: 3, kind: input, shape index: {}]
  %s4 = inlined_call_operand.vmem [shape: f32[2,32,32], index: 4, kind: input, shape index: {}]
  %s5 = inlined_call_operand.hbm [shape: f32[2,1,32], index: 5, kind: input, shape index: {}]
  %s6 = inlined_call_operand.hbm [shape: f32[2,1,32], index: 6, kind: input, shape index: {}]
  %s7 = inlined_call_operand.hbm [shape: f32[2,1,32], index: 7, kind: input, shape index: {}]
  %s8 = inlined_call_operand.hbm [shape: f32[2,32,32], index: 8, kind: input, shape index: {}]
  %s9 = inlined_call_operand.hbm [shape: f32[2,1,32], index: 9, kind: input, shape index: {}]
  %s10 = inlined_call_operand.hbm [shape: f32[2,1,32], index: 10, kind: input, shape index: {}]
  %s11 = inlined_call_operand.hbm [shape: f32[2,1,32], index: 11, kind: input, shape index: {}]
  %s12 = inlined_call_operand.hbm [shape: f32[2,32,64], index: 12, kind: input, shape index: {}]
  %s13 = inlined_call_operand.hbm [shape: f32[2,1,64], index: 13, kind: input, shape index: {}]
  %s14 = inlined_call_operand.vmem [shape: f32[2,64,32], index: 14, kind: input, shape index: {}]
  %s15 = inlined_call_operand.hbm [shape: f32[2,1,32], index: 15, kind: input, shape index: {}]
  %s16 = inlined_call_operand.hbm [shape: f32[2,1,32], index: 16, kind: input, shape index: {}]
  %s17 = inlined_call_operand.hbm [shape: f32[2,1,32], index: 17, kind: input, shape index: {}]
  %s18 = inlined_call_operand.vmem [shape: f32[32,32], index: 18, kind: input, shape index: {}]
  %s19 = inlined_call_operand.hbm [shape: f32[1,32], index: 19, kind: input, shape index: {}]
  %s20 = inlined_call_operand.hbm [shape: f32[32,32], index: 20, kind: input, shape index: {}]
  %s21 = inlined_call_operand.vmem [shape: f32[1,32], index: 21, kind: input, shape index: {}]
  %s22 = inlined_call_operand.hbm [shape: f32[2,8,32], index: 22, kind: output, shape index: {}]
  %s23 = sld [smem:[#allocation0]]
  $region185: #{tpu_custom_call.1} parent=0
    _
  %s25 = ssub.s32 1, %s23
  %s26 = scalar_select 0, %s25, %s23
  $region1: #{tpu_custom_call.1} parent=0
    #allocation2 [shape = 'u8[8192]{0}', space=vmem, size = 0x2000, scoped, tag = 'input window, operand 0']
    #allocation3 [shape = 's32[2]{0}', space=sflag, size = 0x8, scoped, tag = 'scoped memory for tpu_custom_call.1']
    #allocation4 [shape = 's32[2]{0}', space=sflag, size = 0x8, scoped, tag = 'scoped memory for tpu_custom_call.1']
    #allocation5 [shape = 'u8[16384]{0}', space=vmem, size = 0x4000, scoped, tag = 'input window, operand 1']
    #allocation6 [shape = 's32[2]{0}', space=sflag, size = 0x8, scoped, tag = 'scoped memory for tpu_custom_call.1']
    #allocation7 [shape = 'u8[1024]{0}', space=vmem, size = 0x400, scoped, tag = 'input window, operand 5, single buffered']
    #allocation8 [shape = 'u8[1024]{0}', space=vmem, size = 0x400, scoped, tag = 'input window, operand 6, single buffered']
    #allocation9 [shape = 's32[1]{0}', space=sflag, size = 0x4, scoped, tag = 'scoped memory for tpu_custom_call.1']
    #allocation10 [shape = 'u8[1024]{0}', space=vmem, size = 0x400, scoped, tag = 'input window, operand 7, single buffered']
    #allocation11 [shape = 'u8[32768]{0}', space=vmem, size = 0x8000, scoped, tag = 'input window, operand 8, single buffered']
    #allocation12 [shape = 's32[1]{0}', space=sflag, size = 0x4, scoped, tag = 'scoped memory for tpu_custom_call.1']
    #allocation13 [shape = 'u8[1024]{0}', space=vmem, size = 0x400, scoped, tag = 'input window, operand 9, single buffered']
    #allocation14 [shape = 'u8[1024]{0}', space=vmem, size = 0x400, scoped, tag = 'input window, operand 10, single buffered']
    #allocation15 [shape = 's32[1]{0}', space=sflag, size = 0x4, scoped, tag = 'scoped memory for tpu_custom_call.1']
    #allocation16 [shape = 'u8[1024]{0}', space=vmem, size = 0x400, scoped, tag = 'input window, operand 11, single buffered']
    #allocation17 [shape = 'u8[32768]{0}', space=vmem, size = 0x8000, scoped, tag = 'input window, operand 12, single buffered']
    #allocation18 [shape = 's32[1]{0}', space=sflag, size = 0x4, scoped, tag = 'scoped memory for tpu_custom_call.1']
    #allocation19 [shape = 'u8[1024]{0}', space=vmem, size = 0x400, scoped, tag = 'input window, operand 13, single buffered']
    #allocation20 [shape = 'u8[1024]{0}', space=vmem, size = 0x400, scoped, tag = 'input window, operand 15, single buffered']
    #allocation21 [shape = 's32[1]{0}', space=sflag, size = 0x4, scoped, tag = 'scoped memory for tpu_custom_call.1']
    #allocation22 [shape = 'u8[1024]{0}', space=vmem, size = 0x400, scoped, tag = 'input window, operand 16, single buffered']
    #allocation23 [shape = 'u8[1024]{0}', space=vmem, size = 0x400, scoped, tag = 'input window, operand 17, single buffered']
    #allocation24 [shape = 's32[1]{0}', space=sflag, size = 0x4, scoped, tag = 'scoped memory for tpu_custom_call.1']
    #allocation25 [shape = 'u8[512]{0}', space=vmem, size = 0x400, scoped, tag = 'input window, operand 19, single buffered']
    #allocation26 [shape = 'u8[16384]{0}', space=vmem, size = 0x4000, scoped, tag = 'input window, operand 20, single buffered']
    #allocation27 [shape = 's32[1]{0}', space=sflag, size = 0x4, scoped, tag = 'scoped memory for tpu_custom_call.1']
    #allocation28 [shape = 'u8[8192]{0}', space=vmem, size = 0x2000, scoped, tag = 'output window, operand 0']
    %27 = vsyncpa [#allocation3], 0
    %s28 = scalar_lea.sflag [#allocation3], 1
    %29 = vsyncpa %s28, 0
    %30 = vsyncpa [#allocation6], 0
    %s31 = scalar_lea.sflag [#allocation6], 1
    %32 = vsyncpa %s31, 0
    %33 = vsyncpa [#allocation9], 0
    %34 = vsyncpa [#allocation12], 0
    %35 = vsyncpa [#allocation15], 0
    %36 = vsyncpa [#allocation18], 0
    %37 = vsyncpa [#allocation21], 0
    %38 = vsyncpa [#allocation24], 0
    %39 = vsyncpa [#allocation27], 0
    %40 = vsyncpa [#allocation4], 0
    %s41 = scalar_lea.sflag [#allocation4], 1
    %42 = vsyncpa %s41, 0
    loop: start=0, step=1, limit=4
    $region2: #{tpu_custom_call.1} parent=1 // loop_pre_header
      _
    $region3: #{tpu_custom_call.1} parent=1 // loop_header
      %s44 = sphi 0, %s48
      %p45 = scmp.ge.s32.totalorder %s44, 4
      %s54 = sphi 0, %s56
      %s57 = sphi 0, %s54
      %s58 = sphi 0, %s57
      %s74 = sphi 0, %s58
      %s80 = sphi 0, %s82
      %s83 = sphi 0, %s80
      %s84 = sphi 0, %s83
      %s100 = sphi 0, %s84
      %s104 = sphi 0, %s104
      %s106 = sphi 0, %s104
      %s107 = sphi 0, %s106
      %s121 = sphi 0, %s107
      %s125 = sphi 0, %s125
      %s127 = sphi 0, %s125
      %s128 = sphi 0, %s127
      %s142 = sphi 0, %s128
      %s146 = sphi 0, %s146
      %s148 = sphi 0, %s146
      %s149 = sphi 0, %s148
      %s163 = sphi 0, %s149
      %s167 = sphi 0, %s167
      %s169 = sphi 0, %s167
      %s170 = sphi 0, %s169
      %s184 = sphi 0, %s170
      %s188 = sphi 0, %s188
      %s190 = sphi 0, %s188
      %s191 = sphi 0, %s190
      %s205 = sphi 0, %s191
      %s209 = sphi 0, %s209
      %s211 = sphi 0, %s209
      %s212 = sphi 0, %s211
      %s226 = sphi 0, %s212
      %s230 = sphi 0, %s230
      %s232 = sphi 0, %s230
      %s233 = sphi 0, %s232
      %s247 = sphi 0, %s233
      %s251 = sphi 0, %s251
      %s253 = sphi 0, %s251
      %s254 = sphi 0, %s253
      %s268 = sphi 0, %s254
      %s272 = sphi 0, %s272
      %s274 = sphi 0, %s272
      %s275 = sphi 0, %s274
      %s289 = sphi 0, %s275
      %s293 = sphi 0, %s293
      %s295 = sphi 0, %s293
      %s296 = sphi 0, %s295
      %s310 = sphi 0, %s296
      %s314 = sphi 0, %s314
      %s316 = sphi 0, %s314
      %s317 = sphi 0, %s316
      %s331 = sphi 0, %s317
      %s335 = sphi 0, %s335
      %s337 = sphi 0, %s335
      %s338 = sphi 0, %s337
      %s352 = sphi 0, %s338
      %s356 = sphi 0, %s356
      %s358 = sphi 0, %s356
      %s359 = sphi 0, %s358
      %s373 = sphi 0, %s359
      %s377 = sphi 0, %s377
      %s379 = sphi 0, %s377
      %s380 = sphi 0, %s379
      %s394 = sphi 0, %s380
      %s398 = sphi 0, %s398
      %s400 = sphi 0, %s398
      %s401 = sphi 0, %s400
      %s415 = sphi 0, %s401
      %s419 = sphi 0, %s419
      %s421 = sphi 0, %s419
      %s422 = sphi 0, %s421
      %s436 = sphi 0, %s422
      %s440 = sphi 0, %s440
      %s442 = sphi 0, %s440
      %s443 = sphi 0, %s442
      %s457 = sphi 0, %s443
      %s461 = sphi 0, %s461
      %s463 = sphi 0, %s461
      %s464 = sphi 0, %s463
      %s478 = sphi 0, %s464
      %s482 = sphi 0, %s482
      %s484 = sphi 0, %s482
      %s485 = sphi 0, %s484
      %s499 = sphi 0, %s485
      %s503 = sphi 0, %s503
      %s505 = sphi 0, %s503
      %s506 = sphi 0, %s505
      %s520 = sphi 0, %s506
      %s526 = sphi 0, %s528
      %s529 = sphi 0, %s526
      %s530 = sphi 0, %s529
      %s546 = sphi 0, %s530
    $region4: #{tpu_custom_call.1} parent=1 // loop_header_branch
      %47 = sbr.rel (%p45) target = $region8
    $region5: #{tpu_custom_call.1} parent=1 // loop_body
      %s49 = ssub.s32 %s44, 1
      %s50 = ssub.s32 %s44, 2
      %s51 = sadd.s32 %s44, 1
      %s52 = ssub.s32 %s44, %s51
      %p53 = scmp.eq.s32.totalorder %s52, 0
      %s55 = sadd.s32 %s54, 1
      %s56 = scalar_select %p53, %s54, %s55
      %p59 = pneg %p53
      %p60 = scmp.eq.s32.totalorder %s44, 1
      %p61 = por %p59, %p60
      %p62 = scmp.ne.s32.totalorder %s54, %s57
      %p63 = scmp.eq.s32.totalorder %s44, 0
      %p64 = por %p62, %p63
      %p65 = scmp.ne.s32.totalorder %s54, %s57
      %p66 = scmp.eq.s32.totalorder %s49, 1
      %p67 = por %p65, %p66
      %p68 = scmp.ne.s32.totalorder %s57, %s58
      %p69 = scmp.eq.s32.totalorder %s49, 0
      %p70 = por %p68, %p69
      %p71 = scmp.ne.s32.totalorder %s57, %s58
      %p72 = scmp.eq.s32.totalorder %s50, 1
      %p73 = por %p71, %p72
      %p75 = scmp.ne.s32.totalorder %s58, %s74
      %p76 = scmp.eq.s32.totalorder %s50, 0
      %p77 = por %p75, %p76
      %s78 = ssub.s32 %s44, %s51
      %p79 = scmp.eq.s32.totalorder %s78, 0
      %s81 = sadd.s32 %s80, 1
      %s82 = scalar_select %p79, %s80, %s81
      %p85 = pneg %p79
      %p86 = scmp.eq.s32.totalorder %s44, 1
      %p87 = por %p85, %p86
      %p88 = scmp.ne.s32.totalorder %s80, %s83
      %p89 = scmp.eq.s32.totalorder %s44, 0
      %p90 = por %p88, %p89
      %p91 = scmp.ne.s32.totalorder %s80, %s83
      %p92 = scmp.eq.s32.totalorder %s49, 1
      %p93 = por %p91, %p92
      %p94 = scmp.ne.s32.totalorder %s83, %s84
      %p95 = scmp.eq.s32.totalorder %s49, 0
      %p96 = por %p94, %p95
      %p97 = scmp.ne.s32.totalorder %s83, %s84
      %p98 = scmp.eq.s32.totalorder %s50, 1
      %p99 = por %p97, %p98
      %p101 = scmp.ne.s32.totalorder %s84, %s100
      %p102 = scmp.eq.s32.totalorder %s50, 0
      %p103 = por %p101, %p102
      %s105 = sadd.s32 %s104, 1
      %p108 = scmp.eq.s32.totalorder %s44, 1
      %p109 = scmp.ne.s32.totalorder %s104, %s106
      %p110 = scmp.eq.s32.totalorder %s44, 0
      %p111 = por %p109, %p110
      %p112 = scmp.ne.s32.totalorder %s104, %s106
      %p113 = scmp.eq.s32.totalorder %s49, 1
      %p114 = por %p112, %p113
      %p115 = scmp.ne.s32.totalorder %s106, %s107
      %p116 = scmp.eq.s32.totalorder %s49, 0
      %p117 = por %p115, %p116
      %p118 = scmp.ne.s32.totalorder %s106, %s107
      %p119 = scmp.eq.s32.totalorder %s50, 1
      %p120 = por %p118, %p119
      %p122 = scmp.ne.s32.totalorder %s107, %s121
      %p123 = scmp.eq.s32.totalorder %s50, 0
      %p124 = por %p122, %p123
      %s126 = sadd.s32 %s125, 1
      %p129 = scmp.eq.s32.totalorder %s44, 1
      %p130 = scmp.ne.s32.totalorder %s125, %s127
      %p131 = scmp.eq.s32.totalorder %s44, 0
      %p132 = por %p130, %p131
      %p133 = scmp.ne.s32.totalorder %s125, %s127
      %p134 = scmp.eq.s32.totalorder %s49, 1
      %p135 = por %p133, %p134
      %p136 = scmp.ne.s32.totalorder %s127, %s128
      %p137 = scmp.eq.s32.totalorder %s49, 0
      %p138 = por %p136, %p137
      %p139 = scmp.ne.s32.totalorder %s127, %s128
      %p140 = scmp.eq.s32.totalorder %s50, 1
      %p141 = por %p139, %p140
      %p143 = scmp.ne.s32.totalorder %s128, %s142
      %p144 = scmp.eq.s32.totalorder %s50, 0
      %p145 = por %p143, %p144
      %s147 = sadd.s32 %s146, 1
      %p150 = scmp.eq.s32.totalorder %s44, 1
      %p151 = scmp.ne.s32.totalorder %s146, %s148
      %p152 = scmp.eq.s32.totalorder %s44, 0
      %p153 = por %p151, %p152
      %p154 = scmp.ne.s32.totalorder %s146, %s148
      %p155 = scmp.eq.s32.totalorder %s49, 1
      %p156 = por %p154, %p155
      %p157 = scmp.ne.s32.totalorder %s148, %s149
      %p158 = scmp.eq.s32.totalorder %s49, 0
      %p159 = por %p157, %p158
      %p160 = scmp.ne.s32.totalorder %s148, %s149
      %p161 = scmp.eq.s32.totalorder %s50, 1
      %p162 = por %p160, %p161
      %p164 = scmp.ne.s32.totalorder %s149, %s163
      %p165 = scmp.eq.s32.totalorder %s50, 0
      %p166 = por %p164, %p165
      %s168 = sadd.s32 %s167, 1
      %p171 = scmp.eq.s32.totalorder %s44, 1
      %p172 = scmp.ne.s32.totalorder %s167, %s169
      %p173 = scmp.eq.s32.totalorder %s44, 0
      %p174 = por %p172, %p173
      %p175 = scmp.ne.s32.totalorder %s167, %s169
      %p176 = scmp.eq.s32.totalorder %s49, 1
      %p177 = por %p175, %p176
      %p178 = scmp.ne.s32.totalorder %s169, %s170
      %p179 = scmp.eq.s32.totalorder %s49, 0
      %p180 = por %p178, %p179
      %p181 = scmp.ne.s32.totalorder %s169, %s170
      %p182 = scmp.eq.s32.totalorder %s50, 1
      %p183 = por %p181, %p182
      %p185 = scmp.ne.s32.totalorder %s170, %s184
      %p186 = scmp.eq.s32.totalorder %s50, 0
      %p187 = por %p185, %p186
      %s189 = sadd.s32 %s188, 1
      %p192 = scmp.eq.s32.totalorder %s44, 1
      %p193 = scmp.ne.s32.totalorder %s188, %s190
      %p194 = scmp.eq.s32.totalorder %s44, 0
      %p195 = por %p193, %p194
      %p196 = scmp.ne.s32.totalorder %s188, %s190
      %p197 = scmp.eq.s32.totalorder %s49, 1
      %p198 = por %p196, %p197
      %p199 = scmp.ne.s32.totalorder %s190, %s191
      %p200 = scmp.eq.s32.totalorder %s49, 0
      %p201 = por %p199, %p200
      %p202 = scmp.ne.s32.totalorder %s190, %s191
      %p203 = scmp.eq.s32.totalorder %s50, 1
      %p204 = por %p202, %p203
      %p206 = scmp.ne.s32.totalorder %s191, %s205
      %p207 = scmp.eq.s32.totalorder %s50, 0
      %p208 = por %p206, %p207
      %s210 = sadd.s32 %s209, 1
      %p213 = scmp.eq.s32.totalorder %s44, 1
      %p214 = scmp.ne.s32.totalorder %s209, %s211
      %p215 = scmp.eq.s32.totalorder %s44, 0
      %p216 = por %p214, %p215
      %p217 = scmp.ne.s32.totalorder %s209, %s211
      %p218 = scmp.eq.s32.totalorder %s49, 1
      %p219 = por %p217, %p218
      %p220 = scmp.ne.s32.totalorder %s211, %s212
      %p221 = scmp.eq.s32.totalorder %s49, 0
      %p222 = por %p220, %p221
      %p223 = scmp.ne.s32.totalorder %s211, %s212
      %p224 = scmp.eq.s32.totalorder %s50, 1
      %p225 = por %p223, %p224
      %p227 = scmp.ne.s32.totalorder %s212, %s226
      %p228 = scmp.eq.s32.totalorder %s50, 0
      %p229 = por %p227, %p228
      %s231 = sadd.s32 %s230, 1
      %p234 = scmp.eq.s32.totalorder %s44, 1
      %p235 = scmp.ne.s32.totalorder %s230, %s232
      %p236 = scmp.eq.s32.totalorder %s44, 0
      %p237 = por %p235, %p236
      %p238 = scmp.ne.s32.totalorder %s230, %s232
      %p239 = scmp.eq.s32.totalorder %s49, 1
      %p240 = por %p238, %p239
      %p241 = scmp.ne.s32.totalorder %s232, %s233
      %p242 = scmp.eq.s32.totalorder %s49, 0
      %p243 = por %p241, %p242
      %p244 = scmp.ne.s32.totalorder %s232, %s233
      %p245 = scmp.eq.s32.totalorder %s50, 1
      %p246 = por %p244, %p245
      %p248 = scmp.ne.s32.totalorder %s233, %s247
      %p249 = scmp.eq.s32.totalorder %s50, 0
      %p250 = por %p248, %p249
      %s252 = sadd.s32 %s251, 1
      %p255 = scmp.eq.s32.totalorder %s44, 1
      %p256 = scmp.ne.s32.totalorder %s251, %s253
      %p257 = scmp.eq.s32.totalorder %s44, 0
      %p258 = por %p256, %p257
      %p259 = scmp.ne.s32.totalorder %s251, %s253
      %p260 = scmp.eq.s32.totalorder %s49, 1
      %p261 = por %p259, %p260
      %p262 = scmp.ne.s32.totalorder %s253, %s254
      %p263 = scmp.eq.s32.totalorder %s49, 0
      %p264 = por %p262, %p263
      %p265 = scmp.ne.s32.totalorder %s253, %s254
      %p266 = scmp.eq.s32.totalorder %s50, 1
      %p267 = por %p265, %p266
      %p269 = scmp.ne.s32.totalorder %s254, %s268
      %p270 = scmp.eq.s32.totalorder %s50, 0
      %p271 = por %p269, %p270
      %s273 = sadd.s32 %s272, 1
      %p276 = scmp.eq.s32.totalorder %s44, 1
      %p277 = scmp.ne.s32.totalorder %s272, %s274
      %p278 = scmp.eq.s32.totalorder %s44, 0
      %p279 = por %p277, %p278
      %p280 = scmp.ne.s32.totalorder %s272, %s274
      %p281 = scmp.eq.s32.totalorder %s49, 1
      %p282 = por %p280, %p281
      %p283 = scmp.ne.s32.totalorder %s274, %s275
      %p284 = scmp.eq.s32.totalorder %s49, 0
      %p285 = por %p283, %p284
      %p286 = scmp.ne.s32.totalorder %s274, %s275
      %p287 = scmp.eq.s32.totalorder %s50, 1
      %p288 = por %p286, %p287
      %p290 = scmp.ne.s32.totalorder %s275, %s289
      %p291 = scmp.eq.s32.totalorder %s50, 0
      %p292 = por %p290, %p291
      %s294 = sadd.s32 %s293, 1
      %p297 = scmp.eq.s32.totalorder %s44, 1
      %p298 = scmp.ne.s32.totalorder %s293, %s295
      %p299 = scmp.eq.s32.totalorder %s44, 0
      %p300 = por %p298, %p299
      %p301 = scmp.ne.s32.totalorder %s293, %s295
      %p302 = scmp.eq.s32.totalorder %s49, 1
      %p303 = por %p301, %p302
      %p304 = scmp.ne.s32.totalorder %s295, %s296
      %p305 = scmp.eq.s32.totalorder %s49, 0
      %p306 = por %p304, %p305
      %p307 = scmp.ne.s32.totalorder %s295, %s296
      %p308 = scmp.eq.s32.totalorder %s50, 1
      %p309 = por %p307, %p308
      %p311 = scmp.ne.s32.totalorder %s296, %s310
      %p312 = scmp.eq.s32.totalorder %s50, 0
      %p313 = por %p311, %p312
      %s315 = sadd.s32 %s314, 1
      %p318 = scmp.eq.s32.totalorder %s44, 1
      %p319 = scmp.ne.s32.totalorder %s314, %s316
      %p320 = scmp.eq.s32.totalorder %s44, 0
      %p321 = por %p319, %p320
      %p322 = scmp.ne.s32.totalorder %s314, %s316
      %p323 = scmp.eq.s32.totalorder %s49, 1
      %p324 = por %p322, %p323
      %p325 = scmp.ne.s32.totalorder %s316, %s317
      %p326 = scmp.eq.s32.totalorder %s49, 0
      %p327 = por %p325, %p326
      %p328 = scmp.ne.s32.totalorder %s316, %s317
      %p329 = scmp.eq.s32.totalorder %s50, 1
      %p330 = por %p328, %p329
      %p332 = scmp.ne.s32.totalorder %s317, %s331
      %p333 = scmp.eq.s32.totalorder %s50, 0
      %p334 = por %p332, %p333
      %s336 = sadd.s32 %s335, 1
      %p339 = scmp.eq.s32.totalorder %s44, 1
      %p340 = scmp.ne.s32.totalorder %s335, %s337
      %p341 = scmp.eq.s32.totalorder %s44, 0
      %p342 = por %p340, %p341
      %p343 = scmp.ne.s32.totalorder %s335, %s337
      %p344 = scmp.eq.s32.totalorder %s49, 1
      %p345 = por %p343, %p344
      %p346 = scmp.ne.s32.totalorder %s337, %s338
      %p347 = scmp.eq.s32.totalorder %s49, 0
      %p348 = por %p346, %p347
      %p349 = scmp.ne.s32.totalorder %s337, %s338
      %p350 = scmp.eq.s32.totalorder %s50, 1
      %p351 = por %p349, %p350
      %p353 = scmp.ne.s32.totalorder %s338, %s352
      %p354 = scmp.eq.s32.totalorder %s50, 0
      %p355 = por %p353, %p354
      %s357 = sadd.s32 %s356, 1
      %p360 = scmp.eq.s32.totalorder %s44, 1
      %p361 = scmp.ne.s32.totalorder %s356, %s358
      %p362 = scmp.eq.s32.totalorder %s44, 0
      %p363 = por %p361, %p362
      %p364 = scmp.ne.s32.totalorder %s356, %s358
      %p365 = scmp.eq.s32.totalorder %s49, 1
      %p366 = por %p364, %p365
      %p367 = scmp.ne.s32.totalorder %s358, %s359
      %p368 = scmp.eq.s32.totalorder %s49, 0
      %p369 = por %p367, %p368
      %p370 = scmp.ne.s32.totalorder %s358, %s359
      %p371 = scmp.eq.s32.totalorder %s50, 1
      %p372 = por %p370, %p371
      %p374 = scmp.ne.s32.totalorder %s359, %s373
      %p375 = scmp.eq.s32.totalorder %s50, 0
      %p376 = por %p374, %p375
      %s378 = sadd.s32 %s377, 1
      %p381 = scmp.eq.s32.totalorder %s44, 1
      %p382 = scmp.ne.s32.totalorder %s377, %s379
      %p383 = scmp.eq.s32.totalorder %s44, 0
      %p384 = por %p382, %p383
      %p385 = scmp.ne.s32.totalorder %s377, %s379
      %p386 = scmp.eq.s32.totalorder %s49, 1
      %p387 = por %p385, %p386
      %p388 = scmp.ne.s32.totalorder %s379, %s380
      %p389 = scmp.eq.s32.totalorder %s49, 0
      %p390 = por %p388, %p389
      %p391 = scmp.ne.s32.totalorder %s379, %s380
      %p392 = scmp.eq.s32.totalorder %s50, 1
      %p393 = por %p391, %p392
      %p395 = scmp.ne.s32.totalorder %s380, %s394
      %p396 = scmp.eq.s32.totalorder %s50, 0
      %p397 = por %p395, %p396
      %s399 = sadd.s32 %s398, 1
      %p402 = scmp.eq.s32.totalorder %s44, 1
      %p403 = scmp.ne.s32.totalorder %s398, %s400
      %p404 = scmp.eq.s32.totalorder %s44, 0
      %p405 = por %p403, %p404
      %p406 = scmp.ne.s32.totalorder %s398, %s400
      %p407 = scmp.eq.s32.totalorder %s49, 1
      %p408 = por %p406, %p407
      %p409 = scmp.ne.s32.totalorder %s400, %s401
      %p410 = scmp.eq.s32.totalorder %s49, 0
      %p411 = por %p409, %p410
      %p412 = scmp.ne.s32.totalorder %s400, %s401
      %p413 = scmp.eq.s32.totalorder %s50, 1
      %p414 = por %p412, %p413
      %p416 = scmp.ne.s32.totalorder %s401, %s415
      %p417 = scmp.eq.s32.totalorder %s50, 0
      %p418 = por %p416, %p417
      %s420 = sadd.s32 %s419, 1
      %p423 = scmp.eq.s32.totalorder %s44, 1
      %p424 = scmp.ne.s32.totalorder %s419, %s421
      %p425 = scmp.eq.s32.totalorder %s44, 0
      %p426 = por %p424, %p425
      %p427 = scmp.ne.s32.totalorder %s419, %s421
      %p428 = scmp.eq.s32.totalorder %s49, 1
      %p429 = por %p427, %p428
      %p430 = scmp.ne.s32.totalorder %s421, %s422
      %p431 = scmp.eq.s32.totalorder %s49, 0
      %p432 = por %p430, %p431
      %p433 = scmp.ne.s32.totalorder %s421, %s422
      %p434 = scmp.eq.s32.totalorder %s50, 1
      %p435 = por %p433, %p434
      %p437 = scmp.ne.s32.totalorder %s422, %s436
      %p438 = scmp.eq.s32.totalorder %s50, 0
      %p439 = por %p437, %p438
      %s441 = sadd.s32 %s440, 1
      %p444 = scmp.eq.s32.totalorder %s44, 1
      %p445 = scmp.ne.s32.totalorder %s440, %s442
      %p446 = scmp.eq.s32.totalorder %s44, 0
      %p447 = por %p445, %p446
      %p448 = scmp.ne.s32.totalorder %s440, %s442
      %p449 = scmp.eq.s32.totalorder %s49, 1
      %p450 = por %p448, %p449
      %p451 = scmp.ne.s32.totalorder %s442, %s443
      %p452 = scmp.eq.s32.totalorder %s49, 0
      %p453 = por %p451, %p452
      %p454 = scmp.ne.s32.totalorder %s442, %s443
      %p455 = scmp.eq.s32.totalorder %s50, 1
      %p456 = por %p454, %p455
      %p458 = scmp.ne.s32.totalorder %s443, %s457
      %p459 = scmp.eq.s32.totalorder %s50, 0
      %p460 = por %p458, %p459
      %s462 = sadd.s32 %s461, 1
      %p465 = scmp.eq.s32.totalorder %s44, 1
      %p466 = scmp.ne.s32.totalorder %s461, %s463
      %p467 = scmp.eq.s32.totalorder %s44, 0
      %p468 = por %p466, %p467
      %p469 = scmp.ne.s32.totalorder %s461, %s463
      %p470 = scmp.eq.s32.totalorder %s49, 1
      %p471 = por %p469, %p470
      %p472 = scmp.ne.s32.totalorder %s463, %s464
      %p473 = scmp.eq.s32.totalorder %s49, 0
      %p474 = por %p472, %p473
      %p475 = scmp.ne.s32.totalorder %s463, %s464
      %p476 = scmp.eq.s32.totalorder %s50, 1
      %p477 = por %p475, %p476
      %p479 = scmp.ne.s32.totalorder %s464, %s478
      %p480 = scmp.eq.s32.totalorder %s50, 0
      %p481 = por %p479, %p480
      %s483 = sadd.s32 %s482, 1
      %p486 = scmp.eq.s32.totalorder %s44, 1
      %p487 = scmp.ne.s32.totalorder %s482, %s484
      %p488 = scmp.eq.s32.totalorder %s44, 0
      %p489 = por %p487, %p488
      %p490 = scmp.ne.s32.totalorder %s482, %s484
      %p491 = scmp.eq.s32.totalorder %s49, 1
      %p492 = por %p490, %p491
      %p493 = scmp.ne.s32.totalorder %s484, %s485
      %p494 = scmp.eq.s32.totalorder %s49, 0
      %p495 = por %p493, %p494
      %p496 = scmp.ne.s32.totalorder %s484, %s485
      %p497 = scmp.eq.s32.totalorder %s50, 1
      %p498 = por %p496, %p497
      %p500 = scmp.ne.s32.totalorder %s485, %s499
      %p501 = scmp.eq.s32.totalorder %s50, 0
      %p502 = por %p500, %p501
      %s504 = sadd.s32 %s503, 1
      %p507 = scmp.eq.s32.totalorder %s44, 1
      %p508 = scmp.ne.s32.totalorder %s503, %s505
      %p509 = scmp.eq.s32.totalorder %s44, 0
      %p510 = por %p508, %p509
      %p511 = scmp.ne.s32.totalorder %s503, %s505
      %p512 = scmp.eq.s32.totalorder %s49, 1
      %p513 = por %p511, %p512
      %p514 = scmp.ne.s32.totalorder %s505, %s506
      %p515 = scmp.eq.s32.totalorder %s49, 0
      %p516 = por %p514, %p515
      %p517 = scmp.ne.s32.totalorder %s505, %s506
      %p518 = scmp.eq.s32.totalorder %s50, 1
      %p519 = por %p517, %p518
      %p521 = scmp.ne.s32.totalorder %s506, %s520
      %p522 = scmp.eq.s32.totalorder %s50, 0
      %p523 = por %p521, %p522
      %s524 = ssub.s32 %s44, %s51
      %p525 = scmp.eq.s32.totalorder %s524, 0
      %s527 = sadd.s32 %s526, 1
      %s528 = scalar_select %p525, %s526, %s527
      %p531 = pneg %p525
      %p532 = scmp.eq.s32.totalorder %s44, 1
      %p533 = por %p531, %p532
      %p534 = scmp.ne.s32.totalorder %s526, %s529
      %p535 = scmp.eq.s32.totalorder %s44, 0
      %p536 = por %p534, %p535
      %p537 = scmp.ne.s32.totalorder %s526, %s529
      %p538 = scmp.eq.s32.totalorder %s49, 1
      %p539 = por %p537, %p538
      %p540 = scmp.ne.s32.totalorder %s529, %s530
      %p541 = scmp.eq.s32.totalorder %s49, 0
      %p542 = por %p540, %p541
      %p543 = scmp.ne.s32.totalorder %s529, %s530
      %p544 = scmp.eq.s32.totalorder %s50, 1
      %p545 = por %p543, %p544
      %p547 = scmp.ne.s32.totalorder %s530, %s546
      %p548 = scmp.eq.s32.totalorder %s50, 0
      %p549 = por %p547, %p548
      %p550 = scmp.le.s32.totalorder 1, %s44
      %p551 = scmp.lt.s32.totalorder %s44, 3
      %p552 = pnand %p550, %p551
      %p553 = pneg %p552
      // Predicated region
      $region9: #{tpu_custom_call.1} parent=5 // pred_check
        _
      $region10: #{tpu_custom_call.1} parent=5 // pred_check_branch
        %555 = sbr.rel (%p552) target = $region12
      $region11: #{tpu_custom_call.1} parent=5 // pred_region
        %s556 = ssub.s32 %s44, 1
        // Predicated region
        $region13: #{tpu_custom_call.1} parent=11 // pred_check
          %p557 = pneg %p117
        $region14: #{tpu_custom_call.1} parent=11 // pred_check_branch
          %559 = sbr.rel (%p557) target = $region16
        $region15: #{tpu_custom_call.1} parent=11 // pred_region
          _
        $region16: #{tpu_custom_call.1} parent=11 // pred_fallthru
          _
        // Predicated region
        $region17: #{tpu_custom_call.1} parent=11 // pred_check
          %p560 = pneg %p138
        $region18: #{tpu_custom_call.1} parent=11 // pred_check_branch
          %562 = sbr.rel (%p560) target = $region20
        $region19: #{tpu_custom_call.1} parent=11 // pred_region
          _
        $region20: #{tpu_custom_call.1} parent=11 // pred_fallthru
          _
        // Predicated region
        $region21: #{tpu_custom_call.1} parent=11 // pred_check
          %p563 = pneg %p159
        $region22: #{tpu_custom_call.1} parent=11 // pred_check_branch
          %565 = sbr.rel (%p563) target = $region24
        $region23: #{tpu_custom_call.1} parent=11 // pred_region
          _
        $region24: #{tpu_custom_call.1} parent=11 // pred_fallthru
          _
        // Predicated region
        $region25: #{tpu_custom_call.1} parent=11 // pred_check
          %p566 = pneg %p180
        $region26: #{tpu_custom_call.1} parent=11 // pred_check_branch
          %568 = sbr.rel (%p566) target = $region28
        $region27: #{tpu_custom_call.1} parent=11 // pred_region
          %s570 = ssub.s32 32, 32
          %571 = vsyncadd [#allocation6], %s570
          %s572 = sshll.u32 [#allocation7], 4
          %s573 = int_to_ptr.vmem [resolvable:$true] %s572
          %578 = dma.hbm_to_vmem [thread:$0]  %s5, 32, %s573, [#allocation6], 16, 16, 1
        $region28: #{tpu_custom_call.1} parent=11 // pred_fallthru
          _
        // Predicated region
        $region29: #{tpu_custom_call.1} parent=11 // pred_check
          %p579 = pneg %p201
        $region30: #{tpu_custom_call.1} parent=11 // pred_check_branch
          %581 = sbr.rel (%p579) target = $region32
        $region31: #{tpu_custom_call.1} parent=11 // pred_region
          %s583 = ssub.s32 32, 32
          %584 = vsyncadd [#allocation9], %s583
          %s585 = sshll.u32 [#allocation8], 4
          %s586 = int_to_ptr.vmem [resolvable:$true] %s585
          %591 = dma.hbm_to_vmem [thread:$0]  %s6, 32, %s586, [#allocation9], 16, 16, 1
        $region32: #{tpu_custom_call.1} parent=11 // pred_fallthru
          _
        // Predicated region
        $region33: #{tpu_custom_call.1} parent=11 // pred_check
          %p592 = pneg %p222
        $region34: #{tpu_custom_call.1} parent=11 // pred_check_branch
          %594 = sbr.rel (%p592) target = $region36
        $region35: #{tpu_custom_call.1} parent=11 // pred_region
          %s596 = ssub.s32 32, 32
          %597 = vsyncadd [#allocation9], %s596
          %s598 = sshll.u32 [#allocation10], 4
          %s599 = int_to_ptr.vmem [resolvable:$true] %s598
          %604 = dma.hbm_to_vmem [thread:$0]  %s7, 32, %s599, [#allocation9], 16, 16, 1
        $region36: #{tpu_custom_call.1} parent=11 // pred_fallthru
          _
        // Predicated region
        $region37: #{tpu_custom_call.1} parent=11 // pred_check
          %p605 = pneg %p243
        $region38: #{tpu_custom_call.1} parent=11 // pred_check_branch
          %607 = sbr.rel (%p605) target = $region40
        $region39: #{tpu_custom_call.1} parent=11 // pred_region
          %s609 = ssub.s32 1024, 1024
          %610 = vsyncadd [#allocation12], %s609
          %s611 = sshll.u32 [#allocation11], 4
          %s612 = int_to_ptr.vmem [resolvable:$true] %s611
          %617 = dma.hbm_to_vmem [thread:$0]  %s8, 1024, %s612, [#allocation12], 128, 128, 8
        $region40: #{tpu_custom_call.1} parent=11 // pred_fallthru
          _
        // Predicated region
        $region41: #{tpu_custom_call.1} parent=11 // pred_check
          %p618 = pneg %p264
        $region42: #{tpu_custom_call.1} parent=11 // pred_check_branch
          %620 = sbr.rel (%p618) target = $region44
        $region43: #{tpu_custom_call.1} parent=11 // pred_region
          %s622 = ssub.s32 32, 32
          %623 = vsyncadd [#allocation12], %s622
          %s624 = sshll.u32 [#allocation13], 4
          %s625 = int_to_ptr.vmem [resolvable:$true] %s624
          %630 = dma.hbm_to_vmem [thread:$0]  %s9, 32, %s625, [#allocation12], 16, 16, 1
        $region44: #{tpu_custom_call.1} parent=11 // pred_fallthru
          _
        // Predicated region
        $region45: #{tpu_custom_call.1} parent=11 // pred_check
          %p631 = pneg %p285
        $region46: #{tpu_custom_call.1} parent=11 // pred_check_branch
          %633 = sbr.rel (%p631) target = $region48
        $region47: #{tpu_custom_call.1} parent=11 // pred_region
          %s635 = ssub.s32 32, 32
          %636 = vsyncadd [#allocation15], %s635
          %s637 = sshll.u32 [#allocation14], 4
          %s638 = int_to_ptr.vmem [resolvable:$true] %s637
          %643 = dma.hbm_to_vmem [thread:$0]  %s10, 32, %s638, [#allocation15], 16, 16, 1
        $region48: #{tpu_custom_call.1} parent=11 // pred_fallthru
          _
        // Predicated region
        $region49: #{tpu_custom_call.1} parent=11 // pred_check
          %p644 = pneg %p306
        $region50: #{tpu_custom_call.1} parent=11 // pred_check_branch
          %646 = sbr.rel (%p644) target = $region52
        $region51: #{tpu_custom_call.1} parent=11 // pred_region
          %s648 = ssub.s32 32, 32
          %649 = vsyncadd [#allocation15], %s648
          %s650 = sshll.u32 [#allocation16], 4
          %s651 = int_to_ptr.vmem [resolvable:$true] %s650
          %656 = dma.hbm_to_vmem [thread:$0]  %s11, 32, %s651, [#allocation15], 16, 16, 1
        $region52: #{tpu_custom_call.1} parent=11 // pred_fallthru
          _
        // Predicated region
        $region53: #{tpu_custom_call.1} parent=11 // pred_check
          %p657 = pneg %p327
        $region54: #{tpu_custom_call.1} parent=11 // pred_check_branch
          %659 = sbr.rel (%p657) target = $region56
        $region55: #{tpu_custom_call.1} parent=11 // pred_region
          %s661 = ssub.s32 1024, 1024
          %662 = vsyncadd [#allocation18], %s661
          %s663 = sshll.u32 [#allocation17], 4
          %s664 = int_to_ptr.vmem [resolvable:$true] %s663
          %669 = dma.hbm_to_vmem [thread:$0]  %s12, 1024, %s664, [#allocation18], 128, 128, 8
        $region56: #{tpu_custom_call.1} parent=11 // pred_fallthru
          _
        // Predicated region
        $region57: #{tpu_custom_call.1} parent=11 // pred_check
          %p670 = pneg %p348
        $region58: #{tpu_custom_call.1} parent=11 // pred_check_branch
          %672 = sbr.rel (%p670) target = $region60
        $region59: #{tpu_custom_call.1} parent=11 // pred_region
          %s674 = ssub.s32 32, 32
          %675 = vsyncadd [#allocation18], %s674
          %s676 = sshll.u32 [#allocation19], 4
          %s677 = int_to_ptr.vmem [resolvable:$true] %s676
          %682 = dma.hbm_to_vmem [thread:$0]  %s13, 32, %s677, [#allocation18], 16, 16, 1
        $region60: #{tpu_custom_call.1} parent=11 // pred_fallthru
          _
        // Predicated region
        $region61: #{tpu_custom_call.1} parent=11 // pred_check
          %p683 = pneg %p369
        $region62: #{tpu_custom_call.1} parent=11 // pred_check_branch
          %685 = sbr.rel (%p683) target = $region64
        $region63: #{tpu_custom_call.1} parent=11 // pred_region
          _
        $region64: #{tpu_custom_call.1} parent=11 // pred_fallthru
          _
        // Predicated region
        $region65: #{tpu_custom_call.1} parent=11 // pred_check
          %p686 = pneg %p390
        $region66: #{tpu_custom_call.1} parent=11 // pred_check_branch
          %688 = sbr.rel (%p686) target = $region68
        $region67: #{tpu_custom_call.1} parent=11 // pred_region
          %s690 = ssub.s32 32, 32
          %691 = vsyncadd [#allocation21], %s690
          %s692 = sshll.u32 [#allocation20], 4
          %s693 = int_to_ptr.vmem [resolvable:$true] %s692
          %698 = dma.hbm_to_vmem [thread:$0]  %s15, 32, %s693, [#allocation21], 16, 16, 1
        $region68: #{tpu_custom_call.1} parent=11 // pred_fallthru
          _
        // Predicated region
        $region69: #{tpu_custom_call.1} parent=11 // pred_check
          %p699 = pneg %p411
        $region70: #{tpu_custom_call.1} parent=11 // pred_check_branch
          %701 = sbr.rel (%p699) target = $region72
        $region71: #{tpu_custom_call.1} parent=11 // pred_region
          %s703 = ssub.s32 32, 32
          %704 = vsyncadd [#allocation21], %s703
          %s705 = sshll.u32 [#allocation22], 4
          %s706 = int_to_ptr.vmem [resolvable:$true] %s705
          %711 = dma.hbm_to_vmem [thread:$0]  %s16, 32, %s706, [#allocation21], 16, 16, 1
        $region72: #{tpu_custom_call.1} parent=11 // pred_fallthru
          _
        // Predicated region
        $region73: #{tpu_custom_call.1} parent=11 // pred_check
          %p712 = pneg %p432
        $region74: #{tpu_custom_call.1} parent=11 // pred_check_branch
          %714 = sbr.rel (%p712) target = $region76
        $region75: #{tpu_custom_call.1} parent=11 // pred_region
          %s716 = ssub.s32 32, 32
          %717 = vsyncadd [#allocation24], %s716
          %s718 = sshll.u32 [#allocation23], 4
          %s719 = int_to_ptr.vmem [resolvable:$true] %s718
          %724 = dma.hbm_to_vmem [thread:$0]  %s17, 32, %s719, [#allocation24], 16, 16, 1
        $region76: #{tpu_custom_call.1} parent=11 // pred_fallthru
          _
        // Predicated region
        $region77: #{tpu_custom_call.1} parent=11 // pred_check
          %p725 = pneg %p453
        $region78: #{tpu_custom_call.1} parent=11 // pred_check_branch
          %727 = sbr.rel (%p725) target = $region80
        $region79: #{tpu_custom_call.1} parent=11 // pred_region
          _
        $region80: #{tpu_custom_call.1} parent=11 // pred_fallthru
          _
        // Predicated region
        $region81: #{tpu_custom_call.1} parent=11 // pred_check
          %p728 = pneg %p474
        $region82: #{tpu_custom_call.1} parent=11 // pred_check_branch
          %730 = sbr.rel (%p728) target = $region84
        $region83: #{tpu_custom_call.1} parent=11 // pred_region
          %s732 = ssub.s32 16, 16
          %733 = vsyncadd [#allocation24], %s732
          %s735 = sshll.u32 [#allocation25], 4
          %s736 = int_to_ptr.vmem [resolvable:$true] %s735
          %738 = dma.hbm_to_vmem [thread:$0]  %s19, 16, %s736, [#allocation24]
        $region84: #{tpu_custom_call.1} parent=11 // pred_fallthru
          _
        // Predicated region
        $region85: #{tpu_custom_call.1} parent=11 // pred_check
          %p739 = pneg %p495
        $region86: #{tpu_custom_call.1} parent=11 // pred_check_branch
          %741 = sbr.rel (%p739) target = $region88
        $region87: #{tpu_custom_call.1} parent=11 // pred_region
          %s743 = ssub.s32 512, 512
          %744 = vsyncadd [#allocation27], %s743
          %s745 = sshll.u32 [#allocation26], 4
          %s746 = int_to_ptr.vmem [resolvable:$true] %s745
          %751 = dma.hbm_to_vmem [thread:$0]  %s20, 512, %s746, [#allocation27], 128, 128, 8
        $region88: #{tpu_custom_call.1} parent=11 // pred_fallthru
          _
        // Predicated region
        $region89: #{tpu_custom_call.1} parent=11 // pred_check
          %p752 = pneg %p516
        $region90: #{tpu_custom_call.1} parent=11 // pred_check_branch
          %754 = sbr.rel (%p752) target = $region92
        $region91: #{tpu_custom_call.1} parent=11 // pred_region
          _
        $region92: #{tpu_custom_call.1} parent=11 // pred_fallthru
          _
      $region12: #{tpu_custom_call.1} parent=5 // pred_fallthru
        _
      %p755 = scmp.lt.s32.totalorder %s44, 2
      // Predicated region
      $region93: #{tpu_custom_call.1} parent=5 // pred_check
        %p756 = pneg %p755
      $region94: #{tpu_custom_call.1} parent=5 // pred_check_branch
        %758 = sbr.rel (%p756) target = $region96
      $region95: #{tpu_custom_call.1} parent=5 // pred_region
        // Predicated region
        $region97: #{tpu_custom_call.1} parent=95 // pred_check
          %p759 = pneg %p64
        $region98: #{tpu_custom_call.1} parent=95 // pred_check_branch
          %761 = sbr.rel (%p759) target = $region100
        $region99: #{tpu_custom_call.1} parent=95 // pred_region
          %s762 = sand.u32 %s54, 1
          %s763 = scalar_lea.sflag [#allocation3], %s762
          %s764 = sand.u32 %s54, 1
          %s765 = smul.addr %s764, 8
          %s766 = scalar_lea.vmem [#allocation2], %s765
          %s768 = ssub.s32 128, 128
          %769 = vsyncadd %s763, %s768
          %s770 = smul.addr %s44, 128
          %s771 = scalar_lea.hbm %s0, %s770
          %s773 = sshll.u32 %s766, 4
          %s774 = int_to_ptr.vmem [resolvable:$true] %s773
          %776 = dma.hbm_to_vmem [thread:$0]  %s771, 128, %s774, %s763
        $region100: #{tpu_custom_call.1} parent=95 // pred_fallthru
          _
        // Predicated region
        $region101: #{tpu_custom_call.1} parent=95 // pred_check
          %p777 = pneg %p90
        $region102: #{tpu_custom_call.1} parent=95 // pred_check_branch
          %779 = sbr.rel (%p777) target = $region104
        $region103: #{tpu_custom_call.1} parent=95 // pred_region
          %s780 = sand.u32 %s44, 1
          %s781 = scalar_lea.sflag [#allocation6], %s780
          %s782 = sand.u32 %s80, 1
          %s783 = smul.addr %s782, 16
          %s784 = scalar_lea.vmem [#allocation5], %s783
          %s786 = ssub.s32 256, 256
          %787 = vsyncadd %s781, %s786
          %s788 = smul.addr %s44, 2
          %s789 = smul.addr %s788, 128
          %s790 = scalar_lea.hbm %s1, %s789
          %s791 = sshll.u32 %s784, 4
          %s792 = int_to_ptr.vmem [resolvable:$true] %s791
          %797 = dma.hbm_to_vmem [thread:$0]  %s790, 256, %s792, %s781, 128, 128, 8
        $region104: #{tpu_custom_call.1} parent=95 // pred_fallthru
          _
      $region96: #{tpu_custom_call.1} parent=5 // pred_fallthru
        _
      %p798 = scmp.le.s32.totalorder 1, %s44
      %p799 = scmp.lt.s32.totalorder %s44, 3
      %p800 = pnand %p798, %p799
      %p801 = pneg %p800
      // Predicated region
      $region105: #{tpu_custom_call.1} parent=5 // pred_check
        _
      $region106: #{tpu_custom_call.1} parent=5 // pred_check_branch
        %803 = sbr.rel (%p800) target = $region108
      $region107: #{tpu_custom_call.1} parent=5 // pred_region
        %s804 = ssub.s32 %s44, 1
        %s805 = sand.u32 %s57, 1
        %s806 = scalar_lea.sflag [#allocation3], %s805
        %s807 = sand.u32 %s57, 1
        %s808 = smul.addr %s807, 8
        %s809 = scalar_lea.vmem [#allocation2], %s808
        // Predicated region
        $region109: #{tpu_custom_call.1} parent=107 // pred_check
          %p810 = pneg %p70
        $region110: #{tpu_custom_call.1} parent=107 // pred_check_branch
          %812 = sbr.rel (%p810) target = $region112
        $region111: #{tpu_custom_call.1} parent=107 // pred_region
          %813 = dma.done %s806, 128
        $region112: #{tpu_custom_call.1} parent=107 // pred_fallthru
          _
        %s814 = sand.u32 %s49, 1
        %s815 = scalar_lea.sflag [#allocation6], %s814
        %s816 = sand.u32 %s83, 1
        %s817 = smul.addr %s816, 16
        %s818 = scalar_lea.vmem [#allocation5], %s817
        // Predicated region
        $region113: #{tpu_custom_call.1} parent=107 // pred_check
          %p819 = pneg %p96
        $region114: #{tpu_custom_call.1} parent=107 // pred_check_branch
          %821 = sbr.rel (%p819) target = $region116
        $region115: #{tpu_custom_call.1} parent=107 // pred_region
          %822 = dma.done %s815, 256
        $region116: #{tpu_custom_call.1} parent=107 // pred_fallthru
          _
        // Predicated region
        $region117: #{tpu_custom_call.1} parent=107 // pred_check
          %p823 = pneg %p180
        $region118: #{tpu_custom_call.1} parent=107 // pred_check_branch
          %825 = sbr.rel (%p823) target = $region120
        $region119: #{tpu_custom_call.1} parent=107 // pred_region
          %826 = dma.done [#allocation6], 32
        $region120: #{tpu_custom_call.1} parent=107 // pred_fallthru
          _
        // Predicated region
        $region121: #{tpu_custom_call.1} parent=107 // pred_check
          %p827 = pneg %p201
        $region122: #{tpu_custom_call.1} parent=107 // pred_check_branch
          %829 = sbr.rel (%p827) target = $region124
        $region123: #{tpu_custom_call.1} parent=107 // pred_region
          %830 = dma.done [#allocation9], 32
        $region124: #{tpu_custom_call.1} parent=107 // pred_fallthru
          _
        // Predicated region
        $region125: #{tpu_custom_call.1} parent=107 // pred_check
          %p831 = pneg %p222
        $region126: #{tpu_custom_call.1} parent=107 // pred_check_branch
          %833 = sbr.rel (%p831) target = $region128
        $region127: #{tpu_custom_call.1} parent=107 // pred_region
          %834 = dma.done [#allocation9], 32
        $region128: #{tpu_custom_call.1} parent=107 // pred_fallthru
          _
        // Predicated region
        $region129: #{tpu_custom_call.1} parent=107 // pred_check
          %p835 = pneg %p243
        $region130: #{tpu_custom_call.1} parent=107 // pred_check_branch
          %837 = sbr.rel (%p835) target = $region132
        $region131: #{tpu_custom_call.1} parent=107 // pred_region
          %838 = dma.done [#allocation12], 1024
        $region132: #{tpu_custom_call.1} parent=107 // pred_fallthru
          _
        // Predicated region
        $region133: #{tpu_custom_call.1} parent=107 // pred_check
          %p839 = pneg %p264
        $region134: #{tpu_custom_call.1} parent=107 // pred_check_branch
          %841 = sbr.rel (%p839) target = $region136
        $region135: #{tpu_custom_call.1} parent=107 // pred_region
          %842 = dma.done [#allocation12], 32
        $region136: #{tpu_custom_call.1} parent=107 // pred_fallthru
          _
        // Predicated region
        $region137: #{tpu_custom_call.1} parent=107 // pred_check
          %p843 = pneg %p285
        $region138: #{tpu_custom_call.1} parent=107 // pred_check_branch
          %845 = sbr.rel (%p843) target = $region140
        $region139: #{tpu_custom_call.1} parent=107 // pred_region
          %846 = dma.done [#allocation15], 32
        $region140: #{tpu_custom_call.1} parent=107 // pred_fallthru
          _
        // Predicated region
        $region141: #{tpu_custom_call.1} parent=107 // pred_check
          %p847 = pneg %p306
        $region142: #{tpu_custom_call.1} parent=107 // pred_check_branch
          %849 = sbr.rel (%p847) target = $region144
        $region143: #{tpu_custom_call.1} parent=107 // pred_region
          %850 = dma.done [#allocation15], 32
        $region144: #{tpu_custom_call.1} parent=107 // pred_fallthru
          _
        // Predicated region
        $region145: #{tpu_custom_call.1} parent=107 // pred_check
          %p851 = pneg %p327
        $region146: #{tpu_custom_call.1} parent=107 // pred_check_branch
          %853 = sbr.rel (%p851) target = $region148
        $region147: #{tpu_custom_call.1} parent=107 // pred_region
          %854 = dma.done [#allocation18], 1024
        $region148: #{tpu_custom_call.1} parent=107 // pred_fallthru
          _
        // Predicated region
        $region149: #{tpu_custom_call.1} parent=107 // pred_check
          %p855 = pneg %p348
        $region150: #{tpu_custom_call.1} parent=107 // pred_check_branch
          %857 = sbr.rel (%p855) target = $region152
        $region151: #{tpu_custom_call.1} parent=107 // pred_region
          %858 = dma.done [#allocation18], 32
        $region152: #{tpu_custom_call.1} parent=107 // pred_fallthru
          _
        // Predicated region
        $region153: #{tpu_custom_call.1} parent=107 // pred_check
          %p859 = pneg %p390
        $region154: #{tpu_custom_call.1} parent=107 // pred_check_branch
          %861 = sbr.rel (%p859) target = $region156
        $region155: #{tpu_custom_call.1} parent=107 // pred_region
          %862 = dma.done [#allocation21], 32
        $region156: #{tpu_custom_call.1} parent=107 // pred_fallthru
          _
        // Predicated region
        $region157: #{tpu_custom_call.1} parent=107 // pred_check
          %p863 = pneg %p411
        $region158: #{tpu_custom_call.1} parent=107 // pred_check_branch
          %865 = sbr.rel (%p863) target = $region160
        $region159: #{tpu_custom_call.1} parent=107 // pred_region
          %866 = dma.done [#allocation21], 32
        $region160: #{tpu_custom_call.1} parent=107 // pred_fallthru
          _
        // Predicated region
        $region161: #{tpu_custom_call.1} parent=107 // pred_check
          %p867 = pneg %p432
        $region162: #{tpu_custom_call.1} parent=107 // pred_check_branch
          %869 = sbr.rel (%p867) target = $region164
        $region163: #{tpu_custom_call.1} parent=107 // pred_region
          %870 = dma.done [#allocation24], 32
        $region164: #{tpu_custom_call.1} parent=107 // pred_fallthru
          _
        // Predicated region
        $region165: #{tpu_custom_call.1} parent=107 // pred_check
          %p871 = pneg %p474
        $region166: #{tpu_custom_call.1} parent=107 // pred_check_branch
          %873 = sbr.rel (%p871) target = $region168
        $region167: #{tpu_custom_call.1} parent=107 // pred_region
          %874 = dma.done [#allocation24], 16
        $region168: #{tpu_custom_call.1} parent=107 // pred_fallthru
          _
        // Predicated region
        $region169: #{tpu_custom_call.1} parent=107 // pred_check
          %p875 = pneg %p495
        $region170: #{tpu_custom_call.1} parent=107 // pred_check_branch
          %877 = sbr.rel (%p875) target = $region172
        $region171: #{tpu_custom_call.1} parent=107 // pred_region
          %878 = dma.done [#allocation27], 512
        $region172: #{tpu_custom_call.1} parent=107 // pred_fallthru
          _
        %s879 = sand.u32 %s57, 1
        %s880 = scalar_lea.sflag [#allocation3], %s879
        %s881 = sand.u32 %s57, 1
        %s882 = smul.addr %s881, 8
        %s883 = scalar_lea.vmem [#allocation2], %s882
        %p884 = pneg %p70
        %p885 = pneg %p67
        %s886 = sand.u32 %s49, 1
        %s887 = scalar_lea.sflag [#allocation6], %s886
        %s888 = sand.u32 %s83, 1
        %s889 = smul.addr %s888, 16
        %s890 = scalar_lea.vmem [#allocation5], %s889
        %p891 = pneg %p96
        %p892 = pneg %p93
        %p893 = pneg %p117
        %p894 = pneg %p114
        %p895 = pneg %p138
        %p896 = pneg %p135
        %p897 = pneg %p159
        %p898 = pneg %p156
        %p899 = pneg %p180
        %p900 = pneg %p177
        %p901 = pneg %p201
        %p902 = pneg %p198
        %p903 = pneg %p222
        %p904 = pneg %p219
        %p905 = pneg %p243
        %p906 = pneg %p240
        %p907 = pneg %p264
        %p908 = pneg %p261
        %p909 = pneg %p285
        %p910 = pneg %p282
        %p911 = pneg %p306
        %p912 = pneg %p303
        %p913 = pneg %p327
        %p914 = pneg %p324
        %p915 = pneg %p348
        %p916 = pneg %p345
        %p917 = pneg %p369
        %p918 = pneg %p366
        %p919 = pneg %p390
        %p920 = pneg %p387
        %p921 = pneg %p411
        %p922 = pneg %p408
        %p923 = pneg %p432
        %p924 = pneg %p429
        %p925 = pneg %p453
        %p926 = pneg %p450
        %p927 = pneg %p474
        %p928 = pneg %p471
        %p929 = pneg %p495
        %p930 = pneg %p492
        %p931 = pneg %p516
        %p932 = pneg %p513
        %p933 = pneg %p542
        %p934 = pneg %p539
        %s935 = sand.u32 %s529, 1
        %s936 = scalar_lea.sflag [#allocation4], %s935
        %s937 = sand.u32 %s529, 1
        %s938 = smul.addr %s937, 8
        %s939 = scalar_lea.vmem [#allocation28], %s938
        %v940 = vld [vmem:[%s809] sm:$0xff]
        %v941 = vld [vmem:[%s818] sm:$0xff]
        %v942 = vld [vmem:[%s818 + $0x8] sm:$0xff]
        %v943 = vld [vmem:[%s2] sm:$0xff]
        %v944 = vld [vmem:[%s2 + $0x8] sm:$0xff]
        %v945 = vld [vmem:[%s2 + $0x10] sm:$0xff]
        %v946 = vld [vmem:[%s2 + $0x18] sm:$0xff]
        %v947 = vld [vmem:[#allocation7] sm:$0x1]
        %v949 = vlaneseq
        %v950 = vshrl.u32 %v949, 7
        %v951 = vsub.s32 0, %v950
        %v952 = vrot.slane %v947, %v951
        %vm954 = vcmask 261120
        %v956 = vsel %vm954, %v940, 0
        %958 = vmatprep.subr.mxu0 0.0
        %959 = vmatpush1.msra.mxu0 0.0
        %960 = vmatprep.subr.mxu0 0.0
        %961 = vmatpush1.msra.mxu0 0.0
        %962 = vmatprep.subr.mxu0 0.0
        %963 = vmatpush1.msra.mxu0 0.0
        %964 = vmatprep.subr.mxu0 0.0
        %965 = vmatpush1.msra.mxu0 0.0
        %966 = vmatprep.subr.mxu0 0.0
        %967 = vmatpush1.msra.mxu0 0.0
        %968 = vmatprep.subr.mxu0 0.0
        %969 = vmatpush1.msra.mxu0 0.0
        %970 = vmatprep.subr.mxu0 0.0
        %971 = vmatpush1.msra.mxu0 0.0
        %972 = vmatprep.subr.mxu0 0.0
        %973 = vmatpush1.msra.mxu0 0.0
        %974 = vmatprep.subr.mxu0 0.0
        %975 = vmatpush1.msra.mxu0 0.0
        %976 = vmatprep.subr.mxu0 0.0
        %977 = vmatpush1.msra.mxu0 0.0
        %978 = vmatprep.subr.mxu0 0.0
        %979 = vmatpush1.msra.mxu0 0.0
        %980 = vmatprep.subr.mxu0 0.0
        %981 = vmatpush1.msra.mxu0 0.0
        %982 = vmatprep.subr.mxu0 0.0
        %983 = vmatpush1.msra.mxu0 %v946
        %984 = vmatprep.subr.mxu0 0.0
        %985 = vmatpush1.msra.mxu0 %v945
        %986 = vmatprep.subr.mxu0 0.0
        %987 = vmatpush1.msra.mxu0 %v944
        %988 = vmatprep.subr.mxu0 0.0
        %989 = vmatpush1.msra.mxu0 %v943
        %990 = vmatprep.subr.mxu0 0.0
        %991 = vmatpush2.msra.mxu0 0.0
        %992 = vmatprep.subr.mxu0 0.0
        %993 = vmatpush2.msra.mxu0 0.0
        %994 = vmatprep.subr.mxu0 0.0
        %995 = vmatpush2.msra.mxu0 0.0
        %996 = vmatprep.subr.mxu0 0.0
        %997 = vmatpush2.msra.mxu0 0.0
        %998 = vmatprep.subr.mxu0 0.0
        %999 = vmatpush2.msra.mxu0 0.0
        %1000 = vmatprep.subr.mxu0 0.0
        %1001 = vmatpush2.msra.mxu0 0.0
        %1002 = vmatprep.subr.mxu0 0.0
        %1003 = vmatpush2.msra.mxu0 0.0
        %1004 = vmatprep.subr.mxu0 0.0
        %1005 = vmatpush2.msra.mxu0 0.0
        %1006 = vmatprep.subr.mxu0 0.0
        %1007 = vmatpush2.msra.mxu0 0.0
        %1008 = vmatprep.subr.mxu0 0.0
        %1009 = vmatpush2.msra.mxu0 0.0
        %1010 = vmatprep.subr.mxu0 0.0
        %1011 = vmatpush2.msra.mxu0 0.0
        %1012 = vmatprep.subr.mxu0 0.0
        %1013 = vmatpush2.msra.mxu0 0.0
        %1014 = vmatprep.subr.mxu0 0.0
        %1015 = vmatpush2.msra.mxu0 0.0
        %1016 = vmatprep.subr.mxu0 0.0
        %1017 = vmatpush2.msra.mxu0 0.0
        %1018 = vmatprep.subr.mxu0 0.0
        %1019 = vmatpush2.msra.mxu0 0.0
        %1020 = vmatprep.subr.mxu0 0.0
        %1021 = vmatpush2.msra.mxu0 0.0
        %1022 = vmatprep.mubr.f32.mxu0 0.0
        %1023 = vmatmul.mubr.f32.gmra.mxu0 %v956
        %v1024 = vpop.f32.mrf.mxu0
        %v1025 = vadd.f32 %v952, %v1024
        %v1026 = vpop.f32.mrf.mxu0
        %1027 = vdwg.mxu0
        %v1028 = vld [vmem:[%s3] sm:$0xff]
        %v1029 = vld [vmem:[%s3 + $0x8] sm:$0xff]
        %v1030 = vld [vmem:[%s3 + $0x10] sm:$0xff]
        %v1031 = vld [vmem:[%s3 + $0x18] sm:$0xff]
        %v1032 = vld [vmem:[#allocation8] sm:$0x1]
        %v1034 = vlaneseq
        %v1035 = vshrl.u32 %v1034, 7
        %v1036 = vsub.s32 0, %v1035
        %v1037 = vrot.slane %v1032, %v1036
        %v1040 = vsel %vm954, %v941, 0
        %v1043 = vsel %vm954, %v942, 0
        %1045 = vmatprep.subr.mxu0 0.0
        %1046 = vmatpush1.msra.mxu0 0.0
        %1047 = vmatprep.subr.mxu0 0.0
        %1048 = vmatpush1.msra.mxu0 0.0
        %1049 = vmatprep.subr.mxu0 0.0
        %1050 = vmatpush1.msra.mxu0 0.0
        %1051 = vmatprep.subr.mxu0 0.0
        %1052 = vmatpush1.msra.mxu0 0.0
        %1053 = vmatprep.subr.mxu0 0.0
        %1054 = vmatpush1.msra.mxu0 0.0
        %1055 = vmatprep.subr.mxu0 0.0
        %1056 = vmatpush1.msra.mxu0 0.0
        %1057 = vmatprep.subr.mxu0 0.0
        %1058 = vmatpush1.msra.mxu0 0.0
        %1059 = vmatprep.subr.mxu0 0.0
        %1060 = vmatpush1.msra.mxu0 0.0
        %1061 = vmatprep.subr.mxu0 0.0
        %1062 = vmatpush1.msra.mxu0 0.0
        %1063 = vmatprep.subr.mxu0 0.0
        %1064 = vmatpush1.msra.mxu0 0.0
        %1065 = vmatprep.subr.mxu0 0.0
        %1066 = vmatpush1.msra.mxu0 0.0
        %1067 = vmatprep.subr.mxu0 0.0
        %1068 = vmatpush1.msra.mxu0 0.0
        %1069 = vmatprep.subr.mxu0 0.0
        %1070 = vmatpush1.msra.mxu0 %v1031
        %1071 = vmatprep.subr.mxu0 0.0
        %1072 = vmatpush1.msra.mxu0 %v1030
        %1073 = vmatprep.subr.mxu0 0.0
        %1074 = vmatpush1.msra.mxu0 %v1029
        %1075 = vmatprep.subr.mxu0 0.0
        %1076 = vmatpush1.msra.mxu0 %v1028
        %1077 = vmatprep.subr.mxu0 0.0
        %1078 = vmatpush2.msra.mxu0 0.0
        %1079 = vmatprep.subr.mxu0 0.0
        %1080 = vmatpush2.msra.mxu0 0.0
        %1081 = vmatprep.subr.mxu0 0.0
        %1082 = vmatpush2.msra.mxu0 0.0
        %1083 = vmatprep.subr.mxu0 0.0
        %1084 = vmatpush2.msra.mxu0 0.0
        %1085 = vmatprep.subr.mxu0 0.0
        %1086 = vmatpush2.msra.mxu0 0.0
        %1087 = vmatprep.subr.mxu0 0.0
        %1088 = vmatpush2.msra.mxu0 0.0
        %1089 = vmatprep.subr.mxu0 0.0
        %1090 = vmatpush2.msra.mxu0 0.0
        %1091 = vmatprep.subr.mxu0 0.0
        %1092 = vmatpush2.msra.mxu0 0.0
        %1093 = vmatprep.subr.mxu0 0.0
        %1094 = vmatpush2.msra.mxu0 0.0
        %1095 = vmatprep.subr.mxu0 0.0
        %1096 = vmatpush2.msra.mxu0 0.0
        %1097 = vmatprep.subr.mxu0 0.0
        %1098 = vmatpush2.msra.mxu0 0.0
        %1099 = vmatprep.subr.mxu0 0.0
        %1100 = vmatpush2.msra.mxu0 0.0
        %1101 = vmatprep.subr.mxu0 0.0
        %1102 = vmatpush2.msra.mxu0 0.0
        %1103 = vmatprep.subr.mxu0 0.0
        %1104 = vmatpush2.msra.mxu0 0.0
        %1105 = vmatprep.subr.mxu0 0.0
        %1106 = vmatpush2.msra.mxu0 0.0
        %1107 = vmatprep.subr.mxu0 0.0
        %1108 = vmatpush2.msra.mxu0 0.0
        %1109 = vmatprep.mubr.f32.mxu0 0.0
        %1110 = vmatmul.mubr.f32.gmra.mxu0 %v1040
        %v1111 = vpop.f32.mrf.mxu0
        %v1112 = vadd.f32 %v1037, %v1111
        %v1113 = vpop.f32.mrf.mxu0
        %1114 = vmatprep.mubr.f32.mxu0 0.0
        %1115 = vmatmul.mubr.f32.gmra.mxu0 %v1043
        %v1116 = vpop.f32.mrf.mxu0
        %v1117 = vadd.f32 %v1037, %v1116
        %v1118 = vpop.f32.mrf.mxu0
        %1119 = vdwg.mxu0
        %v1120 = vld [vmem:[%s4] sm:$0xff]
        %v1121 = vld [vmem:[%s4 + $0x8] sm:$0xff]
        %v1122 = vld [vmem:[%s4 + $0x10] sm:$0xff]
        %v1123 = vld [vmem:[%s4 + $0x18] sm:$0xff]
        %v1124 = vld [vmem:[#allocation10] sm:$0x1]
        %v1126 = vlaneseq
        %v1127 = vshrl.u32 %v1126, 7
        %v1128 = vsub.s32 0, %v1127
        %v1129 = vrot.slane %v1124, %v1128
        %1131 = vmatprep.subr.mxu0 0.0
        %1132 = vmatpush1.msra.mxu0 0.0
        %1133 = vmatprep.subr.mxu0 0.0
        %1134 = vmatpush1.msra.mxu0 0.0
        %1135 = vmatprep.subr.mxu0 0.0
        %1136 = vmatpush1.msra.mxu0 0.0
        %1137 = vmatprep.subr.mxu0 0.0
        %1138 = vmatpush1.msra.mxu0 0.0
        %1139 = vmatprep.subr.mxu0 0.0
        %1140 = vmatpush1.msra.mxu0 0.0
        %1141 = vmatprep.subr.mxu0 0.0
        %1142 = vmatpush1.msra.mxu0 0.0
        %1143 = vmatprep.subr.mxu0 0.0
        %1144 = vmatpush1.msra.mxu0 0.0
        %1145 = vmatprep.subr.mxu0 0.0
        %1146 = vmatpush1.msra.mxu0 0.0
        %1147 = vmatprep.subr.mxu0 0.0
        %1148 = vmatpush1.msra.mxu0 0.0
        %1149 = vmatprep.subr.mxu0 0.0
        %1150 = vmatpush1.msra.mxu0 0.0
        %1151 = vmatprep.subr.mxu0 0.0
        %1152 = vmatpush1.msra.mxu0 0.0
        %1153 = vmatprep.subr.mxu0 0.0
        %1154 = vmatpush1.msra.mxu0 0.0
        %1155 = vmatprep.subr.mxu0 0.0
        %1156 = vmatpush1.msra.mxu0 %v1123
        %1157 = vmatprep.subr.mxu0 0.0
        %1158 = vmatpush1.msra.mxu0 %v1122
        %1159 = vmatprep.subr.mxu0 0.0
        %1160 = vmatpush1.msra.mxu0 %v1121
        %1161 = vmatprep.subr.mxu0 0.0
        %1162 = vmatpush1.msra.mxu0 %v1120
        %1163 = vmatprep.subr.mxu0 0.0
        %1164 = vmatpush2.msra.mxu0 0.0
        %1165 = vmatprep.subr.mxu0 0.0
        %1166 = vmatpush2.msra.mxu0 0.0
        %1167 = vmatprep.subr.mxu0 0.0
        %1168 = vmatpush2.msra.mxu0 0.0
        %1169 = vmatprep.subr.mxu0 0.0
        %1170 = vmatpush2.msra.mxu0 0.0
        %1171 = vmatprep.subr.mxu0 0.0
        %1172 = vmatpush2.msra.mxu0 0.0
        %1173 = vmatprep.subr.mxu0 0.0
        %1174 = vmatpush2.msra.mxu0 0.0
        %1175 = vmatprep.subr.mxu0 0.0
        %1176 = vmatpush2.msra.mxu0 0.0
        %1177 = vmatprep.subr.mxu0 0.0
        %1178 = vmatpush2.msra.mxu0 0.0
        %1179 = vmatprep.subr.mxu0 0.0
        %1180 = vmatpush2.msra.mxu0 0.0
        %1181 = vmatprep.subr.mxu0 0.0
        %1182 = vmatpush2.msra.mxu0 0.0
        %1183 = vmatprep.subr.mxu0 0.0
        %1184 = vmatpush2.msra.mxu0 0.0
        %1185 = vmatprep.subr.mxu0 0.0
        %1186 = vmatpush2.msra.mxu0 0.0
        %1187 = vmatprep.subr.mxu0 0.0
        %1188 = vmatpush2.msra.mxu0 0.0
        %1189 = vmatprep.subr.mxu0 0.0
        %1190 = vmatpush2.msra.mxu0 0.0
        %1191 = vmatprep.subr.mxu0 0.0
        %1192 = vmatpush2.msra.mxu0 0.0
        %1193 = vmatprep.subr.mxu0 0.0
        %1194 = vmatpush2.msra.mxu0 0.0
        %1195 = vmatprep.mubr.f32.mxu0 0.0
        %1196 = vmatmul.mubr.f32.gmra.mxu0 %v1040
        %v1197 = vpop.f32.mrf.mxu0
        %v1198 = vadd.f32 %v1129, %v1197
        %v1199 = vpop.f32.mrf.mxu0
        %1200 = vmatprep.mubr.f32.mxu0 0.0
        %1201 = vmatmul.mubr.f32.gmra.mxu0 %v1043
        %v1202 = vpop.f32.mrf.mxu0
        %v1203 = vadd.f32 %v1129, %v1202
        %v1204 = vpop.f32.mrf.mxu0
        %1205 = vdwg.mxu0
        %vm1206 = vcmask 64512
        %v1208 = vsel %vm1206, %v1025, 0
        %v1211 = vsel %vm1206, %v1112, 0
        %v1214 = vsel %vm1206, %v1117, 0
        %1216 = vmatprep.subr.mxu0 0.0
        %1217 = vmatpush1.xpose.msra.mxu0 0.0
        %1218 = vmatprep.subr.mxu0 0.0
        %1219 = vmatpush1.xpose.msra.mxu0 0.0
        %1220 = vmatprep.subr.mxu0 0.0
        %1221 = vmatpush1.xpose.msra.mxu0 0.0
        %1222 = vmatprep.subr.mxu0 0.0
        %1223 = vmatpush1.xpose.msra.mxu0 0.0
        %1224 = vmatprep.subr.mxu0 0.0
        %1225 = vmatpush1.xpose.msra.mxu0 0.0
        %1226 = vmatprep.subr.mxu0 0.0
        %1227 = vmatpush1.xpose.msra.mxu0 0.0
        %1228 = vmatprep.subr.mxu0 0.0
        %1229 = vmatpush1.xpose.msra.mxu0 0.0
        %1230 = vmatprep.subr.mxu0 0.0
        %1231 = vmatpush1.xpose.msra.mxu0 0.0
        %1232 = vmatprep.subr.mxu0 0.0
        %1233 = vmatpush1.xpose.msra.mxu0 0.0
        %1234 = vmatprep.subr.mxu0 0.0
        %1235 = vmatpush1.xpose.msra.mxu0 0.0
        %1236 = vmatprep.subr.mxu0 0.0
        %1237 = vmatpush1.xpose.msra.mxu0 0.0
        %1238 = vmatprep.subr.mxu0 0.0
        %1239 = vmatpush1.xpose.msra.mxu0 0.0
        %1240 = vmatprep.subr.mxu0 0.0
        %1241 = vmatpush1.xpose.msra.mxu0 0.0
        %1242 = vmatprep.subr.mxu0 0.0
        %1243 = vmatpush1.xpose.msra.mxu0 0.0
        %1244 = vmatprep.subr.mxu0 0.0
        %1245 = vmatpush1.xpose.msra.mxu0 %v1214
        %1246 = vmatprep.subr.mxu0 0.0
        %1247 = vmatpush1.xpose.msra.mxu0 %v1211
        %1248 = vmatprep.subr.mxu0 0.0
        %1249 = vmatpush2.xpose.msra.mxu0 0.0
        %1250 = vmatprep.subr.mxu0 0.0
        %1251 = vmatpush2.xpose.msra.mxu0 0.0
        %1252 = vmatprep.subr.mxu0 0.0
        %1253 = vmatpush2.xpose.msra.mxu0 0.0
        %1254 = vmatprep.subr.mxu0 0.0
        %1255 = vmatpush2.xpose.msra.mxu0 0.0
        %1256 = vmatprep.subr.mxu0 0.0
        %1257 = vmatpush2.xpose.msra.mxu0 0.0
        %1258 = vmatprep.subr.mxu0 0.0
        %1259 = vmatpush2.xpose.msra.mxu0 0.0
        %1260 = vmatprep.subr.mxu0 0.0
        %1261 = vmatpush2.xpose.msra.mxu0 0.0
        %1262 = vmatprep.subr.mxu0 0.0
        %1263 = vmatpush2.xpose.msra.mxu0 0.0
        %1264 = vmatprep.subr.mxu0 0.0
        %1265 = vmatpush2.xpose.msra.mxu0 0.0
        %1266 = vmatprep.subr.mxu0 0.0
        %1267 = vmatpush2.xpose.msra.mxu0 0.0
        %1268 = vmatprep.subr.mxu0 0.0
        %1269 = vmatpush2.xpose.msra.mxu0 0.0
        %1270 = vmatprep.subr.mxu0 0.0
        %1271 = vmatpush2.xpose.msra.mxu0 0.0
        %1272 = vmatprep.subr.mxu0 0.0
        %1273 = vmatpush2.xpose.msra.mxu0 0.0
        %1274 = vmatprep.subr.mxu0 0.0
        %1275 = vmatpush2.xpose.msra.mxu0 0.0
        %1276 = vmatprep.subr.mxu0 0.0
        %1277 = vmatpush2.xpose.msra.mxu0 0.0
        %1278 = vmatprep.subr.mxu0 0.0
        %1279 = vmatpush2.xpose.msra.mxu0 0.0
        %1280 = vmatprep.mubr.f32.mxu0 0.0
        %1281 = vmatmul.mubr.f32.gmra.mxu0 %v1208
        %v1282 = vpop.f32.mrf.mxu0
        %v1283 = vadd.f32 0.0, %v1282
        %v1284 = vpop.f32.mrf.mxu0
        %1285 = vdwg.mxu0
        %v1286 = vmul.f32 %v1283, 0.35355338
        %vm1287 = vcmask 130048
        %v1288 = vsel %vm1287, %v1286, -inf
        %1289 = vmax.xlane.f32.xlu0 %v1288
        %v1290 = vpop.xlane.xlu0 %1289
        %v1291 = vsub.f32 %v1286, %v1290
        %v1292 = vmul.f32 %v1291, 1.442695
        %v1293 = vpow.pop %v1292
        %v1294 = vsel %vm1287, %v1293, 0.0
        %1295 = vadd.xlane.f32.xlu0 %v1294
        %v1296 = vpop.xlane.xlu0 %1295
        %v1297 = vrcp.pop %v1296
        %v1298 = vmul.f32 %v1293, %v1297
        %v1300 = vsel %vm1287, %v1298, 0
        %1302 = vmatprep.subr.mxu0 0.0
        %1303 = vmatpush1.msra.mxu0 0.0
        %1304 = vmatprep.subr.mxu0 0.0
        %1305 = vmatpush1.msra.mxu0 0.0
        %1306 = vmatprep.subr.mxu0 0.0
        %1307 = vmatpush1.msra.mxu0 0.0
        %1308 = vmatprep.subr.mxu0 0.0
        %1309 = vmatpush1.msra.mxu0 0.0
        %1310 = vmatprep.subr.mxu0 0.0
        %1311 = vmatpush1.msra.mxu0 0.0
        %1312 = vmatprep.subr.mxu0 0.0
        %1313 = vmatpush1.msra.mxu0 0.0
        %1314 = vmatprep.subr.mxu0 0.0
        %1315 = vmatpush1.msra.mxu0 0.0
        %1316 = vmatprep.subr.mxu0 0.0
        %1317 = vmatpush1.msra.mxu0 0.0
        %1318 = vmatprep.subr.mxu0 0.0
        %1319 = vmatpush1.msra.mxu0 0.0
        %1320 = vmatprep.subr.mxu0 0.0
        %1321 = vmatpush1.msra.mxu0 0.0
        %1322 = vmatprep.subr.mxu0 0.0
        %1323 = vmatpush1.msra.mxu0 0.0
        %1324 = vmatprep.subr.mxu0 0.0
        %1325 = vmatpush1.msra.mxu0 0.0
        %1326 = vmatprep.subr.mxu0 0.0
        %1327 = vmatpush1.msra.mxu0 0.0
        %1328 = vmatprep.subr.mxu0 0.0
        %1329 = vmatpush1.msra.mxu0 0.0
        %1330 = vmatprep.subr.mxu0 0.0
        %1331 = vmatpush1.msra.mxu0 %v1203
        %1332 = vmatprep.subr.mxu0 0.0
        %1333 = vmatpush1.msra.mxu0 %v1198
        %1334 = vmatprep.subr.mxu0 0.0
        %1335 = vmatpush2.msra.mxu0 0.0
        %1336 = vmatprep.subr.mxu0 0.0
        %1337 = vmatpush2.msra.mxu0 0.0
        %1338 = vmatprep.subr.mxu0 0.0
        %1339 = vmatpush2.msra.mxu0 0.0
        %1340 = vmatprep.subr.mxu0 0.0
        %1341 = vmatpush2.msra.mxu0 0.0
        %1342 = vmatprep.subr.mxu0 0.0
        %1343 = vmatpush2.msra.mxu0 0.0
        %1344 = vmatprep.subr.mxu0 0.0
        %1345 = vmatpush2.msra.mxu0 0.0
        %1346 = vmatprep.subr.mxu0 0.0
        %1347 = vmatpush2.msra.mxu0 0.0
        %1348 = vmatprep.subr.mxu0 0.0
        %1349 = vmatpush2.msra.mxu0 0.0
        %1350 = vmatprep.subr.mxu0 0.0
        %1351 = vmatpush2.msra.mxu0 0.0
        %1352 = vmatprep.subr.mxu0 0.0
        %1353 = vmatpush2.msra.mxu0 0.0
        %1354 = vmatprep.subr.mxu0 0.0
        %1355 = vmatpush2.msra.mxu0 0.0
        %1356 = vmatprep.subr.mxu0 0.0
        %1357 = vmatpush2.msra.mxu0 0.0
        %1358 = vmatprep.subr.mxu0 0.0
        %1359 = vmatpush2.msra.mxu0 0.0
        %1360 = vmatprep.subr.mxu0 0.0
        %1361 = vmatpush2.msra.mxu0 0.0
        %1362 = vmatprep.subr.mxu0 0.0
        %1363 = vmatpush2.msra.mxu0 0.0
        %1364 = vmatprep.subr.mxu0 0.0
        %1365 = vmatpush2.msra.mxu0 0.0
        %1366 = vmatprep.mubr.f32.mxu0 0.0
        %1367 = vmatmul.mubr.f32.gmra.mxu0 %v1300
        %v1368 = vpop.f32.mrf.mxu0
        %v1369 = vadd.f32 0.0, %v1368
        %v1370 = vpop.f32.mrf.mxu0
        %1371 = vdwg.mxu0
        %v1372 = vld [vmem:[#allocation11] sm:$0xff]
        %1373 = vrot.lane.b32.xlu0 %v1025, 120
        %v1374 = vpop.permute.xlu0 %1373
        %1375 = vrot.lane.b32.xlu0 %v1112, 120
        %v1376 = vpop.permute.xlu0 %1375
        %1377 = vrot.lane.b32.xlu0 %v1117, 120
        %v1378 = vpop.permute.xlu0 %1377
        %v1379 = vsel %vm1206, %v1374, 0
        %v1381 = vsel %vm1206, %v1376, 0
        %v1383 = vsel %vm1206, %v1378, 0
        %1385 = vmatprep.subr.mxu0 0.0
        %1386 = vmatpush1.xpose.msra.mxu0 0.0
        %1387 = vmatprep.subr.mxu0 0.0
        %1388 = vmatpush1.xpose.msra.mxu0 0.0
        %1389 = vmatprep.subr.mxu0 0.0
        %1390 = vmatpush1.xpose.msra.mxu0 0.0
        %1391 = vmatprep.subr.mxu0 0.0
        %1392 = vmatpush1.xpose.msra.mxu0 0.0
        %1393 = vmatprep.subr.mxu0 0.0
        %1394 = vmatpush1.xpose.msra.mxu0 0.0
        %1395 = vmatprep.subr.mxu0 0.0
        %1396 = vmatpush1.xpose.msra.mxu0 0.0
        %1397 = vmatprep.subr.mxu0 0.0
        %1398 = vmatpush1.xpose.msra.mxu0 0.0
        %1399 = vmatprep.subr.mxu0 0.0
        %1400 = vmatpush1.xpose.msra.mxu0 0.0
        %1401 = vmatprep.subr.mxu0 0.0
        %1402 = vmatpush1.xpose.msra.mxu0 0.0
        %1403 = vmatprep.subr.mxu0 0.0
        %1404 = vmatpush1.xpose.msra.mxu0 0.0
        %1405 = vmatprep.subr.mxu0 0.0
        %1406 = vmatpush1.xpose.msra.mxu0 0.0
        %1407 = vmatprep.subr.mxu0 0.0
        %1408 = vmatpush1.xpose.msra.mxu0 0.0
        %1409 = vmatprep.subr.mxu0 0.0
        %1410 = vmatpush1.xpose.msra.mxu0 0.0
        %1411 = vmatprep.subr.mxu0 0.0
        %1412 = vmatpush1.xpose.msra.mxu0 0.0
        %1413 = vmatprep.subr.mxu0 0.0
        %1414 = vmatpush1.xpose.msra.mxu0 %v1383
        %1415 = vmatprep.subr.mxu0 0.0
        %1416 = vmatpush1.xpose.msra.mxu0 %v1381
        %1417 = vmatprep.subr.mxu0 0.0
        %1418 = vmatpush2.xpose.msra.mxu0 0.0
        %1419 = vmatprep.subr.mxu0 0.0
        %1420 = vmatpush2.xpose.msra.mxu0 0.0
        %1421 = vmatprep.subr.mxu0 0.0
        %1422 = vmatpush2.xpose.msra.mxu0 0.0
        %1423 = vmatprep.subr.mxu0 0.0
        %1424 = vmatpush2.xpose.msra.mxu0 0.0
        %1425 = vmatprep.subr.mxu0 0.0
        %1426 = vmatpush2.xpose.msra.mxu0 0.0
        %1427 = vmatprep.subr.mxu0 0.0
        %1428 = vmatpush2.xpose.msra.mxu0 0.0
        %1429 = vmatprep.subr.mxu0 0.0
        %1430 = vmatpush2.xpose.msra.mxu0 0.0
        %1431 = vmatprep.subr.mxu0 0.0
        %1432 = vmatpush2.xpose.msra.mxu0 0.0
        %1433 = vmatprep.subr.mxu0 0.0
        %1434 = vmatpush2.xpose.msra.mxu0 0.0
        %1435 = vmatprep.subr.mxu0 0.0
        %1436 = vmatpush2.xpose.msra.mxu0 0.0
        %1437 = vmatprep.subr.mxu0 0.0
        %1438 = vmatpush2.xpose.msra.mxu0 0.0
        %1439 = vmatprep.subr.mxu0 0.0
        %1440 = vmatpush2.xpose.msra.mxu0 0.0
        %1441 = vmatprep.subr.mxu0 0.0
        %1442 = vmatpush2.xpose.msra.mxu0 0.0
        %1443 = vmatprep.subr.mxu0 0.0
        %1444 = vmatpush2.xpose.msra.mxu0 0.0
        %1445 = vmatprep.subr.mxu0 0.0
        %1446 = vmatpush2.xpose.msra.mxu0 0.0
        %1447 = vmatprep.subr.mxu0 0.0
        %1448 = vmatpush2.xpose.msra.mxu0 0.0
        %1449 = vmatprep.mubr.f32.mxu0 0.0
        %1450 = vmatmul.mubr.f32.gmra.mxu0 %v1379
        %v1451 = vpop.f32.mrf.mxu0
        %v1452 = vadd.f32 0.0, %v1451
        %v1453 = vpop.f32.mrf.mxu0
        %1454 = vdwg.mxu0
        %v1455 = vmul.f32 %v1452, 0.35355338
        %v1456 = vsel %vm1287, %v1455, -inf
        %1457 = vmax.xlane.f32.xlu0 %v1456
        %v1458 = vpop.xlane.xlu0 %1457
        %v1459 = vsub.f32 %v1455, %v1458
        %v1460 = vmul.f32 %v1459, 1.442695
        %v1461 = vpow.pop %v1460
        %v1462 = vsel %vm1287, %v1461, 0.0
        %1463 = vadd.xlane.f32.xlu0 %v1462
        %v1464 = vpop.xlane.xlu0 %1463
        %v1465 = vrcp.pop %v1464
        %v1466 = vmul.f32 %v1461, %v1465
        %1469 = vrot.lane.b32.xlu0 %v1198, 120
        %v1470 = vpop.permute.xlu0 %1469
        %1471 = vrot.lane.b32.xlu0 %v1203, 120
        %v1472 = vpop.permute.xlu0 %1471
        %v1476 = vsel %vm1287, %v1466, 0
        %1478 = vmatprep.subr.mxu0 0.0
        %1479 = vmatpush1.msra.mxu0 0.0
        %1480 = vmatprep.subr.mxu0 0.0
        %1481 = vmatpush1.msra.mxu0 0.0
        %1482 = vmatprep.subr.mxu0 0.0
        %1483 = vmatpush1.msra.mxu0 0.0
        %1484 = vmatprep.subr.mxu0 0.0
        %1485 = vmatpush1.msra.mxu0 0.0
        %1486 = vmatprep.subr.mxu0 0.0
        %1487 = vmatpush1.msra.mxu0 0.0
        %1488 = vmatprep.subr.mxu0 0.0
        %1489 = vmatpush1.msra.mxu0 0.0
        %1490 = vmatprep.subr.mxu0 0.0
        %1491 = vmatpush1.msra.mxu0 0.0
        %1492 = vmatprep.subr.mxu0 0.0
        %1493 = vmatpush1.msra.mxu0 0.0
        %1494 = vmatprep.subr.mxu0 0.0
        %1495 = vmatpush1.msra.mxu0 0.0
        %1496 = vmatprep.subr.mxu0 0.0
        %1497 = vmatpush1.msra.mxu0 0.0
        %1498 = vmatprep.subr.mxu0 0.0
        %1499 = vmatpush1.msra.mxu0 0.0
        %1500 = vmatprep.subr.mxu0 0.0
        %1501 = vmatpush1.msra.mxu0 0.0
        %1502 = vmatprep.subr.mxu0 0.0
        %1503 = vmatpush1.msra.mxu0 0.0
        %1504 = vmatprep.subr.mxu0 0.0
        %1505 = vmatpush1.msra.mxu0 0.0
        %1506 = vmatprep.subr.mxu0 0.0
        %1507 = vmatpush1.msra.mxu0 %v1472
        %1508 = vmatprep.subr.mxu0 0.0
        %1509 = vmatpush1.msra.mxu0 %v1470
        %1510 = vmatprep.subr.mxu0 0.0
        %1511 = vmatpush2.msra.mxu0 0.0
        %1512 = vmatprep.subr.mxu0 0.0
        %1513 = vmatpush2.msra.mxu0 0.0
        %1514 = vmatprep.subr.mxu0 0.0
        %1515 = vmatpush2.msra.mxu0 0.0
        %1516 = vmatprep.subr.mxu0 0.0
        %1517 = vmatpush2.msra.mxu0 0.0
        %1518 = vmatprep.subr.mxu0 0.0
        %1519 = vmatpush2.msra.mxu0 0.0
        %1520 = vmatprep.subr.mxu0 0.0
        %1521 = vmatpush2.msra.mxu0 0.0
        %1522 = vmatprep.subr.mxu0 0.0
        %1523 = vmatpush2.msra.mxu0 0.0
        %1524 = vmatprep.subr.mxu0 0.0
        %1525 = vmatpush2.msra.mxu0 0.0
        %1526 = vmatprep.subr.mxu0 0.0
        %1527 = vmatpush2.msra.mxu0 0.0
        %1528 = vmatprep.subr.mxu0 0.0
        %1529 = vmatpush2.msra.mxu0 0.0
        %1530 = vmatprep.subr.mxu0 0.0
        %1531 = vmatpush2.msra.mxu0 0.0
        %1532 = vmatprep.subr.mxu0 0.0
        %1533 = vmatpush2.msra.mxu0 0.0
        %1534 = vmatprep.subr.mxu0 0.0
        %1535 = vmatpush2.msra.mxu0 0.0
        %1536 = vmatprep.subr.mxu0 0.0
        %1537 = vmatpush2.msra.mxu0 0.0
        %1538 = vmatprep.subr.mxu0 0.0
        %1539 = vmatpush2.msra.mxu0 0.0
        %1540 = vmatprep.subr.mxu0 0.0
        %1541 = vmatpush2.msra.mxu0 0.0
        %1542 = vmatprep.mubr.f32.mxu0 0.0
        %1543 = vmatmul.mubr.f32.gmra.mxu0 %v1476
        %v1544 = vpop.f32.mrf.mxu0
        %v1545 = vadd.f32 0.0, %v1544
        %v1546 = vpop.f32.mrf.mxu0
        %1547 = vdwg.mxu0
        %v1548 = vld [vmem:[#allocation11 + $0x8] sm:$0xff]
        %v1550 = vsel %vm1206, %v1545, 0
        %1552 = vmatprep.subr.mxu0 0.0
        %1553 = vmatpush1.msra.mxu0 0.0
        %1554 = vmatprep.subr.mxu0 0.0
        %1555 = vmatpush1.msra.mxu0 0.0
        %1556 = vmatprep.subr.mxu0 0.0
        %1557 = vmatpush1.msra.mxu0 0.0
        %1558 = vmatprep.subr.mxu0 0.0
        %1559 = vmatpush1.msra.mxu0 0.0
        %1560 = vmatprep.subr.mxu0 0.0
        %1561 = vmatpush1.msra.mxu0 0.0
        %1562 = vmatprep.subr.mxu0 0.0
        %1563 = vmatpush1.msra.mxu0 0.0
        %1564 = vmatprep.subr.mxu0 0.0
        %1565 = vmatpush1.msra.mxu0 0.0
        %1566 = vmatprep.subr.mxu0 0.0
        %1567 = vmatpush1.msra.mxu0 0.0
        %1568 = vmatprep.subr.mxu0 0.0
        %1569 = vmatpush1.msra.mxu0 0.0
        %1570 = vmatprep.subr.mxu0 0.0
        %1571 = vmatpush1.msra.mxu0 0.0
        %1572 = vmatprep.subr.mxu0 0.0
        %1573 = vmatpush1.msra.mxu0 0.0
        %1574 = vmatprep.subr.mxu0 0.0
        %1575 = vmatpush1.msra.mxu0 0.0
        %1576 = vmatprep.subr.mxu0 0.0
        %1577 = vmatpush1.msra.mxu0 0.0
        %1578 = vmatprep.subr.mxu0 0.0
        %1579 = vmatpush1.msra.mxu0 0.0
        %1580 = vmatprep.subr.mxu0 0.0
        %1581 = vmatpush1.msra.mxu0 0.0
        %1582 = vmatprep.subr.mxu0 0.0
        %1583 = vmatpush1.msra.mxu0 %v1548
        %1584 = vmatprep.subr.mxu0 0.0
        %1585 = vmatpush2.msra.mxu0 0.0
        %1586 = vmatprep.subr.mxu0 0.0
        %1587 = vmatpush2.msra.mxu0 0.0
        %1588 = vmatprep.subr.mxu0 0.0
        %1589 = vmatpush2.msra.mxu0 0.0
        %1590 = vmatprep.subr.mxu0 0.0
        %1591 = vmatpush2.msra.mxu0 0.0
        %1592 = vmatprep.subr.mxu0 0.0
        %1593 = vmatpush2.msra.mxu0 0.0
        %1594 = vmatprep.subr.mxu0 0.0
        %1595 = vmatpush2.msra.mxu0 0.0
        %1596 = vmatprep.subr.mxu0 0.0
        %1597 = vmatpush2.msra.mxu0 0.0
        %1598 = vmatprep.subr.mxu0 0.0
        %1599 = vmatpush2.msra.mxu0 0.0
        %1600 = vmatprep.subr.mxu0 0.0
        %1601 = vmatpush2.msra.mxu0 0.0
        %1602 = vmatprep.subr.mxu0 0.0
        %1603 = vmatpush2.msra.mxu0 0.0
        %1604 = vmatprep.subr.mxu0 0.0
        %1605 = vmatpush2.msra.mxu0 0.0
        %1606 = vmatprep.subr.mxu0 0.0
        %1607 = vmatpush2.msra.mxu0 0.0
        %1608 = vmatprep.subr.mxu0 0.0
        %1609 = vmatpush2.msra.mxu0 0.0
        %1610 = vmatprep.subr.mxu0 0.0
        %1611 = vmatpush2.msra.mxu0 0.0
        %1612 = vmatprep.subr.mxu0 0.0
        %1613 = vmatpush2.msra.mxu0 0.0
        %1614 = vmatprep.subr.mxu0 0.0
        %1615 = vmatpush2.msra.mxu0 0.0
        %1616 = vmatprep.mubr.f32.mxu0 0.0
        %1617 = vmatmul.mubr.f32.gmra.mxu0 %v1550
        %v1618 = vpop.f32.mrf.mxu0
        %v1619 = vadd.f32 0.0, %v1618
        %v1620 = vpop.f32.mrf.mxu0
        %1621 = vdwg.mxu0
        %v1623 = vsel %vm1206, %v1369, 0
        %1625 = vmatprep.subr.mxu0 0.0
        %1626 = vmatpush1.msra.mxu0 0.0
        %1627 = vmatprep.subr.mxu0 0.0
        %1628 = vmatpush1.msra.mxu0 0.0
        %1629 = vmatprep.subr.mxu0 0.0
        %1630 = vmatpush1.msra.mxu0 0.0
        %1631 = vmatprep.subr.mxu0 0.0
        %1632 = vmatpush1.msra.mxu0 0.0
        %1633 = vmatprep.subr.mxu0 0.0
        %1634 = vmatpush1.msra.mxu0 0.0
        %1635 = vmatprep.subr.mxu0 0.0
        %1636 = vmatpush1.msra.mxu0 0.0
        %1637 = vmatprep.subr.mxu0 0.0
        %1638 = vmatpush1.msra.mxu0 0.0
        %1639 = vmatprep.subr.mxu0 0.0
        %1640 = vmatpush1.msra.mxu0 0.0
        %1641 = vmatprep.subr.mxu0 0.0
        %1642 = vmatpush1.msra.mxu0 0.0
        %1643 = vmatprep.subr.mxu0 0.0
        %1644 = vmatpush1.msra.mxu0 0.0
        %1645 = vmatprep.subr.mxu0 0.0
        %1646 = vmatpush1.msra.mxu0 0.0
        %1647 = vmatprep.subr.mxu0 0.0
        %1648 = vmatpush1.msra.mxu0 0.0
        %1649 = vmatprep.subr.mxu0 0.0
        %1650 = vmatpush1.msra.mxu0 0.0
        %1651 = vmatprep.subr.mxu0 0.0
        %1652 = vmatpush1.msra.mxu0 0.0
        %1653 = vmatprep.subr.mxu0 0.0
        %1654 = vmatpush1.msra.mxu0 0.0
        %1655 = vmatprep.subr.mxu0 0.0
        %1656 = vmatpush1.msra.mxu0 %v1372
        %1657 = vmatprep.subr.mxu0 0.0
        %1658 = vmatpush2.msra.mxu0 0.0
        %1659 = vmatprep.subr.mxu0 0.0
        %1660 = vmatpush2.msra.mxu0 0.0
        %1661 = vmatprep.subr.mxu0 0.0
        %1662 = vmatpush2.msra.mxu0 0.0
        %1663 = vmatprep.subr.mxu0 0.0
        %1664 = vmatpush2.msra.mxu0 0.0
        %1665 = vmatprep.subr.mxu0 0.0
        %1666 = vmatpush2.msra.mxu0 0.0
        %1667 = vmatprep.subr.mxu0 0.0
        %1668 = vmatpush2.msra.mxu0 0.0
        %1669 = vmatprep.subr.mxu0 0.0
        %1670 = vmatpush2.msra.mxu0 0.0
        %1671 = vmatprep.subr.mxu0 0.0
        %1672 = vmatpush2.msra.mxu0 0.0
        %1673 = vmatprep.subr.mxu0 0.0
        %1674 = vmatpush2.msra.mxu0 0.0
        %1675 = vmatprep.subr.mxu0 0.0
        %1676 = vmatpush2.msra.mxu0 0.0
        %1677 = vmatprep.subr.mxu0 0.0
        %1678 = vmatpush2.msra.mxu0 0.0
        %1679 = vmatprep.subr.mxu0 0.0
        %1680 = vmatpush2.msra.mxu0 0.0
        %1681 = vmatprep.subr.mxu0 0.0
        %1682 = vmatpush2.msra.mxu0 0.0
        %1683 = vmatprep.subr.mxu0 0.0
        %1684 = vmatpush2.msra.mxu0 0.0
        %1685 = vmatprep.subr.mxu0 0.0
        %1686 = vmatpush2.msra.mxu0 0.0
        %1687 = vmatprep.subr.mxu0 0.0
        %1688 = vmatpush2.msra.mxu0 0.0
        %1689 = vmatprep.mubr.f32.mxu0 0.0
        %1690 = vmatmul.mubr.f32.gmra.mxu0 %v1623
        %v1691 = vpop.f32.mrf.mxu0
        %v1692 = vadd.f32 %v1619, %v1691
        %v1693 = vpop.f32.mrf.mxu0
        %1694 = vdwg.mxu0
        %1695 = vrot.lane.b32.xlu0 %v1025, 112
        %v1696 = vpop.permute.xlu0 %1695
        %1697 = vrot.lane.b32.xlu0 %v1112, 112
        %v1698 = vpop.permute.xlu0 %1697
        %1699 = vrot.lane.b32.xlu0 %v1117, 112
        %v1700 = vpop.permute.xlu0 %1699
        %v1701 = vsel %vm1206, %v1696, 0
        %v1703 = vsel %vm1206, %v1698, 0
        %v1705 = vsel %vm1206, %v1700, 0
        %1707 = vmatprep.subr.mxu0 0.0
        %1708 = vmatpush1.xpose.msra.mxu0 0.0
        %1709 = vmatprep.subr.mxu0 0.0
        %1710 = vmatpush1.xpose.msra.mxu0 0.0
        %1711 = vmatprep.subr.mxu0 0.0
        %1712 = vmatpush1.xpose.msra.mxu0 0.0
        %1713 = vmatprep.subr.mxu0 0.0
        %1714 = vmatpush1.xpose.msra.mxu0 0.0
        %1715 = vmatprep.subr.mxu0 0.0
        %1716 = vmatpush1.xpose.msra.mxu0 0.0
        %1717 = vmatprep.subr.mxu0 0.0
        %1718 = vmatpush1.xpose.msra.mxu0 0.0
        %1719 = vmatprep.subr.mxu0 0.0
        %1720 = vmatpush1.xpose.msra.mxu0 0.0
        %1721 = vmatprep.subr.mxu0 0.0
        %1722 = vmatpush1.xpose.msra.mxu0 0.0
        %1723 = vmatprep.subr.mxu0 0.0
        %1724 = vmatpush1.xpose.msra.mxu0 0.0
        %1725 = vmatprep.subr.mxu0 0.0
        %1726 = vmatpush1.xpose.msra.mxu0 0.0
        %1727 = vmatprep.subr.mxu0 0.0
        %1728 = vmatpush1.xpose.msra.mxu0 0.0
        %1729 = vmatprep.subr.mxu0 0.0
        %1730 = vmatpush1.xpose.msra.mxu0 0.0
        %1731 = vmatprep.subr.mxu0 0.0
        %1732 = vmatpush1.xpose.msra.mxu0 0.0
        %1733 = vmatprep.subr.mxu0 0.0
        %1734 = vmatpush1.xpose.msra.mxu0 0.0
        %1735 = vmatprep.subr.mxu0 0.0
        %1736 = vmatpush1.xpose.msra.mxu0 %v1705
        %1737 = vmatprep.subr.mxu0 0.0
        %1738 = vmatpush1.xpose.msra.mxu0 %v1703
        %1739 = vmatprep.subr.mxu0 0.0
        %1740 = vmatpush2.xpose.msra.mxu0 0.0
        %1741 = vmatprep.subr.mxu0 0.0
        %1742 = vmatpush2.xpose.msra.mxu0 0.0
        %1743 = vmatprep.subr.mxu0 0.0
        %1744 = vmatpush2.xpose.msra.mxu0 0.0
        %1745 = vmatprep.subr.mxu0 0.0
        %1746 = vmatpush2.xpose.msra.mxu0 0.0
        %1747 = vmatprep.subr.mxu0 0.0
        %1748 = vmatpush2.xpose.msra.mxu0 0.0
        %1749 = vmatprep.subr.mxu0 0.0
        %1750 = vmatpush2.xpose.msra.mxu0 0.0
        %1751 = vmatprep.subr.mxu0 0.0
        %1752 = vmatpush2.xpose.msra.mxu0 0.0
        %1753 = vmatprep.subr.mxu0 0.0
        %1754 = vmatpush2.xpose.msra.mxu0 0.0
        %1755 = vmatprep.subr.mxu0 0.0
        %1756 = vmatpush2.xpose.msra.mxu0 0.0
        %1757 = vmatprep.subr.mxu0 0.0
        %1758 = vmatpush2.xpose.msra.mxu0 0.0
        %1759 = vmatprep.subr.mxu0 0.0
        %1760 = vmatpush2.xpose.msra.mxu0 0.0
        %1761 = vmatprep.subr.mxu0 0.0
        %1762 = vmatpush2.xpose.msra.mxu0 0.0
        %1763 = vmatprep.subr.mxu0 0.0
        %1764 = vmatpush2.xpose.msra.mxu0 0.0
        %1765 = vmatprep.subr.mxu0 0.0
        %1766 = vmatpush2.xpose.msra.mxu0 0.0
        %1767 = vmatprep.subr.mxu0 0.0
        %1768 = vmatpush2.xpose.msra.mxu0 0.0
        %1769 = vmatprep.subr.mxu0 0.0
        %1770 = vmatpush2.xpose.msra.mxu0 0.0
        %1771 = vmatprep.mubr.f32.mxu0 0.0
        %1772 = vmatmul.mubr.f32.gmra.mxu0 %v1701
        %v1773 = vpop.f32.mrf.mxu0
        %v1774 = vadd.f32 0.0, %v1773
        %v1775 = vpop.f32.mrf.mxu0
        %1776 = vdwg.mxu0
        %v1777 = vmul.f32 %v1774, 0.35355338
        %v1778 = vsel %vm1287, %v1777, -inf
        %1779 = vmax.xlane.f32.xlu0 %v1778
        %v1780 = vpop.xlane.xlu0 %1779
        %v1781 = vsub.f32 %v1777, %v1780
        %v1782 = vmul.f32 %v1781, 1.442695
        %v1783 = vpow.pop %v1782
        %v1784 = vsel %vm1287, %v1783, 0.0
        %1785 = vadd.xlane.f32.xlu0 %v1784
        %v1786 = vpop.xlane.xlu0 %1785
        %v1787 = vrcp.pop %v1786
        %v1788 = vmul.f32 %v1783, %v1787
        %1789 = vrot.lane.b32.xlu0 %v1198, 112
        %v1790 = vpop.permute.xlu0 %1789
        %1791 = vrot.lane.b32.xlu0 %v1203, 112
        %v1792 = vpop.permute.xlu0 %1791
        %v1796 = vsel %vm1287, %v1788, 0
        %1798 = vmatprep.subr.mxu0 0.0
        %1799 = vmatpush1.msra.mxu0 0.0
        %1800 = vmatprep.subr.mxu0 0.0
        %1801 = vmatpush1.msra.mxu0 0.0
        %1802 = vmatprep.subr.mxu0 0.0
        %1803 = vmatpush1.msra.mxu0 0.0
        %1804 = vmatprep.subr.mxu0 0.0
        %1805 = vmatpush1.msra.mxu0 0.0
        %1806 = vmatprep.subr.mxu0 0.0
        %1807 = vmatpush1.msra.mxu0 0.0
        %1808 = vmatprep.subr.mxu0 0.0
        %1809 = vmatpush1.msra.mxu0 0.0
        %1810 = vmatprep.subr.mxu0 0.0
        %1811 = vmatpush1.msra.mxu0 0.0
        %1812 = vmatprep.subr.mxu0 0.0
        %1813 = vmatpush1.msra.mxu0 0.0
        %1814 = vmatprep.subr.mxu0 0.0
        %1815 = vmatpush1.msra.mxu0 0.0
        %1816 = vmatprep.subr.mxu0 0.0
        %1817 = vmatpush1.msra.mxu0 0.0
        %1818 = vmatprep.subr.mxu0 0.0
        %1819 = vmatpush1.msra.mxu0 0.0
        %1820 = vmatprep.subr.mxu0 0.0
        %1821 = vmatpush1.msra.mxu0 0.0
        %1822 = vmatprep.subr.mxu0 0.0
        %1823 = vmatpush1.msra.mxu0 0.0
        %1824 = vmatprep.subr.mxu0 0.0
        %1825 = vmatpush1.msra.mxu0 0.0
        %1826 = vmatprep.subr.mxu0 0.0
        %1827 = vmatpush1.msra.mxu0 %v1792
        %1828 = vmatprep.subr.mxu0 0.0
        %1829 = vmatpush1.msra.mxu0 %v1790
        %1830 = vmatprep.subr.mxu0 0.0
        %1831 = vmatpush2.msra.mxu0 0.0
        %1832 = vmatprep.subr.mxu0 0.0
        %1833 = vmatpush2.msra.mxu0 0.0
        %1834 = vmatprep.subr.mxu0 0.0
        %1835 = vmatpush2.msra.mxu0 0.0
        %1836 = vmatprep.subr.mxu0 0.0
        %1837 = vmatpush2.msra.mxu0 0.0
        %1838 = vmatprep.subr.mxu0 0.0
        %1839 = vmatpush2.msra.mxu0 0.0
        %1840 = vmatprep.subr.mxu0 0.0
        %1841 = vmatpush2.msra.mxu0 0.0
        %1842 = vmatprep.subr.mxu0 0.0
        %1843 = vmatpush2.msra.mxu0 0.0
        %1844 = vmatprep.subr.mxu0 0.0
        %1845 = vmatpush2.msra.mxu0 0.0
        %1846 = vmatprep.subr.mxu0 0.0
        %1847 = vmatpush2.msra.mxu0 0.0
        %1848 = vmatprep.subr.mxu0 0.0
        %1849 = vmatpush2.msra.mxu0 0.0
        %1850 = vmatprep.subr.mxu0 0.0
        %1851 = vmatpush2.msra.mxu0 0.0
        %1852 = vmatprep.subr.mxu0 0.0
        %1853 = vmatpush2.msra.mxu0 0.0
        %1854 = vmatprep.subr.mxu0 0.0
        %1855 = vmatpush2.msra.mxu0 0.0
        %1856 = vmatprep.subr.mxu0 0.0
        %1857 = vmatpush2.msra.mxu0 0.0
        %1858 = vmatprep.subr.mxu0 0.0
        %1859 = vmatpush2.msra.mxu0 0.0
        %1860 = vmatprep.subr.mxu0 0.0
        %1861 = vmatpush2.msra.mxu0 0.0
        %1862 = vmatprep.mubr.f32.mxu0 0.0
        %1863 = vmatmul.mubr.f32.gmra.mxu0 %v1796
        %v1864 = vpop.f32.mrf.mxu0
        %v1865 = vadd.f32 0.0, %v1864
        %v1866 = vpop.f32.mrf.mxu0
        %1867 = vdwg.mxu0
        %v1868 = vld [vmem:[#allocation11 + $0x10] sm:$0xff]
        %v1870 = vsel %vm1206, %v1865, 0
        %1872 = vmatprep.subr.mxu0 0.0
        %1873 = vmatpush1.msra.mxu0 0.0
        %1874 = vmatprep.subr.mxu0 0.0
        %1875 = vmatpush1.msra.mxu0 0.0
        %1876 = vmatprep.subr.mxu0 0.0
        %1877 = vmatpush1.msra.mxu0 0.0
        %1878 = vmatprep.subr.mxu0 0.0
        %1879 = vmatpush1.msra.mxu0 0.0
        %1880 = vmatprep.subr.mxu0 0.0
        %1881 = vmatpush1.msra.mxu0 0.0
        %1882 = vmatprep.subr.mxu0 0.0
        %1883 = vmatpush1.msra.mxu0 0.0
        %1884 = vmatprep.subr.mxu0 0.0
        %1885 = vmatpush1.msra.mxu0 0.0
        %1886 = vmatprep.subr.mxu0 0.0
        %1887 = vmatpush1.msra.mxu0 0.0
        %1888 = vmatprep.subr.mxu0 0.0
        %1889 = vmatpush1.msra.mxu0 0.0
        %1890 = vmatprep.subr.mxu0 0.0
        %1891 = vmatpush1.msra.mxu0 0.0
        %1892 = vmatprep.subr.mxu0 0.0
        %1893 = vmatpush1.msra.mxu0 0.0
        %1894 = vmatprep.subr.mxu0 0.0
        %1895 = vmatpush1.msra.mxu0 0.0
        %1896 = vmatprep.subr.mxu0 0.0
        %1897 = vmatpush1.msra.mxu0 0.0
        %1898 = vmatprep.subr.mxu0 0.0
        %1899 = vmatpush1.msra.mxu0 0.0
        %1900 = vmatprep.subr.mxu0 0.0
        %1901 = vmatpush1.msra.mxu0 0.0
        %1902 = vmatprep.subr.mxu0 0.0
        %1903 = vmatpush1.msra.mxu0 %v1868
        %1904 = vmatprep.subr.mxu0 0.0
        %1905 = vmatpush2.msra.mxu0 0.0
        %1906 = vmatprep.subr.mxu0 0.0
        %1907 = vmatpush2.msra.mxu0 0.0
        %1908 = vmatprep.subr.mxu0 0.0
        %1909 = vmatpush2.msra.mxu0 0.0
        %1910 = vmatprep.subr.mxu0 0.0
        %1911 = vmatpush2.msra.mxu0 0.0
        %1912 = vmatprep.subr.mxu0 0.0
        %1913 = vmatpush2.msra.mxu0 0.0
        %1914 = vmatprep.subr.mxu0 0.0
        %1915 = vmatpush2.msra.mxu0 0.0
        %1916 = vmatprep.subr.mxu0 0.0
        %1917 = vmatpush2.msra.mxu0 0.0
        %1918 = vmatprep.subr.mxu0 0.0
        %1919 = vmatpush2.msra.mxu0 0.0
        %1920 = vmatprep.subr.mxu0 0.0
        %1921 = vmatpush2.msra.mxu0 0.0
        %1922 = vmatprep.subr.mxu0 0.0
        %1923 = vmatpush2.msra.mxu0 0.0
        %1924 = vmatprep.subr.mxu0 0.0
        %1925 = vmatpush2.msra.mxu0 0.0
        %1926 = vmatprep.subr.mxu0 0.0
        %1927 = vmatpush2.msra.mxu0 0.0
        %1928 = vmatprep.subr.mxu0 0.0
        %1929 = vmatpush2.msra.mxu0 0.0
        %1930 = vmatprep.subr.mxu0 0.0
        %1931 = vmatpush2.msra.mxu0 0.0
        %1932 = vmatprep.subr.mxu0 0.0
        %1933 = vmatpush2.msra.mxu0 0.0
        %1934 = vmatprep.subr.mxu0 0.0
        %1935 = vmatpush2.msra.mxu0 0.0
        %1936 = vmatprep.mubr.f32.mxu0 0.0
        %1937 = vmatmul.mubr.f32.gmra.mxu0 %v1870
        %v1938 = vpop.f32.mrf.mxu0
        %v1939 = vadd.f32 0.0, %v1938
        %v1940 = vpop.f32.mrf.mxu0
        %1941 = vdwg.mxu0
        %v1942 = vadd.f32 %v1692, %v1939
        %1943 = vrot.lane.b32.xlu0 %v1025, 104
        %v1944 = vpop.permute.xlu0 %1943
        %1945 = vrot.lane.b32.xlu0 %v1112, 104
        %v1946 = vpop.permute.xlu0 %1945
        %1947 = vrot.lane.b32.xlu0 %v1117, 104
        %v1948 = vpop.permute.xlu0 %1947
        %v1949 = vsel %vm1206, %v1944, 0
        %v1951 = vsel %vm1206, %v1946, 0
        %v1953 = vsel %vm1206, %v1948, 0
        %1955 = vmatprep.subr.mxu0 0.0
        %1956 = vmatpush1.xpose.msra.mxu0 0.0
        %1957 = vmatprep.subr.mxu0 0.0
        %1958 = vmatpush1.xpose.msra.mxu0 0.0
        %1959 = vmatprep.subr.mxu0 0.0
        %1960 = vmatpush1.xpose.msra.mxu0 0.0
        %1961 = vmatprep.subr.mxu0 0.0
        %1962 = vmatpush1.xpose.msra.mxu0 0.0
        %1963 = vmatprep.subr.mxu0 0.0
        %1964 = vmatpush1.xpose.msra.mxu0 0.0
        %1965 = vmatprep.subr.mxu0 0.0
        %1966 = vmatpush1.xpose.msra.mxu0 0.0
        %1967 = vmatprep.subr.mxu0 0.0
        %1968 = vmatpush1.xpose.msra.mxu0 0.0
        %1969 = vmatprep.subr.mxu0 0.0
        %1970 = vmatpush1.xpose.msra.mxu0 0.0
        %1971 = vmatprep.subr.mxu0 0.0
        %1972 = vmatpush1.xpose.msra.mxu0 0.0
        %1973 = vmatprep.subr.mxu0 0.0
        %1974 = vmatpush1.xpose.msra.mxu0 0.0
        %1975 = vmatprep.subr.mxu0 0.0
        %1976 = vmatpush1.xpose.msra.mxu0 0.0
        %1977 = vmatprep.subr.mxu0 0.0
        %1978 = vmatpush1.xpose.msra.mxu0 0.0
        %1979 = vmatprep.subr.mxu0 0.0
        %1980 = vmatpush1.xpose.msra.mxu0 0.0
        %1981 = vmatprep.subr.mxu0 0.0
        %1982 = vmatpush1.xpose.msra.mxu0 0.0
        %1983 = vmatprep.subr.mxu0 0.0
        %1984 = vmatpush1.xpose.msra.mxu0 %v1953
        %1985 = vmatprep.subr.mxu0 0.0
        %1986 = vmatpush1.xpose.msra.mxu0 %v1951
        %1987 = vmatprep.subr.mxu0 0.0
        %1988 = vmatpush2.xpose.msra.mxu0 0.0
        %1989 = vmatprep.subr.mxu0 0.0
        %1990 = vmatpush2.xpose.msra.mxu0 0.0
        %1991 = vmatprep.subr.mxu0 0.0
        %1992 = vmatpush2.xpose.msra.mxu0 0.0
        %1993 = vmatprep.subr.mxu0 0.0
        %1994 = vmatpush2.xpose.msra.mxu0 0.0
        %1995 = vmatprep.subr.mxu0 0.0
        %1996 = vmatpush2.xpose.msra.mxu0 0.0
        %1997 = vmatprep.subr.mxu0 0.0
        %1998 = vmatpush2.xpose.msra.mxu0 0.0
        %1999 = vmatprep.subr.mxu0 0.0
        %2000 = vmatpush2.xpose.msra.mxu0 0.0
        %2001 = vmatprep.subr.mxu0 0.0
        %2002 = vmatpush2.xpose.msra.mxu0 0.0
        %2003 = vmatprep.subr.mxu0 0.0
        %2004 = vmatpush2.xpose.msra.mxu0 0.0
        %2005 = vmatprep.subr.mxu0 0.0
        %2006 = vmatpush2.xpose.msra.mxu0 0.0
        %2007 = vmatprep.subr.mxu0 0.0
        %2008 = vmatpush2.xpose.msra.mxu0 0.0
        %2009 = vmatprep.subr.mxu0 0.0
        %2010 = vmatpush2.xpose.msra.mxu0 0.0
        %2011 = vmatprep.subr.mxu0 0.0
        %2012 = vmatpush2.xpose.msra.mxu0 0.0
        %2013 = vmatprep.subr.mxu0 0.0
        %2014 = vmatpush2.xpose.msra.mxu0 0.0
        %2015 = vmatprep.subr.mxu0 0.0
        %2016 = vmatpush2.xpose.msra.mxu0 0.0
        %2017 = vmatprep.subr.mxu0 0.0
        %2018 = vmatpush2.xpose.msra.mxu0 0.0
        %2019 = vmatprep.mubr.f32.mxu0 0.0
        %2020 = vmatmul.mubr.f32.gmra.mxu0 %v1949
        %v2021 = vpop.f32.mrf.mxu0
        %v2022 = vadd.f32 0.0, %v2021
        %v2023 = vpop.f32.mrf.mxu0
        %2024 = vdwg.mxu0
        %v2025 = vmul.f32 %v2022, 0.35355338
        %v2026 = vsel %vm1287, %v2025, -inf
        %2027 = vmax.xlane.f32.xlu0 %v2026
        %v2028 = vpop.xlane.xlu0 %2027
        %v2029 = vsub.f32 %v2025, %v2028
        %v2030 = vmul.f32 %v2029, 1.442695
        %v2031 = vpow.pop %v2030
        %v2032 = vsel %vm1287, %v2031, 0.0
        %2033 = vadd.xlane.f32.xlu0 %v2032
        %v2034 = vpop.xlane.xlu0 %2033
        %v2035 = vrcp.pop %v2034
        %v2036 = vmul.f32 %v2031, %v2035
        %2037 = vrot.lane.b32.xlu0 %v1198, 104
        %v2038 = vpop.permute.xlu0 %2037
        %2039 = vrot.lane.b32.xlu0 %v1203, 104
        %v2040 = vpop.permute.xlu0 %2039
        %v2044 = vsel %vm1287, %v2036, 0
        %2046 = vmatprep.subr.mxu0 0.0
        %2047 = vmatpush1.msra.mxu0 0.0
        %2048 = vmatprep.subr.mxu0 0.0
        %2049 = vmatpush1.msra.mxu0 0.0
        %2050 = vmatprep.subr.mxu0 0.0
        %2051 = vmatpush1.msra.mxu0 0.0
        %2052 = vmatprep.subr.mxu0 0.0
        %2053 = vmatpush1.msra.mxu0 0.0
        %2054 = vmatprep.subr.mxu0 0.0
        %2055 = vmatpush1.msra.mxu0 0.0
        %2056 = vmatprep.subr.mxu0 0.0
        %2057 = vmatpush1.msra.mxu0 0.0
        %2058 = vmatprep.subr.mxu0 0.0
        %2059 = vmatpush1.msra.mxu0 0.0
        %2060 = vmatprep.subr.mxu0 0.0
        %2061 = vmatpush1.msra.mxu0 0.0
        %2062 = vmatprep.subr.mxu0 0.0
        %2063 = vmatpush1.msra.mxu0 0.0
        %2064 = vmatprep.subr.mxu0 0.0
        %2065 = vmatpush1.msra.mxu0 0.0
        %2066 = vmatprep.subr.mxu0 0.0
        %2067 = vmatpush1.msra.mxu0 0.0
        %2068 = vmatprep.subr.mxu0 0.0
        %2069 = vmatpush1.msra.mxu0 0.0
        %2070 = vmatprep.subr.mxu0 0.0
        %2071 = vmatpush1.msra.mxu0 0.0
        %2072 = vmatprep.subr.mxu0 0.0
        %2073 = vmatpush1.msra.mxu0 0.0
        %2074 = vmatprep.subr.mxu0 0.0
        %2075 = vmatpush1.msra.mxu0 %v2040
        %2076 = vmatprep.subr.mxu0 0.0
        %2077 = vmatpush1.msra.mxu0 %v2038
        %2078 = vmatprep.subr.mxu0 0.0
        %2079 = vmatpush2.msra.mxu0 0.0
        %2080 = vmatprep.subr.mxu0 0.0
        %2081 = vmatpush2.msra.mxu0 0.0
        %2082 = vmatprep.subr.mxu0 0.0
        %2083 = vmatpush2.msra.mxu0 0.0
        %2084 = vmatprep.subr.mxu0 0.0
        %2085 = vmatpush2.msra.mxu0 0.0
        %2086 = vmatprep.subr.mxu0 0.0
        %2087 = vmatpush2.msra.mxu0 0.0
        %2088 = vmatprep.subr.mxu0 0.0
        %2089 = vmatpush2.msra.mxu0 0.0
        %2090 = vmatprep.subr.mxu0 0.0
        %2091 = vmatpush2.msra.mxu0 0.0
        %2092 = vmatprep.subr.mxu0 0.0
        %2093 = vmatpush2.msra.mxu0 0.0
        %2094 = vmatprep.subr.mxu0 0.0
        %2095 = vmatpush2.msra.mxu0 0.0
        %2096 = vmatprep.subr.mxu0 0.0
        %2097 = vmatpush2.msra.mxu0 0.0
        %2098 = vmatprep.subr.mxu0 0.0
        %2099 = vmatpush2.msra.mxu0 0.0
        %2100 = vmatprep.subr.mxu0 0.0
        %2101 = vmatpush2.msra.mxu0 0.0
        %2102 = vmatprep.subr.mxu0 0.0
        %2103 = vmatpush2.msra.mxu0 0.0
        %2104 = vmatprep.subr.mxu0 0.0
        %2105 = vmatpush2.msra.mxu0 0.0
        %2106 = vmatprep.subr.mxu0 0.0
        %2107 = vmatpush2.msra.mxu0 0.0
        %2108 = vmatprep.subr.mxu0 0.0
        %2109 = vmatpush2.msra.mxu0 0.0
        %2110 = vmatprep.mubr.f32.mxu0 0.0
        %2111 = vmatmul.mubr.f32.gmra.mxu0 %v2044
        %v2112 = vpop.f32.mrf.mxu0
        %v2113 = vadd.f32 0.0, %v2112
        %v2114 = vpop.f32.mrf.mxu0
        %2115 = vdwg.mxu0
        %v2116 = vld [vmem:[#allocation11 + $0x18] sm:$0xff]
        %v2118 = vsel %vm1206, %v2113, 0
        %2120 = vmatprep.subr.mxu0 0.0
        %2121 = vmatpush1.msra.mxu0 0.0
        %2122 = vmatprep.subr.mxu0 0.0
        %2123 = vmatpush1.msra.mxu0 0.0
        %2124 = vmatprep.subr.mxu0 0.0
        %2125 = vmatpush1.msra.mxu0 0.0
        %2126 = vmatprep.subr.mxu0 0.0
        %2127 = vmatpush1.msra.mxu0 0.0
        %2128 = vmatprep.subr.mxu0 0.0
        %2129 = vmatpush1.msra.mxu0 0.0
        %2130 = vmatprep.subr.mxu0 0.0
        %2131 = vmatpush1.msra.mxu0 0.0
        %2132 = vmatprep.subr.mxu0 0.0
        %2133 = vmatpush1.msra.mxu0 0.0
        %2134 = vmatprep.subr.mxu0 0.0
        %2135 = vmatpush1.msra.mxu0 0.0
        %2136 = vmatprep.subr.mxu0 0.0
        %2137 = vmatpush1.msra.mxu0 0.0
        %2138 = vmatprep.subr.mxu0 0.0
        %2139 = vmatpush1.msra.mxu0 0.0
        %2140 = vmatprep.subr.mxu0 0.0
        %2141 = vmatpush1.msra.mxu0 0.0
        %2142 = vmatprep.subr.mxu0 0.0
        %2143 = vmatpush1.msra.mxu0 0.0
        %2144 = vmatprep.subr.mxu0 0.0
        %2145 = vmatpush1.msra.mxu0 0.0
        %2146 = vmatprep.subr.mxu0 0.0
        %2147 = vmatpush1.msra.mxu0 0.0
        %2148 = vmatprep.subr.mxu0 0.0
        %2149 = vmatpush1.msra.mxu0 0.0
        %2150 = vmatprep.subr.mxu0 0.0
        %2151 = vmatpush1.msra.mxu0 %v2116
        %2152 = vmatprep.subr.mxu0 0.0
        %2153 = vmatpush2.msra.mxu0 0.0
        %2154 = vmatprep.subr.mxu0 0.0
        %2155 = vmatpush2.msra.mxu0 0.0
        %2156 = vmatprep.subr.mxu0 0.0
        %2157 = vmatpush2.msra.mxu0 0.0
        %2158 = vmatprep.subr.mxu0 0.0
        %2159 = vmatpush2.msra.mxu0 0.0
        %2160 = vmatprep.subr.mxu0 0.0
        %2161 = vmatpush2.msra.mxu0 0.0
        %2162 = vmatprep.subr.mxu0 0.0
        %2163 = vmatpush2.msra.mxu0 0.0
        %2164 = vmatprep.subr.mxu0 0.0
        %2165 = vmatpush2.msra.mxu0 0.0
        %2166 = vmatprep.subr.mxu0 0.0
        %2167 = vmatpush2.msra.mxu0 0.0
        %2168 = vmatprep.subr.mxu0 0.0
        %2169 = vmatpush2.msra.mxu0 0.0
        %2170 = vmatprep.subr.mxu0 0.0
        %2171 = vmatpush2.msra.mxu0 0.0
        %2172 = vmatprep.subr.mxu0 0.0
        %2173 = vmatpush2.msra.mxu0 0.0
        %2174 = vmatprep.subr.mxu0 0.0
        %2175 = vmatpush2.msra.mxu0 0.0
        %2176 = vmatprep.subr.mxu0 0.0
        %2177 = vmatpush2.msra.mxu0 0.0
        %2178 = vmatprep.subr.mxu0 0.0
        %2179 = vmatpush2.msra.mxu0 0.0
        %2180 = vmatprep.subr.mxu0 0.0
        %2181 = vmatpush2.msra.mxu0 0.0
        %2182 = vmatprep.subr.mxu0 0.0
        %2183 = vmatpush2.msra.mxu0 0.0
        %2184 = vmatprep.mubr.f32.mxu0 0.0
        %2185 = vmatmul.mubr.f32.gmra.mxu0 %v2118
        %v2186 = vpop.f32.mrf.mxu0
        %v2187 = vadd.f32 0.0, %v2186
        %v2188 = vpop.f32.mrf.mxu0
        %2189 = vdwg.mxu0
        %v2190 = vadd.f32 %v1942, %v2187
        %v2191 = vld [vmem:[#allocation13] sm:$0x1]
        %v2193 = vlaneseq
        %v2194 = vshrl.u32 %v2193, 7
        %v2195 = vsub.s32 0, %v2194
        %v2196 = vrot.slane %v2191, %v2195
        %v2198 = vadd.f32 %v2190, %v2196
        %v2199 = vld [vmem:[#allocation14] sm:$0x1]
        %v2200 = vld [vmem:[#allocation16] sm:$0x1]
        %v2201 = vsel %vm954, %v2198, 0.0
        %2202 = vadd.xlane.f32.xlu0 %v2201
        %v2203 = vpop.xlane.xlu0 %2202
        %v2204 = vrcp.pop 32.0
        %v2205 = vmul.f32 %v2203, %v2204
        %v2206 = vsub.f32 %v2198, %v2205
        %v2207 = vmul.f32 %v2206, %v2206
        %v2208 = vsel %vm954, %v2207, 0.0
        %2209 = vadd.xlane.f32.xlu0 %v2208
        %v2210 = vpop.xlane.xlu0 %2209
        %v2211 = vmul.f32 %v2210, %v2204
        %v2212 = vadd.f32 %v2211, 1e-05
        %v2213 = vrsqrt.pop %v2212
        %v2214 = vmul.f32 %v2206, %v2213
        %v2216 = vlaneseq
        %v2217 = vshrl.u32 %v2216, 7
        %v2218 = vsub.s32 0, %v2217
        %v2219 = vrot.slane %v2199, %v2218
        %v2221 = vmul.f32 %v2214, %v2219
        %v2223 = vlaneseq
        %v2224 = vshrl.u32 %v2223, 7
        %v2225 = vsub.s32 0, %v2224
        %v2226 = vrot.slane %v2200, %v2225
        %v2228 = vadd.f32 %v2221, %v2226
        %v2229 = vld [vmem:[#allocation17] sm:$0xff]
        %v2230 = vld [vmem:[#allocation17 + $0x8] sm:$0xff]
        %v2231 = vld [vmem:[#allocation17 + $0x10] sm:$0xff]
        %v2232 = vld [vmem:[#allocation17 + $0x18] sm:$0xff]
        %v2233 = vld [vmem:[#allocation19] sm:$0x1]
        %v2235 = vlaneseq
        %v2236 = vshrl.u32 %v2235, 7
        %v2237 = vsub.s32 0, %v2236
        %v2238 = vrot.slane %v2233, %v2237
        %v2241 = vsel %vm954, %v2228, 0
        %2243 = vmatprep.subr.mxu0 0.0
        %2244 = vmatpush1.msra.mxu0 0.0
        %2245 = vmatprep.subr.mxu0 0.0
        %2246 = vmatpush1.msra.mxu0 0.0
        %2247 = vmatprep.subr.mxu0 0.0
        %2248 = vmatpush1.msra.mxu0 0.0
        %2249 = vmatprep.subr.mxu0 0.0
        %2250 = vmatpush1.msra.mxu0 0.0
        %2251 = vmatprep.subr.mxu0 0.0
        %2252 = vmatpush1.msra.mxu0 0.0
        %2253 = vmatprep.subr.mxu0 0.0
        %2254 = vmatpush1.msra.mxu0 0.0
        %2255 = vmatprep.subr.mxu0 0.0
        %2256 = vmatpush1.msra.mxu0 0.0
        %2257 = vmatprep.subr.mxu0 0.0
        %2258 = vmatpush1.msra.mxu0 0.0
        %2259 = vmatprep.subr.mxu0 0.0
        %2260 = vmatpush1.msra.mxu0 0.0
        %2261 = vmatprep.subr.mxu0 0.0
        %2262 = vmatpush1.msra.mxu0 0.0
        %2263 = vmatprep.subr.mxu0 0.0
        %2264 = vmatpush1.msra.mxu0 0.0
        %2265 = vmatprep.subr.mxu0 0.0
        %2266 = vmatpush1.msra.mxu0 0.0
        %2267 = vmatprep.subr.mxu0 0.0
        %2268 = vmatpush1.msra.mxu0 %v2232
        %2269 = vmatprep.subr.mxu0 0.0
        %2270 = vmatpush1.msra.mxu0 %v2231
        %2271 = vmatprep.subr.mxu0 0.0
        %2272 = vmatpush1.msra.mxu0 %v2230
        %2273 = vmatprep.subr.mxu0 0.0
        %2274 = vmatpush1.msra.mxu0 %v2229
        %2275 = vmatprep.subr.mxu0 0.0
        %2276 = vmatpush2.msra.mxu0 0.0
        %2277 = vmatprep.subr.mxu0 0.0
        %2278 = vmatpush2.msra.mxu0 0.0
        %2279 = vmatprep.subr.mxu0 0.0
        %2280 = vmatpush2.msra.mxu0 0.0
        %2281 = vmatprep.subr.mxu0 0.0
        %2282 = vmatpush2.msra.mxu0 0.0
        %2283 = vmatprep.subr.mxu0 0.0
        %2284 = vmatpush2.msra.mxu0 0.0
        %2285 = vmatprep.subr.mxu0 0.0
        %2286 = vmatpush2.msra.mxu0 0.0
        %2287 = vmatprep.subr.mxu0 0.0
        %2288 = vmatpush2.msra.mxu0 0.0
        %2289 = vmatprep.subr.mxu0 0.0
        %2290 = vmatpush2.msra.mxu0 0.0
        %2291 = vmatprep.subr.mxu0 0.0
        %2292 = vmatpush2.msra.mxu0 0.0
        %2293 = vmatprep.subr.mxu0 0.0
        %2294 = vmatpush2.msra.mxu0 0.0
        %2295 = vmatprep.subr.mxu0 0.0
        %2296 = vmatpush2.msra.mxu0 0.0
        %2297 = vmatprep.subr.mxu0 0.0
        %2298 = vmatpush2.msra.mxu0 0.0
        %2299 = vmatprep.subr.mxu0 0.0
        %2300 = vmatpush2.msra.mxu0 0.0
        %2301 = vmatprep.subr.mxu0 0.0
        %2302 = vmatpush2.msra.mxu0 0.0
        %2303 = vmatprep.subr.mxu0 0.0
        %2304 = vmatpush2.msra.mxu0 0.0
        %2305 = vmatprep.subr.mxu0 0.0
        %2306 = vmatpush2.msra.mxu0 0.0
        %2307 = vmatprep.mubr.f32.mxu0 0.0
        %2308 = vmatmul.mubr.f32.gmra.mxu0 %v2241
        %v2309 = vpop.f32.mrf.mxu0
        %v2310 = vadd.f32 %v2238, %v2309
        %v2311 = vpop.f32.mrf.mxu0
        %2312 = vdwg.mxu0
        %v2313 = vmax.f32 %v2310, 0.0
        %v2314 = vld [vmem:[%s14] sm:$0xff]
        %v2315 = vld [vmem:[%s14 + $0x8] sm:$0xff]
        %v2316 = vld [vmem:[%s14 + $0x10] sm:$0xff]
        %v2317 = vld [vmem:[%s14 + $0x18] sm:$0xff]
        %v2318 = vld [vmem:[%s14 + $0x20] sm:$0xff]
        %v2319 = vld [vmem:[%s14 + $0x28] sm:$0xff]
        %v2320 = vld [vmem:[%s14 + $0x30] sm:$0xff]
        %v2321 = vld [vmem:[%s14 + $0x38] sm:$0xff]
        %v2322 = vld [vmem:[#allocation20] sm:$0x1]
        %v2324 = vlaneseq
        %v2325 = vshrl.u32 %v2324, 7
        %v2326 = vsub.s32 0, %v2325
        %v2327 = vrot.slane %v2322, %v2326
        %vm2329 = vcmask 523264
        %v2331 = vsel %vm2329, %v2313, 0
        %2333 = vmatprep.subr.mxu0 0.0
        %2334 = vmatpush1.msra.mxu0 0.0
        %2335 = vmatprep.subr.mxu0 0.0
        %2336 = vmatpush1.msra.mxu0 0.0
        %2337 = vmatprep.subr.mxu0 0.0
        %2338 = vmatpush1.msra.mxu0 0.0
        %2339 = vmatprep.subr.mxu0 0.0
        %2340 = vmatpush1.msra.mxu0 0.0
        %2341 = vmatprep.subr.mxu0 0.0
        %2342 = vmatpush1.msra.mxu0 0.0
        %2343 = vmatprep.subr.mxu0 0.0
        %2344 = vmatpush1.msra.mxu0 0.0
        %2345 = vmatprep.subr.mxu0 0.0
        %2346 = vmatpush1.msra.mxu0 0.0
        %2347 = vmatprep.subr.mxu0 0.0
        %2348 = vmatpush1.msra.mxu0 0.0
        %2349 = vmatprep.subr.mxu0 0.0
        %2350 = vmatpush1.msra.mxu0 %v2321
        %2351 = vmatprep.subr.mxu0 0.0
        %2352 = vmatpush1.msra.mxu0 %v2320
        %2353 = vmatprep.subr.mxu0 0.0
        %2354 = vmatpush1.msra.mxu0 %v2319
        %2355 = vmatprep.subr.mxu0 0.0
        %2356 = vmatpush1.msra.mxu0 %v2318
        %2357 = vmatprep.subr.mxu0 0.0
        %2358 = vmatpush1.msra.mxu0 %v2317
        %2359 = vmatprep.subr.mxu0 0.0
        %2360 = vmatpush1.msra.mxu0 %v2316
        %2361 = vmatprep.subr.mxu0 0.0
        %2362 = vmatpush1.msra.mxu0 %v2315
        %2363 = vmatprep.subr.mxu0 0.0
        %2364 = vmatpush1.msra.mxu0 %v2314
        %2365 = vmatprep.subr.mxu0 0.0
        %2366 = vmatpush2.msra.mxu0 0.0
        %2367 = vmatprep.subr.mxu0 0.0
        %2368 = vmatpush2.msra.mxu0 0.0
        %2369 = vmatprep.subr.mxu0 0.0
        %2370 = vmatpush2.msra.mxu0 0.0
        %2371 = vmatprep.subr.mxu0 0.0
        %2372 = vmatpush2.msra.mxu0 0.0
        %2373 = vmatprep.subr.mxu0 0.0
        %2374 = vmatpush2.msra.mxu0 0.0
        %2375 = vmatprep.subr.mxu0 0.0
        %2376 = vmatpush2.msra.mxu0 0.0
        %2377 = vmatprep.subr.mxu0 0.0
        %2378 = vmatpush2.msra.mxu0 0.0
        %2379 = vmatprep.subr.mxu0 0.0
        %2380 = vmatpush2.msra.mxu0 0.0
        %2381 = vmatprep.subr.mxu0 0.0
        %2382 = vmatpush2.msra.mxu0 0.0
        %2383 = vmatprep.subr.mxu0 0.0
        %2384 = vmatpush2.msra.mxu0 0.0
        %2385 = vmatprep.subr.mxu0 0.0
        %2386 = vmatpush2.msra.mxu0 0.0
        %2387 = vmatprep.subr.mxu0 0.0
        %2388 = vmatpush2.msra.mxu0 0.0
        %2389 = vmatprep.subr.mxu0 0.0
        %2390 = vmatpush2.msra.mxu0 0.0
        %2391 = vmatprep.subr.mxu0 0.0
        %2392 = vmatpush2.msra.mxu0 0.0
        %2393 = vmatprep.subr.mxu0 0.0
        %2394 = vmatpush2.msra.mxu0 0.0
        %2395 = vmatprep.subr.mxu0 0.0
        %2396 = vmatpush2.msra.mxu0 0.0
        %2397 = vmatprep.mubr.f32.mxu0 0.0
        %2398 = vmatmul.mubr.f32.gmra.mxu0 %v2331
        %v2399 = vpop.f32.mrf.mxu0
        %v2400 = vadd.f32 %v2327, %v2399
        %v2401 = vpop.f32.mrf.mxu0
        %2402 = vdwg.mxu0
        %v2403 = vadd.f32 %v2228, %v2400
        %v2404 = vld [vmem:[#allocation22] sm:$0x1]
        %v2405 = vld [vmem:[#allocation23] sm:$0x1]
        %v2406 = vsel %vm954, %v2403, 0.0
        %2407 = vadd.xlane.f32.xlu0 %v2406
        %v2408 = vpop.xlane.xlu0 %2407
        %v2409 = vmul.f32 %v2408, %v2204
        %v2410 = vsub.f32 %v2403, %v2409
        %v2411 = vmul.f32 %v2410, %v2410
        %v2412 = vsel %vm954, %v2411, 0.0
        %2413 = vadd.xlane.f32.xlu0 %v2412
        %v2414 = vpop.xlane.xlu0 %2413
        %v2415 = vmul.f32 %v2414, %v2204
        %v2416 = vadd.f32 %v2415, 1e-05
        %v2417 = vrsqrt.pop %v2416
        %v2418 = vmul.f32 %v2410, %v2417
        %v2420 = vlaneseq
        %v2421 = vshrl.u32 %v2420, 7
        %v2422 = vsub.s32 0, %v2421
        %v2423 = vrot.slane %v2404, %v2422
        %v2425 = vmul.f32 %v2418, %v2423
        %v2427 = vlaneseq
        %v2428 = vshrl.u32 %v2427, 7
        %v2429 = vsub.s32 0, %v2428
        %v2430 = vrot.slane %v2405, %v2429
        %v2432 = vadd.f32 %v2425, %v2430
        %v2433 = vadd.f32 %v2432, %v940
        %s2434 = scalar_lea.vmem %s2, 32
        %v2435 = vld [vmem:[%s2434] sm:$0xff]
        %v2436 = vld [vmem:[%s2434 + $0x8] sm:$0xff]
        %v2437 = vld [vmem:[%s2434 + $0x10] sm:$0xff]
        %v2438 = vld [vmem:[%s2434 + $0x18] sm:$0xff]
        %s2439 = scalar_lea.vmem [#allocation7], 1
        %v2440 = vld [vmem:[%s2439] sm:$0x1]
        %v2442 = vlaneseq
        %v2443 = vshrl.u32 %v2442, 7
        %v2444 = vsub.s32 0, %v2443
        %v2445 = vrot.slane %v2440, %v2444
        %v2448 = vsel %vm954, %v2433, 0
        %2450 = vmatprep.subr.mxu0 0.0
        %2451 = vmatpush1.msra.mxu0 0.0
        %2452 = vmatprep.subr.mxu0 0.0
        %2453 = vmatpush1.msra.mxu0 0.0
        %2454 = vmatprep.subr.mxu0 0.0
        %2455 = vmatpush1.msra.mxu0 0.0
        %2456 = vmatprep.subr.mxu0 0.0
        %2457 = vmatpush1.msra.mxu0 0.0
        %2458 = vmatprep.subr.mxu0 0.0
        %2459 = vmatpush1.msra.mxu0 0.0
        %2460 = vmatprep.subr.mxu0 0.0
        %2461 = vmatpush1.msra.mxu0 0.0
        %2462 = vmatprep.subr.mxu0 0.0
        %2463 = vmatpush1.msra.mxu0 0.0
        %2464 = vmatprep.subr.mxu0 0.0
        %2465 = vmatpush1.msra.mxu0 0.0
        %2466 = vmatprep.subr.mxu0 0.0
        %2467 = vmatpush1.msra.mxu0 0.0
        %2468 = vmatprep.subr.mxu0 0.0
        %2469 = vmatpush1.msra.mxu0 0.0
        %2470 = vmatprep.subr.mxu0 0.0
        %2471 = vmatpush1.msra.mxu0 0.0
        %2472 = vmatprep.subr.mxu0 0.0
        %2473 = vmatpush1.msra.mxu0 0.0
        %2474 = vmatprep.subr.mxu0 0.0
        %2475 = vmatpush1.msra.mxu0 %v2438
        %2476 = vmatprep.subr.mxu0 0.0
        %2477 = vmatpush1.msra.mxu0 %v2437
        %2478 = vmatprep.subr.mxu0 0.0
        %2479 = vmatpush1.msra.mxu0 %v2436
        %2480 = vmatprep.subr.mxu0 0.0
        %2481 = vmatpush1.msra.mxu0 %v2435
        %2482 = vmatprep.subr.mxu0 0.0
        %2483 = vmatpush2.msra.mxu0 0.0
        %2484 = vmatprep.subr.mxu0 0.0
        %2485 = vmatpush2.msra.mxu0 0.0
        %2486 = vmatprep.subr.mxu0 0.0
        %2487 = vmatpush2.msra.mxu0 0.0
        %2488 = vmatprep.subr.mxu0 0.0
        %2489 = vmatpush2.msra.mxu0 0.0
        %2490 = vmatprep.subr.mxu0 0.0
        %2491 = vmatpush2.msra.mxu0 0.0
        %2492 = vmatprep.subr.mxu0 0.0
        %2493 = vmatpush2.msra.mxu0 0.0
        %2494 = vmatprep.subr.mxu0 0.0
        %2495 = vmatpush2.msra.mxu0 0.0
        %2496 = vmatprep.subr.mxu0 0.0
        %2497 = vmatpush2.msra.mxu0 0.0
        %2498 = vmatprep.subr.mxu0 0.0
        %2499 = vmatpush2.msra.mxu0 0.0
        %2500 = vmatprep.subr.mxu0 0.0
        %2501 = vmatpush2.msra.mxu0 0.0
        %2502 = vmatprep.subr.mxu0 0.0
        %2503 = vmatpush2.msra.mxu0 0.0
        %2504 = vmatprep.subr.mxu0 0.0
        %2505 = vmatpush2.msra.mxu0 0.0
        %2506 = vmatprep.subr.mxu0 0.0
        %2507 = vmatpush2.msra.mxu0 0.0
        %2508 = vmatprep.subr.mxu0 0.0
        %2509 = vmatpush2.msra.mxu0 0.0
        %2510 = vmatprep.subr.mxu0 0.0
        %2511 = vmatpush2.msra.mxu0 0.0
        %2512 = vmatprep.subr.mxu0 0.0
        %2513 = vmatpush2.msra.mxu0 0.0
        %2514 = vmatprep.mubr.f32.mxu0 0.0
        %2515 = vmatmul.mubr.f32.gmra.mxu0 %v2448
        %v2516 = vpop.f32.mrf.mxu0
        %v2517 = vadd.f32 %v2445, %v2516
        %v2518 = vpop.f32.mrf.mxu0
        %2519 = vdwg.mxu0
        %s2520 = scalar_lea.vmem %s3, 32
        %v2521 = vld [vmem:[%s2520] sm:$0xff]
        %v2522 = vld [vmem:[%s2520 + $0x8] sm:$0xff]
        %v2523 = vld [vmem:[%s2520 + $0x10] sm:$0xff]
        %v2524 = vld [vmem:[%s2520 + $0x18] sm:$0xff]
        %s2525 = scalar_lea.vmem [#allocation8], 1
        %v2526 = vld [vmem:[%s2525] sm:$0x1]
        %v2528 = vlaneseq
        %v2529 = vshrl.u32 %v2528, 7
        %v2530 = vsub.s32 0, %v2529
        %v2531 = vrot.slane %v2526, %v2530
        %2533 = vmatprep.subr.mxu0 0.0
        %2534 = vmatpush1.msra.mxu0 0.0
        %2535 = vmatprep.subr.mxu0 0.0
        %2536 = vmatpush1.msra.mxu0 0.0
        %2537 = vmatprep.subr.mxu0 0.0
        %2538 = vmatpush1.msra.mxu0 0.0
        %2539 = vmatprep.subr.mxu0 0.0
        %2540 = vmatpush1.msra.mxu0 0.0
        %2541 = vmatprep.subr.mxu0 0.0
        %2542 = vmatpush1.msra.mxu0 0.0
        %2543 = vmatprep.subr.mxu0 0.0
        %2544 = vmatpush1.msra.mxu0 0.0
        %2545 = vmatprep.subr.mxu0 0.0
        %2546 = vmatpush1.msra.mxu0 0.0
        %2547 = vmatprep.subr.mxu0 0.0
        %2548 = vmatpush1.msra.mxu0 0.0
        %2549 = vmatprep.subr.mxu0 0.0
        %2550 = vmatpush1.msra.mxu0 0.0
        %2551 = vmatprep.subr.mxu0 0.0
        %2552 = vmatpush1.msra.mxu0 0.0
        %2553 = vmatprep.subr.mxu0 0.0
        %2554 = vmatpush1.msra.mxu0 0.0
        %2555 = vmatprep.subr.mxu0 0.0
        %2556 = vmatpush1.msra.mxu0 0.0
        %2557 = vmatprep.subr.mxu0 0.0
        %2558 = vmatpush1.msra.mxu0 %v2524
        %2559 = vmatprep.subr.mxu0 0.0
        %2560 = vmatpush1.msra.mxu0 %v2523
        %2561 = vmatprep.subr.mxu0 0.0
        %2562 = vmatpush1.msra.mxu0 %v2522
        %2563 = vmatprep.subr.mxu0 0.0
        %2564 = vmatpush1.msra.mxu0 %v2521
        %2565 = vmatprep.subr.mxu0 0.0
        %2566 = vmatpush2.msra.mxu0 0.0
        %2567 = vmatprep.subr.mxu0 0.0
        %2568 = vmatpush2.msra.mxu0 0.0
        %2569 = vmatprep.subr.mxu0 0.0
        %2570 = vmatpush2.msra.mxu0 0.0
        %2571 = vmatprep.subr.mxu0 0.0
        %2572 = vmatpush2.msra.mxu0 0.0
        %2573 = vmatprep.subr.mxu0 0.0
        %2574 = vmatpush2.msra.mxu0 0.0
        %2575 = vmatprep.subr.mxu0 0.0
        %2576 = vmatpush2.msra.mxu0 0.0
        %2577 = vmatprep.subr.mxu0 0.0
        %2578 = vmatpush2.msra.mxu0 0.0
        %2579 = vmatprep.subr.mxu0 0.0
        %2580 = vmatpush2.msra.mxu0 0.0
        %2581 = vmatprep.subr.mxu0 0.0
        %2582 = vmatpush2.msra.mxu0 0.0
        %2583 = vmatprep.subr.mxu0 0.0
        %2584 = vmatpush2.msra.mxu0 0.0
        %2585 = vmatprep.subr.mxu0 0.0
        %2586 = vmatpush2.msra.mxu0 0.0
        %2587 = vmatprep.subr.mxu0 0.0
        %2588 = vmatpush2.msra.mxu0 0.0
        %2589 = vmatprep.subr.mxu0 0.0
        %2590 = vmatpush2.msra.mxu0 0.0
        %2591 = vmatprep.subr.mxu0 0.0
        %2592 = vmatpush2.msra.mxu0 0.0
        %2593 = vmatprep.subr.mxu0 0.0
        %2594 = vmatpush2.msra.mxu0 0.0
        %2595 = vmatprep.subr.mxu0 0.0
        %2596 = vmatpush2.msra.mxu0 0.0
        %2597 = vmatprep.mubr.f32.mxu0 0.0
        %2598 = vmatmul.mubr.f32.gmra.mxu0 %v1040
        %v2599 = vpop.f32.mrf.mxu0
        %v2600 = vadd.f32 %v2531, %v2599
        %v2601 = vpop.f32.mrf.mxu0
        %2602 = vmatprep.mubr.f32.mxu0 0.0
        %2603 = vmatmul.mubr.f32.gmra.mxu0 %v1043
        %v2604 = vpop.f32.mrf.mxu0
        %v2605 = vadd.f32 %v2531, %v2604
        %v2606 = vpop.f32.mrf.mxu0
        %2607 = vdwg.mxu0
        %s2608 = scalar_lea.vmem %s4, 32
        %v2609 = vld [vmem:[%s2608] sm:$0xff]
        %v2610 = vld [vmem:[%s2608 + $0x8] sm:$0xff]
        %v2611 = vld [vmem:[%s2608 + $0x10] sm:$0xff]
        %v2612 = vld [vmem:[%s2608 + $0x18] sm:$0xff]
        %s2613 = scalar_lea.vmem [#allocation10], 1
        %v2614 = vld [vmem:[%s2613] sm:$0x1]
        %v2616 = vlaneseq
        %v2617 = vshrl.u32 %v2616, 7
        %v2618 = vsub.s32 0, %v2617
        %v2619 = vrot.slane %v2614, %v2618
        %2621 = vmatprep.subr.mxu0 0.0
        %2622 = vmatpush1.msra.mxu0 0.0
        %2623 = vmatprep.subr.mxu0 0.0
        %2624 = vmatpush1.msra.mxu0 0.0
        %2625 = vmatprep.subr.mxu0 0.0
        %2626 = vmatpush1.msra.mxu0 0.0
        %2627 = vmatprep.subr.mxu0 0.0
        %2628 = vmatpush1.msra.mxu0 0.0
        %2629 = vmatprep.subr.mxu0 0.0
        %2630 = vmatpush1.msra.mxu0 0.0
        %2631 = vmatprep.subr.mxu0 0.0
        %2632 = vmatpush1.msra.mxu0 0.0
        %2633 = vmatprep.subr.mxu0 0.0
        %2634 = vmatpush1.msra.mxu0 0.0
        %2635 = vmatprep.subr.mxu0 0.0
        %2636 = vmatpush1.msra.mxu0 0.0
        %2637 = vmatprep.subr.mxu0 0.0
        %2638 = vmatpush1.msra.mxu0 0.0
        %2639 = vmatprep.subr.mxu0 0.0
        %2640 = vmatpush1.msra.mxu0 0.0
        %2641 = vmatprep.subr.mxu0 0.0
        %2642 = vmatpush1.msra.mxu0 0.0
        %2643 = vmatprep.subr.mxu0 0.0
        %2644 = vmatpush1.msra.mxu0 0.0
        %2645 = vmatprep.subr.mxu0 0.0
        %2646 = vmatpush1.msra.mxu0 %v2612
        %2647 = vmatprep.subr.mxu0 0.0
        %2648 = vmatpush1.msra.mxu0 %v2611
        %2649 = vmatprep.subr.mxu0 0.0
        %2650 = vmatpush1.msra.mxu0 %v2610
        %2651 = vmatprep.subr.mxu0 0.0
        %2652 = vmatpush1.msra.mxu0 %v2609
        %2653 = vmatprep.subr.mxu0 0.0
        %2654 = vmatpush2.msra.mxu0 0.0
        %2655 = vmatprep.subr.mxu0 0.0
        %2656 = vmatpush2.msra.mxu0 0.0
        %2657 = vmatprep.subr.mxu0 0.0
        %2658 = vmatpush2.msra.mxu0 0.0
        %2659 = vmatprep.subr.mxu0 0.0
        %2660 = vmatpush2.msra.mxu0 0.0
        %2661 = vmatprep.subr.mxu0 0.0
        %2662 = vmatpush2.msra.mxu0 0.0
        %2663 = vmatprep.subr.mxu0 0.0
        %2664 = vmatpush2.msra.mxu0 0.0
        %2665 = vmatprep.subr.mxu0 0.0
        %2666 = vmatpush2.msra.mxu0 0.0
        %2667 = vmatprep.subr.mxu0 0.0
        %2668 = vmatpush2.msra.mxu0 0.0
        %2669 = vmatprep.subr.mxu0 0.0
        %2670 = vmatpush2.msra.mxu0 0.0
        %2671 = vmatprep.subr.mxu0 0.0
        %2672 = vmatpush2.msra.mxu0 0.0
        %2673 = vmatprep.subr.mxu0 0.0
        %2674 = vmatpush2.msra.mxu0 0.0
        %2675 = vmatprep.subr.mxu0 0.0
        %2676 = vmatpush2.msra.mxu0 0.0
        %2677 = vmatprep.subr.mxu0 0.0
        %2678 = vmatpush2.msra.mxu0 0.0
        %2679 = vmatprep.subr.mxu0 0.0
        %2680 = vmatpush2.msra.mxu0 0.0
        %2681 = vmatprep.subr.mxu0 0.0
        %2682 = vmatpush2.msra.mxu0 0.0
        %2683 = vmatprep.subr.mxu0 0.0
        %2684 = vmatpush2.msra.mxu0 0.0
        %2685 = vmatprep.mubr.f32.mxu0 0.0
        %2686 = vmatmul.mubr.f32.gmra.mxu0 %v1040
        %v2687 = vpop.f32.mrf.mxu0
        %v2688 = vadd.f32 %v2619, %v2687
        %v2689 = vpop.f32.mrf.mxu0
        %2690 = vmatprep.mubr.f32.mxu0 0.0
        %2691 = vmatmul.mubr.f32.gmra.mxu0 %v1043
        %v2692 = vpop.f32.mrf.mxu0
        %v2693 = vadd.f32 %v2619, %v2692
        %v2694 = vpop.f32.mrf.mxu0
        %2695 = vdwg.mxu0
        %v2697 = vsel %vm1206, %v2517, 0
        %v2700 = vsel %vm1206, %v2600, 0
        %v2703 = vsel %vm1206, %v2605, 0
        %2705 = vmatprep.subr.mxu0 0.0
        %2706 = vmatpush1.xpose.msra.mxu0 0.0
        %2707 = vmatprep.subr.mxu0 0.0
        %2708 = vmatpush1.xpose.msra.mxu0 0.0
        %2709 = vmatprep.subr.mxu0 0.0
        %2710 = vmatpush1.xpose.msra.mxu0 0.0
        %2711 = vmatprep.subr.mxu0 0.0
        %2712 = vmatpush1.xpose.msra.mxu0 0.0
        %2713 = vmatprep.subr.mxu0 0.0
        %2714 = vmatpush1.xpose.msra.mxu0 0.0
        %2715 = vmatprep.subr.mxu0 0.0
        %2716 = vmatpush1.xpose.msra.mxu0 0.0
        %2717 = vmatprep.subr.mxu0 0.0
        %2718 = vmatpush1.xpose.msra.mxu0 0.0
        %2719 = vmatprep.subr.mxu0 0.0
        %2720 = vmatpush1.xpose.msra.mxu0 0.0
        %2721 = vmatprep.subr.mxu0 0.0
        %2722 = vmatpush1.xpose.msra.mxu0 0.0
        %2723 = vmatprep.subr.mxu0 0.0
        %2724 = vmatpush1.xpose.msra.mxu0 0.0
        %2725 = vmatprep.subr.mxu0 0.0
        %2726 = vmatpush1.xpose.msra.mxu0 0.0
        %2727 = vmatprep.subr.mxu0 0.0
        %2728 = vmatpush1.xpose.msra.mxu0 0.0
        %2729 = vmatprep.subr.mxu0 0.0
        %2730 = vmatpush1.xpose.msra.mxu0 0.0
        %2731 = vmatprep.subr.mxu0 0.0
        %2732 = vmatpush1.xpose.msra.mxu0 0.0
        %2733 = vmatprep.subr.mxu0 0.0
        %2734 = vmatpush1.xpose.msra.mxu0 %v2703
        %2735 = vmatprep.subr.mxu0 0.0
        %2736 = vmatpush1.xpose.msra.mxu0 %v2700
        %2737 = vmatprep.subr.mxu0 0.0
        %2738 = vmatpush2.xpose.msra.mxu0 0.0
        %2739 = vmatprep.subr.mxu0 0.0
        %2740 = vmatpush2.xpose.msra.mxu0 0.0
        %2741 = vmatprep.subr.mxu0 0.0
        %2742 = vmatpush2.xpose.msra.mxu0 0.0
        %2743 = vmatprep.subr.mxu0 0.0
        %2744 = vmatpush2.xpose.msra.mxu0 0.0
        %2745 = vmatprep.subr.mxu0 0.0
        %2746 = vmatpush2.xpose.msra.mxu0 0.0
        %2747 = vmatprep.subr.mxu0 0.0
        %2748 = vmatpush2.xpose.msra.mxu0 0.0
        %2749 = vmatprep.subr.mxu0 0.0
        %2750 = vmatpush2.xpose.msra.mxu0 0.0
        %2751 = vmatprep.subr.mxu0 0.0
        %2752 = vmatpush2.xpose.msra.mxu0 0.0
        %2753 = vmatprep.subr.mxu0 0.0
        %2754 = vmatpush2.xpose.msra.mxu0 0.0
        %2755 = vmatprep.subr.mxu0 0.0
        %2756 = vmatpush2.xpose.msra.mxu0 0.0
        %2757 = vmatprep.subr.mxu0 0.0
        %2758 = vmatpush2.xpose.msra.mxu0 0.0
        %2759 = vmatprep.subr.mxu0 0.0
        %2760 = vmatpush2.xpose.msra.mxu0 0.0
        %2761 = vmatprep.subr.mxu0 0.0
        %2762 = vmatpush2.xpose.msra.mxu0 0.0
        %2763 = vmatprep.subr.mxu0 0.0
        %2764 = vmatpush2.xpose.msra.mxu0 0.0
        %2765 = vmatprep.subr.mxu0 0.0
        %2766 = vmatpush2.xpose.msra.mxu0 0.0
        %2767 = vmatprep.subr.mxu0 0.0
        %2768 = vmatpush2.xpose.msra.mxu0 0.0
        %2769 = vmatprep.mubr.f32.mxu0 0.0
        %2770 = vmatmul.mubr.f32.gmra.mxu0 %v2697
        %v2771 = vpop.f32.mrf.mxu0
        %v2772 = vadd.f32 0.0, %v2771
        %v2773 = vpop.f32.mrf.mxu0
        %2774 = vdwg.mxu0
        %v2775 = vmul.f32 %v2772, 0.35355338
        %v2776 = vsel %vm1287, %v2775, -inf
        %2777 = vmax.xlane.f32.xlu0 %v2776
        %v2778 = vpop.xlane.xlu0 %2777
        %v2779 = vsub.f32 %v2775, %v2778
        %v2780 = vmul.f32 %v2779, 1.442695
        %v2781 = vpow.pop %v2780
        %v2782 = vsel %vm1287, %v2781, 0.0
        %2783 = vadd.xlane.f32.xlu0 %v2782
        %v2784 = vpop.xlane.xlu0 %2783
        %v2785 = vrcp.pop %v2784
        %v2786 = vmul.f32 %v2781, %v2785
        %v2788 = vsel %vm1287, %v2786, 0
        %2790 = vmatprep.subr.mxu0 0.0
        %2791 = vmatpush1.msra.mxu0 0.0
        %2792 = vmatprep.subr.mxu0 0.0
        %2793 = vmatpush1.msra.mxu0 0.0
        %2794 = vmatprep.subr.mxu0 0.0
        %2795 = vmatpush1.msra.mxu0 0.0
        %2796 = vmatprep.subr.mxu0 0.0
        %2797 = vmatpush1.msra.mxu0 0.0
        %2798 = vmatprep.subr.mxu0 0.0
        %2799 = vmatpush1.msra.mxu0 0.0
        %2800 = vmatprep.subr.mxu0 0.0
        %2801 = vmatpush1.msra.mxu0 0.0
        %2802 = vmatprep.subr.mxu0 0.0
        %2803 = vmatpush1.msra.mxu0 0.0
        %2804 = vmatprep.subr.mxu0 0.0
        %2805 = vmatpush1.msra.mxu0 0.0
        %2806 = vmatprep.subr.mxu0 0.0
        %2807 = vmatpush1.msra.mxu0 0.0
        %2808 = vmatprep.subr.mxu0 0.0
        %2809 = vmatpush1.msra.mxu0 0.0
        %2810 = vmatprep.subr.mxu0 0.0
        %2811 = vmatpush1.msra.mxu0 0.0
        %2812 = vmatprep.subr.mxu0 0.0
        %2813 = vmatpush1.msra.mxu0 0.0
        %2814 = vmatprep.subr.mxu0 0.0
        %2815 = vmatpush1.msra.mxu0 0.0
        %2816 = vmatprep.subr.mxu0 0.0
        %2817 = vmatpush1.msra.mxu0 0.0
        %2818 = vmatprep.subr.mxu0 0.0
        %2819 = vmatpush1.msra.mxu0 %v2693
        %2820 = vmatprep.subr.mxu0 0.0
        %2821 = vmatpush1.msra.mxu0 %v2688
        %2822 = vmatprep.subr.mxu0 0.0
        %2823 = vmatpush2.msra.mxu0 0.0
        %2824 = vmatprep.subr.mxu0 0.0
        %2825 = vmatpush2.msra.mxu0 0.0
        %2826 = vmatprep.subr.mxu0 0.0
        %2827 = vmatpush2.msra.mxu0 0.0
        %2828 = vmatprep.subr.mxu0 0.0
        %2829 = vmatpush2.msra.mxu0 0.0
        %2830 = vmatprep.subr.mxu0 0.0
        %2831 = vmatpush2.msra.mxu0 0.0
        %2832 = vmatprep.subr.mxu0 0.0
        %2833 = vmatpush2.msra.mxu0 0.0
        %2834 = vmatprep.subr.mxu0 0.0
        %2835 = vmatpush2.msra.mxu0 0.0
        %2836 = vmatprep.subr.mxu0 0.0
        %2837 = vmatpush2.msra.mxu0 0.0
        %2838 = vmatprep.subr.mxu0 0.0
        %2839 = vmatpush2.msra.mxu0 0.0
        %2840 = vmatprep.subr.mxu0 0.0
        %2841 = vmatpush2.msra.mxu0 0.0
        %2842 = vmatprep.subr.mxu0 0.0
        %2843 = vmatpush2.msra.mxu0 0.0
        %2844 = vmatprep.subr.mxu0 0.0
        %2845 = vmatpush2.msra.mxu0 0.0
        %2846 = vmatprep.subr.mxu0 0.0
        %2847 = vmatpush2.msra.mxu0 0.0
        %2848 = vmatprep.subr.mxu0 0.0
        %2849 = vmatpush2.msra.mxu0 0.0
        %2850 = vmatprep.subr.mxu0 0.0
        %2851 = vmatpush2.msra.mxu0 0.0
        %2852 = vmatprep.subr.mxu0 0.0
        %2853 = vmatpush2.msra.mxu0 0.0
        %2854 = vmatprep.mubr.f32.mxu0 0.0
        %2855 = vmatmul.mubr.f32.gmra.mxu0 %v2788
        %v2856 = vpop.f32.mrf.mxu0
        %v2857 = vadd.f32 0.0, %v2856
        %v2858 = vpop.f32.mrf.mxu0
        %2859 = vdwg.mxu0
        %s2860 = scalar_lea.vmem [#allocation11], 32
        %v2861 = vld [vmem:[%s2860] sm:$0xff]
        %2862 = vrot.lane.b32.xlu0 %v2517, 120
        %v2863 = vpop.permute.xlu0 %2862
        %2864 = vrot.lane.b32.xlu0 %v2600, 120
        %v2865 = vpop.permute.xlu0 %2864
        %2866 = vrot.lane.b32.xlu0 %v2605, 120
        %v2867 = vpop.permute.xlu0 %2866
        %v2868 = vsel %vm1206, %v2863, 0
        %v2870 = vsel %vm1206, %v2865, 0
        %v2872 = vsel %vm1206, %v2867, 0
        %2874 = vmatprep.subr.mxu0 0.0
        %2875 = vmatpush1.xpose.msra.mxu0 0.0
        %2876 = vmatprep.subr.mxu0 0.0
        %2877 = vmatpush1.xpose.msra.mxu0 0.0
        %2878 = vmatprep.subr.mxu0 0.0
        %2879 = vmatpush1.xpose.msra.mxu0 0.0
        %2880 = vmatprep.subr.mxu0 0.0
        %2881 = vmatpush1.xpose.msra.mxu0 0.0
        %2882 = vmatprep.subr.mxu0 0.0
        %2883 = vmatpush1.xpose.msra.mxu0 0.0
        %2884 = vmatprep.subr.mxu0 0.0
        %2885 = vmatpush1.xpose.msra.mxu0 0.0
        %2886 = vmatprep.subr.mxu0 0.0
        %2887 = vmatpush1.xpose.msra.mxu0 0.0
        %2888 = vmatprep.subr.mxu0 0.0
        %2889 = vmatpush1.xpose.msra.mxu0 0.0
        %2890 = vmatprep.subr.mxu0 0.0
        %2891 = vmatpush1.xpose.msra.mxu0 0.0
        %2892 = vmatprep.subr.mxu0 0.0
        %2893 = vmatpush1.xpose.msra.mxu0 0.0
        %2894 = vmatprep.subr.mxu0 0.0
        %2895 = vmatpush1.xpose.msra.mxu0 0.0
        %2896 = vmatprep.subr.mxu0 0.0
        %2897 = vmatpush1.xpose.msra.mxu0 0.0
        %2898 = vmatprep.subr.mxu0 0.0
        %2899 = vmatpush1.xpose.msra.mxu0 0.0
        %2900 = vmatprep.subr.mxu0 0.0
        %2901 = vmatpush1.xpose.msra.mxu0 0.0
        %2902 = vmatprep.subr.mxu0 0.0
        %2903 = vmatpush1.xpose.msra.mxu0 %v2872
        %2904 = vmatprep.subr.mxu0 0.0
        %2905 = vmatpush1.xpose.msra.mxu0 %v2870
        %2906 = vmatprep.subr.mxu0 0.0
        %2907 = vmatpush2.xpose.msra.mxu0 0.0
        %2908 = vmatprep.subr.mxu0 0.0
        %2909 = vmatpush2.xpose.msra.mxu0 0.0
        %2910 = vmatprep.subr.mxu0 0.0
        %2911 = vmatpush2.xpose.msra.mxu0 0.0
        %2912 = vmatprep.subr.mxu0 0.0
        %2913 = vmatpush2.xpose.msra.mxu0 0.0
        %2914 = vmatprep.subr.mxu0 0.0
        %2915 = vmatpush2.xpose.msra.mxu0 0.0
        %2916 = vmatprep.subr.mxu0 0.0
        %2917 = vmatpush2.xpose.msra.mxu0 0.0
        %2918 = vmatprep.subr.mxu0 0.0
        %2919 = vmatpush2.xpose.msra.mxu0 0.0
        %2920 = vmatprep.subr.mxu0 0.0
        %2921 = vmatpush2.xpose.msra.mxu0 0.0
        %2922 = vmatprep.subr.mxu0 0.0
        %2923 = vmatpush2.xpose.msra.mxu0 0.0
        %2924 = vmatprep.subr.mxu0 0.0
        %2925 = vmatpush2.xpose.msra.mxu0 0.0
        %2926 = vmatprep.subr.mxu0 0.0
        %2927 = vmatpush2.xpose.msra.mxu0 0.0
        %2928 = vmatprep.subr.mxu0 0.0
        %2929 = vmatpush2.xpose.msra.mxu0 0.0
        %2930 = vmatprep.subr.mxu0 0.0
        %2931 = vmatpush2.xpose.msra.mxu0 0.0
        %2932 = vmatprep.subr.mxu0 0.0
        %2933 = vmatpush2.xpose.msra.mxu0 0.0
        %2934 = vmatprep.subr.mxu0 0.0
        %2935 = vmatpush2.xpose.msra.mxu0 0.0
        %2936 = vmatprep.subr.mxu0 0.0
        %2937 = vmatpush2.xpose.msra.mxu0 0.0
        %2938 = vmatprep.mubr.f32.mxu0 0.0
        %2939 = vmatmul.mubr.f32.gmra.mxu0 %v2868
        %v2940 = vpop.f32.mrf.mxu0
        %v2941 = vadd.f32 0.0, %v2940
        %v2942 = vpop.f32.mrf.mxu0
        %2943 = vdwg.mxu0
        %v2944 = vmul.f32 %v2941, 0.35355338
        %v2945 = vsel %vm1287, %v2944, -inf
        %2946 = vmax.xlane.f32.xlu0 %v2945
        %v2947 = vpop.xlane.xlu0 %2946
        %v2948 = vsub.f32 %v2944, %v2947
        %v2949 = vmul.f32 %v2948, 1.442695
        %v2950 = vpow.pop %v2949
        %v2951 = vsel %vm1287, %v2950, 0.0
        %2952 = vadd.xlane.f32.xlu0 %v2951
        %v2953 = vpop.xlane.xlu0 %2952
        %v2954 = vrcp.pop %v2953
        %v2955 = vmul.f32 %v2950, %v2954
        %2958 = vrot.lane.b32.xlu0 %v2688, 120
        %v2959 = vpop.permute.xlu0 %2958
        %2960 = vrot.lane.b32.xlu0 %v2693, 120
        %v2961 = vpop.permute.xlu0 %2960
        %v2965 = vsel %vm1287, %v2955, 0
        %2967 = vmatprep.subr.mxu0 0.0
        %2968 = vmatpush1.msra.mxu0 0.0
        %2969 = vmatprep.subr.mxu0 0.0
        %2970 = vmatpush1.msra.mxu0 0.0
        %2971 = vmatprep.subr.mxu0 0.0
        %2972 = vmatpush1.msra.mxu0 0.0
        %2973 = vmatprep.subr.mxu0 0.0
        %2974 = vmatpush1.msra.mxu0 0.0
        %2975 = vmatprep.subr.mxu0 0.0
        %2976 = vmatpush1.msra.mxu0 0.0
        %2977 = vmatprep.subr.mxu0 0.0
        %2978 = vmatpush1.msra.mxu0 0.0
        %2979 = vmatprep.subr.mxu0 0.0
        %2980 = vmatpush1.msra.mxu0 0.0
        %2981 = vmatprep.subr.mxu0 0.0
        %2982 = vmatpush1.msra.mxu0 0.0
        %2983 = vmatprep.subr.mxu0 0.0
        %2984 = vmatpush1.msra.mxu0 0.0
        %2985 = vmatprep.subr.mxu0 0.0
        %2986 = vmatpush1.msra.mxu0 0.0
        %2987 = vmatprep.subr.mxu0 0.0
        %2988 = vmatpush1.msra.mxu0 0.0
        %2989 = vmatprep.subr.mxu0 0.0
        %2990 = vmatpush1.msra.mxu0 0.0
        %2991 = vmatprep.subr.mxu0 0.0
        %2992 = vmatpush1.msra.mxu0 0.0
        %2993 = vmatprep.subr.mxu0 0.0
        %2994 = vmatpush1.msra.mxu0 0.0
        %2995 = vmatprep.subr.mxu0 0.0
        %2996 = vmatpush1.msra.mxu0 %v2961
        %2997 = vmatprep.subr.mxu0 0.0
        %2998 = vmatpush1.msra.mxu0 %v2959
        %2999 = vmatprep.subr.mxu0 0.0
        %3000 = vmatpush2.msra.mxu0 0.0
        %3001 = vmatprep.subr.mxu0 0.0
        %3002 = vmatpush2.msra.mxu0 0.0
        %3003 = vmatprep.subr.mxu0 0.0
        %3004 = vmatpush2.msra.mxu0 0.0
        %3005 = vmatprep.subr.mxu0 0.0
        %3006 = vmatpush2.msra.mxu0 0.0
        %3007 = vmatprep.subr.mxu0 0.0
        %3008 = vmatpush2.msra.mxu0 0.0
        %3009 = vmatprep.subr.mxu0 0.0
        %3010 = vmatpush2.msra.mxu0 0.0
        %3011 = vmatprep.subr.mxu0 0.0
        %3012 = vmatpush2.msra.mxu0 0.0
        %3013 = vmatprep.subr.mxu0 0.0
        %3014 = vmatpush2.msra.mxu0 0.0
        %3015 = vmatprep.subr.mxu0 0.0
        %3016 = vmatpush2.msra.mxu0 0.0
        %3017 = vmatprep.subr.mxu0 0.0
        %3018 = vmatpush2.msra.mxu0 0.0
        %3019 = vmatprep.subr.mxu0 0.0
        %3020 = vmatpush2.msra.mxu0 0.0
        %3021 = vmatprep.subr.mxu0 0.0
        %3022 = vmatpush2.msra.mxu0 0.0
        %3023 = vmatprep.subr.mxu0 0.0
        %3024 = vmatpush2.msra.mxu0 0.0
        %3025 = vmatprep.subr.mxu0 0.0
        %3026 = vmatpush2.msra.mxu0 0.0
        %3027 = vmatprep.subr.mxu0 0.0
        %3028 = vmatpush2.msra.mxu0 0.0
        %3029 = vmatprep.subr.mxu0 0.0
        %3030 = vmatpush2.msra.mxu0 0.0
        %3031 = vmatprep.mubr.f32.mxu0 0.0
        %3032 = vmatmul.mubr.f32.gmra.mxu0 %v2965
        %v3033 = vpop.f32.mrf.mxu0
        %v3034 = vadd.f32 0.0, %v3033
        %v3035 = vpop.f32.mrf.mxu0
        %3036 = vdwg.mxu0
        %v3037 = vld [vmem:[%s2860 + $0x8] sm:$0xff]
        %v3039 = vsel %vm1206, %v3034, 0
        %3041 = vmatprep.subr.mxu0 0.0
        %3042 = vmatpush1.msra.mxu0 0.0
        %3043 = vmatprep.subr.mxu0 0.0
        %3044 = vmatpush1.msra.mxu0 0.0
        %3045 = vmatprep.subr.mxu0 0.0
        %3046 = vmatpush1.msra.mxu0 0.0
        %3047 = vmatprep.subr.mxu0 0.0
        %3048 = vmatpush1.msra.mxu0 0.0
        %3049 = vmatprep.subr.mxu0 0.0
        %3050 = vmatpush1.msra.mxu0 0.0
        %3051 = vmatprep.subr.mxu0 0.0
        %3052 = vmatpush1.msra.mxu0 0.0
        %3053 = vmatprep.subr.mxu0 0.0
        %3054 = vmatpush1.msra.mxu0 0.0
        %3055 = vmatprep.subr.mxu0 0.0
        %3056 = vmatpush1.msra.mxu0 0.0
        %3057 = vmatprep.subr.mxu0 0.0
        %3058 = vmatpush1.msra.mxu0 0.0
        %3059 = vmatprep.subr.mxu0 0.0
        %3060 = vmatpush1.msra.mxu0 0.0
        %3061 = vmatprep.subr.mxu0 0.0
        %3062 = vmatpush1.msra.mxu0 0.0
        %3063 = vmatprep.subr.mxu0 0.0
        %3064 = vmatpush1.msra.mxu0 0.0
        %3065 = vmatprep.subr.mxu0 0.0
        %3066 = vmatpush1.msra.mxu0 0.0
        %3067 = vmatprep.subr.mxu0 0.0
        %3068 = vmatpush1.msra.mxu0 0.0
        %3069 = vmatprep.subr.mxu0 0.0
        %3070 = vmatpush1.msra.mxu0 0.0
        %3071 = vmatprep.subr.mxu0 0.0
        %3072 = vmatpush1.msra.mxu0 %v3037
        %3073 = vmatprep.subr.mxu0 0.0
        %3074 = vmatpush2.msra.mxu0 0.0
        %3075 = vmatprep.subr.mxu0 0.0
        %3076 = vmatpush2.msra.mxu0 0.0
        %3077 = vmatprep.subr.mxu0 0.0
        %3078 = vmatpush2.msra.mxu0 0.0
        %3079 = vmatprep.subr.mxu0 0.0
        %3080 = vmatpush2.msra.mxu0 0.0
        %3081 = vmatprep.subr.mxu0 0.0
        %3082 = vmatpush2.msra.mxu0 0.0
        %3083 = vmatprep.subr.mxu0 0.0
        %3084 = vmatpush2.msra.mxu0 0.0
        %3085 = vmatprep.subr.mxu0 0.0
        %3086 = vmatpush2.msra.mxu0 0.0
        %3087 = vmatprep.subr.mxu0 0.0
        %3088 = vmatpush2.msra.mxu0 0.0
        %3089 = vmatprep.subr.mxu0 0.0
        %3090 = vmatpush2.msra.mxu0 0.0
        %3091 = vmatprep.subr.mxu0 0.0
        %3092 = vmatpush2.msra.mxu0 0.0
        %3093 = vmatprep.subr.mxu0 0.0
        %3094 = vmatpush2.msra.mxu0 0.0
        %3095 = vmatprep.subr.mxu0 0.0
        %3096 = vmatpush2.msra.mxu0 0.0
        %3097 = vmatprep.subr.mxu0 0.0
        %3098 = vmatpush2.msra.mxu0 0.0
        %3099 = vmatprep.subr.mxu0 0.0
        %3100 = vmatpush2.msra.mxu0 0.0
        %3101 = vmatprep.subr.mxu0 0.0
        %3102 = vmatpush2.msra.mxu0 0.0
        %3103 = vmatprep.subr.mxu0 0.0
        %3104 = vmatpush2.msra.mxu0 0.0
        %3105 = vmatprep.mubr.f32.mxu0 0.0
        %3106 = vmatmul.mubr.f32.gmra.mxu0 %v3039
        %v3107 = vpop.f32.mrf.mxu0
        %v3108 = vadd.f32 0.0, %v3107
        %v3109 = vpop.f32.mrf.mxu0
        %3110 = vdwg.mxu0
        %v3112 = vsel %vm1206, %v2857, 0
        %3114 = vmatprep.subr.mxu0 0.0
        %3115 = vmatpush1.msra.mxu0 0.0
        %3116 = vmatprep.subr.mxu0 0.0
        %3117 = vmatpush1.msra.mxu0 0.0
        %3118 = vmatprep.subr.mxu0 0.0
        %3119 = vmatpush1.msra.mxu0 0.0
        %3120 = vmatprep.subr.mxu0 0.0
        %3121 = vmatpush1.msra.mxu0 0.0
        %3122 = vmatprep.subr.mxu0 0.0
        %3123 = vmatpush1.msra.mxu0 0.0
        %3124 = vmatprep.subr.mxu0 0.0
        %3125 = vmatpush1.msra.mxu0 0.0
        %3126 = vmatprep.subr.mxu0 0.0
        %3127 = vmatpush1.msra.mxu0 0.0
        %3128 = vmatprep.subr.mxu0 0.0
        %3129 = vmatpush1.msra.mxu0 0.0
        %3130 = vmatprep.subr.mxu0 0.0
        %3131 = vmatpush1.msra.mxu0 0.0
        %3132 = vmatprep.subr.mxu0 0.0
        %3133 = vmatpush1.msra.mxu0 0.0
        %3134 = vmatprep.subr.mxu0 0.0
        %3135 = vmatpush1.msra.mxu0 0.0
        %3136 = vmatprep.subr.mxu0 0.0
        %3137 = vmatpush1.msra.mxu0 0.0
        %3138 = vmatprep.subr.mxu0 0.0
        %3139 = vmatpush1.msra.mxu0 0.0
        %3140 = vmatprep.subr.mxu0 0.0
        %3141 = vmatpush1.msra.mxu0 0.0
        %3142 = vmatprep.subr.mxu0 0.0
        %3143 = vmatpush1.msra.mxu0 0.0
        %3144 = vmatprep.subr.mxu0 0.0
        %3145 = vmatpush1.msra.mxu0 %v2861
        %3146 = vmatprep.subr.mxu0 0.0
        %3147 = vmatpush2.msra.mxu0 0.0
        %3148 = vmatprep.subr.mxu0 0.0
        %3149 = vmatpush2.msra.mxu0 0.0
        %3150 = vmatprep.subr.mxu0 0.0
        %3151 = vmatpush2.msra.mxu0 0.0
        %3152 = vmatprep.subr.mxu0 0.0
        %3153 = vmatpush2.msra.mxu0 0.0
        %3154 = vmatprep.subr.mxu0 0.0
        %3155 = vmatpush2.msra.mxu0 0.0
        %3156 = vmatprep.subr.mxu0 0.0
        %3157 = vmatpush2.msra.mxu0 0.0
        %3158 = vmatprep.subr.mxu0 0.0
        %3159 = vmatpush2.msra.mxu0 0.0
        %3160 = vmatprep.subr.mxu0 0.0
        %3161 = vmatpush2.msra.mxu0 0.0
        %3162 = vmatprep.subr.mxu0 0.0
        %3163 = vmatpush2.msra.mxu0 0.0
        %3164 = vmatprep.subr.mxu0 0.0
        %3165 = vmatpush2.msra.mxu0 0.0
        %3166 = vmatprep.subr.mxu0 0.0
        %3167 = vmatpush2.msra.mxu0 0.0
        %3168 = vmatprep.subr.mxu0 0.0
        %3169 = vmatpush2.msra.mxu0 0.0
        %3170 = vmatprep.subr.mxu0 0.0
        %3171 = vmatpush2.msra.mxu0 0.0
        %3172 = vmatprep.subr.mxu0 0.0
        %3173 = vmatpush2.msra.mxu0 0.0
        %3174 = vmatprep.subr.mxu0 0.0
        %3175 = vmatpush2.msra.mxu0 0.0
        %3176 = vmatprep.subr.mxu0 0.0
        %3177 = vmatpush2.msra.mxu0 0.0
        %3178 = vmatprep.mubr.f32.mxu0 0.0
        %3179 = vmatmul.mubr.f32.gmra.mxu0 %v3112
        %v3180 = vpop.f32.mrf.mxu0
        %v3181 = vadd.f32 %v3108, %v3180
        %v3182 = vpop.f32.mrf.mxu0
        %3183 = vdwg.mxu0
        %3184 = vrot.lane.b32.xlu0 %v2517, 112
        %v3185 = vpop.permute.xlu0 %3184
        %3186 = vrot.lane.b32.xlu0 %v2600, 112
        %v3187 = vpop.permute.xlu0 %3186
        %3188 = vrot.lane.b32.xlu0 %v2605, 112
        %v3189 = vpop.permute.xlu0 %3188
        %v3190 = vsel %vm1206, %v3185, 0
        %v3192 = vsel %vm1206, %v3187, 0
        %v3194 = vsel %vm1206, %v3189, 0
        %3196 = vmatprep.subr.mxu0 0.0
        %3197 = vmatpush1.xpose.msra.mxu0 0.0
        %3198 = vmatprep.subr.mxu0 0.0
        %3199 = vmatpush1.xpose.msra.mxu0 0.0
        %3200 = vmatprep.subr.mxu0 0.0
        %3201 = vmatpush1.xpose.msra.mxu0 0.0
        %3202 = vmatprep.subr.mxu0 0.0
        %3203 = vmatpush1.xpose.msra.mxu0 0.0
        %3204 = vmatprep.subr.mxu0 0.0
        %3205 = vmatpush1.xpose.msra.mxu0 0.0
        %3206 = vmatprep.subr.mxu0 0.0
        %3207 = vmatpush1.xpose.msra.mxu0 0.0
        %3208 = vmatprep.subr.mxu0 0.0
        %3209 = vmatpush1.xpose.msra.mxu0 0.0
        %3210 = vmatprep.subr.mxu0 0.0
        %3211 = vmatpush1.xpose.msra.mxu0 0.0
        %3212 = vmatprep.subr.mxu0 0.0
        %3213 = vmatpush1.xpose.msra.mxu0 0.0
        %3214 = vmatprep.subr.mxu0 0.0
        %3215 = vmatpush1.xpose.msra.mxu0 0.0
        %3216 = vmatprep.subr.mxu0 0.0
        %3217 = vmatpush1.xpose.msra.mxu0 0.0
        %3218 = vmatprep.subr.mxu0 0.0
        %3219 = vmatpush1.xpose.msra.mxu0 0.0
        %3220 = vmatprep.subr.mxu0 0.0
        %3221 = vmatpush1.xpose.msra.mxu0 0.0
        %3222 = vmatprep.subr.mxu0 0.0
        %3223 = vmatpush1.xpose.msra.mxu0 0.0
        %3224 = vmatprep.subr.mxu0 0.0
        %3225 = vmatpush1.xpose.msra.mxu0 %v3194
        %3226 = vmatprep.subr.mxu0 0.0
        %3227 = vmatpush1.xpose.msra.mxu0 %v3192
        %3228 = vmatprep.subr.mxu0 0.0
        %3229 = vmatpush2.xpose.msra.mxu0 0.0
        %3230 = vmatprep.subr.mxu0 0.0
        %3231 = vmatpush2.xpose.msra.mxu0 0.0
        %3232 = vmatprep.subr.mxu0 0.0
        %3233 = vmatpush2.xpose.msra.mxu0 0.0
        %3234 = vmatprep.subr.mxu0 0.0
        %3235 = vmatpush2.xpose.msra.mxu0 0.0
        %3236 = vmatprep.subr.mxu0 0.0
        %3237 = vmatpush2.xpose.msra.mxu0 0.0
        %3238 = vmatprep.subr.mxu0 0.0
        %3239 = vmatpush2.xpose.msra.mxu0 0.0
        %3240 = vmatprep.subr.mxu0 0.0
        %3241 = vmatpush2.xpose.msra.mxu0 0.0
        %3242 = vmatprep.subr.mxu0 0.0
        %3243 = vmatpush2.xpose.msra.mxu0 0.0
        %3244 = vmatprep.subr.mxu0 0.0
        %3245 = vmatpush2.xpose.msra.mxu0 0.0
        %3246 = vmatprep.subr.mxu0 0.0
        %3247 = vmatpush2.xpose.msra.mxu0 0.0
        %3248 = vmatprep.subr.mxu0 0.0
        %3249 = vmatpush2.xpose.msra.mxu0 0.0
        %3250 = vmatprep.subr.mxu0 0.0
        %3251 = vmatpush2.xpose.msra.mxu0 0.0
        %3252 = vmatprep.subr.mxu0 0.0
        %3253 = vmatpush2.xpose.msra.mxu0 0.0
        %3254 = vmatprep.subr.mxu0 0.0
        %3255 = vmatpush2.xpose.msra.mxu0 0.0
        %3256 = vmatprep.subr.mxu0 0.0
        %3257 = vmatpush2.xpose.msra.mxu0 0.0
        %3258 = vmatprep.subr.mxu0 0.0
        %3259 = vmatpush2.xpose.msra.mxu0 0.0
        %3260 = vmatprep.mubr.f32.mxu0 0.0
        %3261 = vmatmul.mubr.f32.gmra.mxu0 %v3190
        %v3262 = vpop.f32.mrf.mxu0
        %v3263 = vadd.f32 0.0, %v3262
        %v3264 = vpop.f32.mrf.mxu0
        %3265 = vdwg.mxu0
        %v3266 = vmul.f32 %v3263, 0.35355338
        %v3267 = vsel %vm1287, %v3266, -inf
        %3268 = vmax.xlane.f32.xlu0 %v3267
        %v3269 = vpop.xlane.xlu0 %3268
        %v3270 = vsub.f32 %v3266, %v3269
        %v3271 = vmul.f32 %v3270, 1.442695
        %v3272 = vpow.pop %v3271
        %v3273 = vsel %vm1287, %v3272, 0.0
        %3274 = vadd.xlane.f32.xlu0 %v3273
        %v3275 = vpop.xlane.xlu0 %3274
        %v3276 = vrcp.pop %v3275
        %v3277 = vmul.f32 %v3272, %v3276
        %3278 = vrot.lane.b32.xlu0 %v2688, 112
        %v3279 = vpop.permute.xlu0 %3278
        %3280 = vrot.lane.b32.xlu0 %v2693, 112
        %v3281 = vpop.permute.xlu0 %3280
        %v3285 = vsel %vm1287, %v3277, 0
        %3287 = vmatprep.subr.mxu0 0.0
        %3288 = vmatpush1.msra.mxu0 0.0
        %3289 = vmatprep.subr.mxu0 0.0
        %3290 = vmatpush1.msra.mxu0 0.0
        %3291 = vmatprep.subr.mxu0 0.0
        %3292 = vmatpush1.msra.mxu0 0.0
        %3293 = vmatprep.subr.mxu0 0.0
        %3294 = vmatpush1.msra.mxu0 0.0
        %3295 = vmatprep.subr.mxu0 0.0
        %3296 = vmatpush1.msra.mxu0 0.0
        %3297 = vmatprep.subr.mxu0 0.0
        %3298 = vmatpush1.msra.mxu0 0.0
        %3299 = vmatprep.subr.mxu0 0.0
        %3300 = vmatpush1.msra.mxu0 0.0
        %3301 = vmatprep.subr.mxu0 0.0
        %3302 = vmatpush1.msra.mxu0 0.0
        %3303 = vmatprep.subr.mxu0 0.0
        %3304 = vmatpush1.msra.mxu0 0.0
        %3305 = vmatprep.subr.mxu0 0.0
        %3306 = vmatpush1.msra.mxu0 0.0
        %3307 = vmatprep.subr.mxu0 0.0
        %3308 = vmatpush1.msra.mxu0 0.0
        %3309 = vmatprep.subr.mxu0 0.0
        %3310 = vmatpush1.msra.mxu0 0.0
        %3311 = vmatprep.subr.mxu0 0.0
        %3312 = vmatpush1.msra.mxu0 0.0
        %3313 = vmatprep.subr.mxu0 0.0
        %3314 = vmatpush1.msra.mxu0 0.0
        %3315 = vmatprep.subr.mxu0 0.0
        %3316 = vmatpush1.msra.mxu0 %v3281
        %3317 = vmatprep.subr.mxu0 0.0
        %3318 = vmatpush1.msra.mxu0 %v3279
        %3319 = vmatprep.subr.mxu0 0.0
        %3320 = vmatpush2.msra.mxu0 0.0
        %3321 = vmatprep.subr.mxu0 0.0
        %3322 = vmatpush2.msra.mxu0 0.0
        %3323 = vmatprep.subr.mxu0 0.0
        %3324 = vmatpush2.msra.mxu0 0.0
        %3325 = vmatprep.subr.mxu0 0.0
        %3326 = vmatpush2.msra.mxu0 0.0
        %3327 = vmatprep.subr.mxu0 0.0
        %3328 = vmatpush2.msra.mxu0 0.0
        %3329 = vmatprep.subr.mxu0 0.0
        %3330 = vmatpush2.msra.mxu0 0.0
        %3331 = vmatprep.subr.mxu0 0.0
        %3332 = vmatpush2.msra.mxu0 0.0
        %3333 = vmatprep.subr.mxu0 0.0
        %3334 = vmatpush2.msra.mxu0 0.0
        %3335 = vmatprep.subr.mxu0 0.0
        %3336 = vmatpush2.msra.mxu0 0.0
        %3337 = vmatprep.subr.mxu0 0.0
        %3338 = vmatpush2.msra.mxu0 0.0
        %3339 = vmatprep.subr.mxu0 0.0
        %3340 = vmatpush2.msra.mxu0 0.0
        %3341 = vmatprep.subr.mxu0 0.0
        %3342 = vmatpush2.msra.mxu0 0.0
        %3343 = vmatprep.subr.mxu0 0.0
        %3344 = vmatpush2.msra.mxu0 0.0
        %3345 = vmatprep.subr.mxu0 0.0
        %3346 = vmatpush2.msra.mxu0 0.0
        %3347 = vmatprep.subr.mxu0 0.0
        %3348 = vmatpush2.msra.mxu0 0.0
        %3349 = vmatprep.subr.mxu0 0.0
        %3350 = vmatpush2.msra.mxu0 0.0
        %3351 = vmatprep.mubr.f32.mxu0 0.0
        %3352 = vmatmul.mubr.f32.gmra.mxu0 %v3285
        %v3353 = vpop.f32.mrf.mxu0
        %v3354 = vadd.f32 0.0, %v3353
        %v3355 = vpop.f32.mrf.mxu0
        %3356 = vdwg.mxu0
        %v3357 = vld [vmem:[%s2860 + $0x10] sm:$0xff]
        %v3359 = vsel %vm1206, %v3354, 0
        %3361 = vmatprep.subr.mxu0 0.0
        %3362 = vmatpush1.msra.mxu0 0.0
        %3363 = vmatprep.subr.mxu0 0.0
        %3364 = vmatpush1.msra.mxu0 0.0
        %3365 = vmatprep.subr.mxu0 0.0
        %3366 = vmatpush1.msra.mxu0 0.0
        %3367 = vmatprep.subr.mxu0 0.0
        %3368 = vmatpush1.msra.mxu0 0.0
        %3369 = vmatprep.subr.mxu0 0.0
        %3370 = vmatpush1.msra.mxu0 0.0
        %3371 = vmatprep.subr.mxu0 0.0
        %3372 = vmatpush1.msra.mxu0 0.0
        %3373 = vmatprep.subr.mxu0 0.0
        %3374 = vmatpush1.msra.mxu0 0.0
        %3375 = vmatprep.subr.mxu0 0.0
        %3376 = vmatpush1.msra.mxu0 0.0
        %3377 = vmatprep.subr.mxu0 0.0
        %3378 = vmatpush1.msra.mxu0 0.0
        %3379 = vmatprep.subr.mxu0 0.0
        %3380 = vmatpush1.msra.mxu0 0.0
        %3381 = vmatprep.subr.mxu0 0.0
        %3382 = vmatpush1.msra.mxu0 0.0
        %3383 = vmatprep.subr.mxu0 0.0
        %3384 = vmatpush1.msra.mxu0 0.0
        %3385 = vmatprep.subr.mxu0 0.0
        %3386 = vmatpush1.msra.mxu0 0.0
        %3387 = vmatprep.subr.mxu0 0.0
        %3388 = vmatpush1.msra.mxu0 0.0
        %3389 = vmatprep.subr.mxu0 0.0
        %3390 = vmatpush1.msra.mxu0 0.0
        %3391 = vmatprep.subr.mxu0 0.0
        %3392 = vmatpush1.msra.mxu0 %v3357
        %3393 = vmatprep.subr.mxu0 0.0
        %3394 = vmatpush2.msra.mxu0 0.0
        %3395 = vmatprep.subr.mxu0 0.0
        %3396 = vmatpush2.msra.mxu0 0.0
        %3397 = vmatprep.subr.mxu0 0.0
        %3398 = vmatpush2.msra.mxu0 0.0
        %3399 = vmatprep.subr.mxu0 0.0
        %3400 = vmatpush2.msra.mxu0 0.0
        %3401 = vmatprep.subr.mxu0 0.0
        %3402 = vmatpush2.msra.mxu0 0.0
        %3403 = vmatprep.subr.mxu0 0.0
        %3404 = vmatpush2.msra.mxu0 0.0
        %3405 = vmatprep.subr.mxu0 0.0
        %3406 = vmatpush2.msra.mxu0 0.0
        %3407 = vmatprep.subr.mxu0 0.0
        %3408 = vmatpush2.msra.mxu0 0.0
        %3409 = vmatprep.subr.mxu0 0.0
        %3410 = vmatpush2.msra.mxu0 0.0
        %3411 = vmatprep.subr.mxu0 0.0
        %3412 = vmatpush2.msra.mxu0 0.0
        %3413 = vmatprep.subr.mxu0 0.0
        %3414 = vmatpush2.msra.mxu0 0.0
        %3415 = vmatprep.subr.mxu0 0.0
        %3416 = vmatpush2.msra.mxu0 0.0
        %3417 = vmatprep.subr.mxu0 0.0
        %3418 = vmatpush2.msra.mxu0 0.0
        %3419 = vmatprep.subr.mxu0 0.0
        %3420 = vmatpush2.msra.mxu0 0.0
        %3421 = vmatprep.subr.mxu0 0.0
        %3422 = vmatpush2.msra.mxu0 0.0
        %3423 = vmatprep.subr.mxu0 0.0
        %3424 = vmatpush2.msra.mxu0 0.0
        %3425 = vmatprep.mubr.f32.mxu0 0.0
        %3426 = vmatmul.mubr.f32.gmra.mxu0 %v3359
        %v3427 = vpop.f32.mrf.mxu0
        %v3428 = vadd.f32 0.0, %v3427
        %v3429 = vpop.f32.mrf.mxu0
        %3430 = vdwg.mxu0
        %v3431 = vadd.f32 %v3181, %v3428
        %3432 = vrot.lane.b32.xlu0 %v2517, 104
        %v3433 = vpop.permute.xlu0 %3432
        %3434 = vrot.lane.b32.xlu0 %v2600, 104
        %v3435 = vpop.permute.xlu0 %3434
        %3436 = vrot.lane.b32.xlu0 %v2605, 104
        %v3437 = vpop.permute.xlu0 %3436
        %v3438 = vsel %vm1206, %v3433, 0
        %v3440 = vsel %vm1206, %v3435, 0
        %v3442 = vsel %vm1206, %v3437, 0
        %3444 = vmatprep.subr.mxu0 0.0
        %3445 = vmatpush1.xpose.msra.mxu0 0.0
        %3446 = vmatprep.subr.mxu0 0.0
        %3447 = vmatpush1.xpose.msra.mxu0 0.0
        %3448 = vmatprep.subr.mxu0 0.0
        %3449 = vmatpush1.xpose.msra.mxu0 0.0
        %3450 = vmatprep.subr.mxu0 0.0
        %3451 = vmatpush1.xpose.msra.mxu0 0.0
        %3452 = vmatprep.subr.mxu0 0.0
        %3453 = vmatpush1.xpose.msra.mxu0 0.0
        %3454 = vmatprep.subr.mxu0 0.0
        %3455 = vmatpush1.xpose.msra.mxu0 0.0
        %3456 = vmatprep.subr.mxu0 0.0
        %3457 = vmatpush1.xpose.msra.mxu0 0.0
        %3458 = vmatprep.subr.mxu0 0.0
        %3459 = vmatpush1.xpose.msra.mxu0 0.0
        %3460 = vmatprep.subr.mxu0 0.0
        %3461 = vmatpush1.xpose.msra.mxu0 0.0
        %3462 = vmatprep.subr.mxu0 0.0
        %3463 = vmatpush1.xpose.msra.mxu0 0.0
        %3464 = vmatprep.subr.mxu0 0.0
        %3465 = vmatpush1.xpose.msra.mxu0 0.0
        %3466 = vmatprep.subr.mxu0 0.0
        %3467 = vmatpush1.xpose.msra.mxu0 0.0
        %3468 = vmatprep.subr.mxu0 0.0
        %3469 = vmatpush1.xpose.msra.mxu0 0.0
        %3470 = vmatprep.subr.mxu0 0.0
        %3471 = vmatpush1.xpose.msra.mxu0 0.0
        %3472 = vmatprep.subr.mxu0 0.0
        %3473 = vmatpush1.xpose.msra.mxu0 %v3442
        %3474 = vmatprep.subr.mxu0 0.0
        %3475 = vmatpush1.xpose.msra.mxu0 %v3440
        %3476 = vmatprep.subr.mxu0 0.0
        %3477 = vmatpush2.xpose.msra.mxu0 0.0
        %3478 = vmatprep.subr.mxu0 0.0
        %3479 = vmatpush2.xpose.msra.mxu0 0.0
        %3480 = vmatprep.subr.mxu0 0.0
        %3481 = vmatpush2.xpose.msra.mxu0 0.0
        %3482 = vmatprep.subr.mxu0 0.0
        %3483 = vmatpush2.xpose.msra.mxu0 0.0
        %3484 = vmatprep.subr.mxu0 0.0
        %3485 = vmatpush2.xpose.msra.mxu0 0.0
        %3486 = vmatprep.subr.mxu0 0.0
        %3487 = vmatpush2.xpose.msra.mxu0 0.0
        %3488 = vmatprep.subr.mxu0 0.0
        %3489 = vmatpush2.xpose.msra.mxu0 0.0
        %3490 = vmatprep.subr.mxu0 0.0
        %3491 = vmatpush2.xpose.msra.mxu0 0.0
        %3492 = vmatprep.subr.mxu0 0.0
        %3493 = vmatpush2.xpose.msra.mxu0 0.0
        %3494 = vmatprep.subr.mxu0 0.0
        %3495 = vmatpush2.xpose.msra.mxu0 0.0
        %3496 = vmatprep.subr.mxu0 0.0
        %3497 = vmatpush2.xpose.msra.mxu0 0.0
        %3498 = vmatprep.subr.mxu0 0.0
        %3499 = vmatpush2.xpose.msra.mxu0 0.0
        %3500 = vmatprep.subr.mxu0 0.0
        %3501 = vmatpush2.xpose.msra.mxu0 0.0
        %3502 = vmatprep.subr.mxu0 0.0
        %3503 = vmatpush2.xpose.msra.mxu0 0.0
        %3504 = vmatprep.subr.mxu0 0.0
        %3505 = vmatpush2.xpose.msra.mxu0 0.0
        %3506 = vmatprep.subr.mxu0 0.0
        %3507 = vmatpush2.xpose.msra.mxu0 0.0
        %3508 = vmatprep.mubr.f32.mxu0 0.0
        %3509 = vmatmul.mubr.f32.gmra.mxu0 %v3438
        %v3510 = vpop.f32.mrf.mxu0
        %v3511 = vadd.f32 0.0, %v3510
        %v3512 = vpop.f32.mrf.mxu0
        %3513 = vdwg.mxu0
        %v3514 = vmul.f32 %v3511, 0.35355338
        %v3515 = vsel %vm1287, %v3514, -inf
        %3516 = vmax.xlane.f32.xlu0 %v3515
        %v3517 = vpop.xlane.xlu0 %3516
        %v3518 = vsub.f32 %v3514, %v3517
        %v3519 = vmul.f32 %v3518, 1.442695
        %v3520 = vpow.pop %v3519
        %v3521 = vsel %vm1287, %v3520, 0.0
        %3522 = vadd.xlane.f32.xlu0 %v3521
        %v3523 = vpop.xlane.xlu0 %3522
        %v3524 = vrcp.pop %v3523
        %v3525 = vmul.f32 %v3520, %v3524
        %3526 = vrot.lane.b32.xlu0 %v2688, 104
        %v3527 = vpop.permute.xlu0 %3526
        %3528 = vrot.lane.b32.xlu0 %v2693, 104
        %v3529 = vpop.permute.xlu0 %3528
        %v3533 = vsel %vm1287, %v3525, 0
        %3535 = vmatprep.subr.mxu0 0.0
        %3536 = vmatpush1.msra.mxu0 0.0
        %3537 = vmatprep.subr.mxu0 0.0
        %3538 = vmatpush1.msra.mxu0 0.0
        %3539 = vmatprep.subr.mxu0 0.0
        %3540 = vmatpush1.msra.mxu0 0.0
        %3541 = vmatprep.subr.mxu0 0.0
        %3542 = vmatpush1.msra.mxu0 0.0
        %3543 = vmatprep.subr.mxu0 0.0
        %3544 = vmatpush1.msra.mxu0 0.0
        %3545 = vmatprep.subr.mxu0 0.0
        %3546 = vmatpush1.msra.mxu0 0.0
        %3547 = vmatprep.subr.mxu0 0.0
        %3548 = vmatpush1.msra.mxu0 0.0
        %3549 = vmatprep.subr.mxu0 0.0
        %3550 = vmatpush1.msra.mxu0 0.0
        %3551 = vmatprep.subr.mxu0 0.0
        %3552 = vmatpush1.msra.mxu0 0.0
        %3553 = vmatprep.subr.mxu0 0.0
        %3554 = vmatpush1.msra.mxu0 0.0
        %3555 = vmatprep.subr.mxu0 0.0
        %3556 = vmatpush1.msra.mxu0 0.0
        %3557 = vmatprep.subr.mxu0 0.0
        %3558 = vmatpush1.msra.mxu0 0.0
        %3559 = vmatprep.subr.mxu0 0.0
        %3560 = vmatpush1.msra.mxu0 0.0
        %3561 = vmatprep.subr.mxu0 0.0
        %3562 = vmatpush1.msra.mxu0 0.0
        %3563 = vmatprep.subr.mxu0 0.0
        %3564 = vmatpush1.msra.mxu0 %v3529
        %3565 = vmatprep.subr.mxu0 0.0
        %3566 = vmatpush1.msra.mxu0 %v3527
        %3567 = vmatprep.subr.mxu0 0.0
        %3568 = vmatpush2.msra.mxu0 0.0
        %3569 = vmatprep.subr.mxu0 0.0
        %3570 = vmatpush2.msra.mxu0 0.0
        %3571 = vmatprep.subr.mxu0 0.0
        %3572 = vmatpush2.msra.mxu0 0.0
        %3573 = vmatprep.subr.mxu0 0.0
        %3574 = vmatpush2.msra.mxu0 0.0
        %3575 = vmatprep.subr.mxu0 0.0
        %3576 = vmatpush2.msra.mxu0 0.0
        %3577 = vmatprep.subr.mxu0 0.0
        %3578 = vmatpush2.msra.mxu0 0.0
        %3579 = vmatprep.subr.mxu0 0.0
        %3580 = vmatpush2.msra.mxu0 0.0
        %3581 = vmatprep.subr.mxu0 0.0
        %3582 = vmatpush2.msra.mxu0 0.0
        %3583 = vmatprep.subr.mxu0 0.0
        %3584 = vmatpush2.msra.mxu0 0.0
        %3585 = vmatprep.subr.mxu0 0.0
        %3586 = vmatpush2.msra.mxu0 0.0
        %3587 = vmatprep.subr.mxu0 0.0
        %3588 = vmatpush2.msra.mxu0 0.0
        %3589 = vmatprep.subr.mxu0 0.0
        %3590 = vmatpush2.msra.mxu0 0.0
        %3591 = vmatprep.subr.mxu0 0.0
        %3592 = vmatpush2.msra.mxu0 0.0
        %3593 = vmatprep.subr.mxu0 0.0
        %3594 = vmatpush2.msra.mxu0 0.0
        %3595 = vmatprep.subr.mxu0 0.0
        %3596 = vmatpush2.msra.mxu0 0.0
        %3597 = vmatprep.subr.mxu0 0.0
        %3598 = vmatpush2.msra.mxu0 0.0
        %3599 = vmatprep.mubr.f32.mxu0 0.0
        %3600 = vmatmul.mubr.f32.gmra.mxu0 %v3533
        %v3601 = vpop.f32.mrf.mxu0
        %v3602 = vadd.f32 0.0, %v3601
        %v3603 = vpop.f32.mrf.mxu0
        %3604 = vdwg.mxu0
        %v3605 = vld [vmem:[%s2860 + $0x18] sm:$0xff]
        %v3607 = vsel %vm1206, %v3602, 0
        %3609 = vmatprep.subr.mxu0 0.0
        %3610 = vmatpush1.msra.mxu0 0.0
        %3611 = vmatprep.subr.mxu0 0.0
        %3612 = vmatpush1.msra.mxu0 0.0
        %3613 = vmatprep.subr.mxu0 0.0
        %3614 = vmatpush1.msra.mxu0 0.0
        %3615 = vmatprep.subr.mxu0 0.0
        %3616 = vmatpush1.msra.mxu0 0.0
        %3617 = vmatprep.subr.mxu0 0.0
        %3618 = vmatpush1.msra.mxu0 0.0
        %3619 = vmatprep.subr.mxu0 0.0
        %3620 = vmatpush1.msra.mxu0 0.0
        %3621 = vmatprep.subr.mxu0 0.0
        %3622 = vmatpush1.msra.mxu0 0.0
        %3623 = vmatprep.subr.mxu0 0.0
        %3624 = vmatpush1.msra.mxu0 0.0
        %3625 = vmatprep.subr.mxu0 0.0
        %3626 = vmatpush1.msra.mxu0 0.0
        %3627 = vmatprep.subr.mxu0 0.0
        %3628 = vmatpush1.msra.mxu0 0.0
        %3629 = vmatprep.subr.mxu0 0.0
        %3630 = vmatpush1.msra.mxu0 0.0
        %3631 = vmatprep.subr.mxu0 0.0
        %3632 = vmatpush1.msra.mxu0 0.0
        %3633 = vmatprep.subr.mxu0 0.0
        %3634 = vmatpush1.msra.mxu0 0.0
        %3635 = vmatprep.subr.mxu0 0.0
        %3636 = vmatpush1.msra.mxu0 0.0
        %3637 = vmatprep.subr.mxu0 0.0
        %3638 = vmatpush1.msra.mxu0 0.0
        %3639 = vmatprep.subr.mxu0 0.0
        %3640 = vmatpush1.msra.mxu0 %v3605
        %3641 = vmatprep.subr.mxu0 0.0
        %3642 = vmatpush2.msra.mxu0 0.0
        %3643 = vmatprep.subr.mxu0 0.0
        %3644 = vmatpush2.msra.mxu0 0.0
        %3645 = vmatprep.subr.mxu0 0.0
        %3646 = vmatpush2.msra.mxu0 0.0
        %3647 = vmatprep.subr.mxu0 0.0
        %3648 = vmatpush2.msra.mxu0 0.0
        %3649 = vmatprep.subr.mxu0 0.0
        %3650 = vmatpush2.msra.mxu0 0.0
        %3651 = vmatprep.subr.mxu0 0.0
        %3652 = vmatpush2.msra.mxu0 0.0
        %3653 = vmatprep.subr.mxu0 0.0
        %3654 = vmatpush2.msra.mxu0 0.0
        %3655 = vmatprep.subr.mxu0 0.0
        %3656 = vmatpush2.msra.mxu0 0.0
        %3657 = vmatprep.subr.mxu0 0.0
        %3658 = vmatpush2.msra.mxu0 0.0
        %3659 = vmatprep.subr.mxu0 0.0
        %3660 = vmatpush2.msra.mxu0 0.0
        %3661 = vmatprep.subr.mxu0 0.0
        %3662 = vmatpush2.msra.mxu0 0.0
        %3663 = vmatprep.subr.mxu0 0.0
        %3664 = vmatpush2.msra.mxu0 0.0
        %3665 = vmatprep.subr.mxu0 0.0
        %3666 = vmatpush2.msra.mxu0 0.0
        %3667 = vmatprep.subr.mxu0 0.0
        %3668 = vmatpush2.msra.mxu0 0.0
        %3669 = vmatprep.subr.mxu0 0.0
        %3670 = vmatpush2.msra.mxu0 0.0
        %3671 = vmatprep.subr.mxu0 0.0
        %3672 = vmatpush2.msra.mxu0 0.0
        %3673 = vmatprep.mubr.f32.mxu0 0.0
        %3674 = vmatmul.mubr.f32.gmra.mxu0 %v3607
        %v3675 = vpop.f32.mrf.mxu0
        %v3676 = vadd.f32 0.0, %v3675
        %v3677 = vpop.f32.mrf.mxu0
        %3678 = vdwg.mxu0
        %v3679 = vadd.f32 %v3431, %v3676
        %s3680 = scalar_lea.vmem [#allocation13], 1
        %v3681 = vld [vmem:[%s3680] sm:$0x1]
        %v3683 = vlaneseq
        %v3684 = vshrl.u32 %v3683, 7
        %v3685 = vsub.s32 0, %v3684
        %v3686 = vrot.slane %v3681, %v3685
        %v3688 = vadd.f32 %v3679, %v3686
        %v3689 = vadd.f32 %v2432, %v3688
        %s3690 = scalar_lea.vmem [#allocation14], 1
        %v3691 = vld [vmem:[%s3690] sm:$0x1]
        %s3692 = scalar_lea.vmem [#allocation16], 1
        %v3693 = vld [vmem:[%s3692] sm:$0x1]
        %v3694 = vsel %vm954, %v3689, 0.0
        %3695 = vadd.xlane.f32.xlu0 %v3694
        %v3696 = vpop.xlane.xlu0 %3695
        %v3697 = vmul.f32 %v3696, %v2204
        %v3698 = vsub.f32 %v3689, %v3697
        %v3699 = vmul.f32 %v3698, %v3698
        %v3700 = vsel %vm954, %v3699, 0.0
        %3701 = vadd.xlane.f32.xlu0 %v3700
        %v3702 = vpop.xlane.xlu0 %3701
        %v3703 = vmul.f32 %v3702, %v2204
        %v3704 = vadd.f32 %v3703, 1e-05
        %v3705 = vrsqrt.pop %v3704
        %v3706 = vmul.f32 %v3698, %v3705
        %v3708 = vlaneseq
        %v3709 = vshrl.u32 %v3708, 7
        %v3710 = vsub.s32 0, %v3709
        %v3711 = vrot.slane %v3691, %v3710
        %v3713 = vmul.f32 %v3706, %v3711
        %v3715 = vlaneseq
        %v3716 = vshrl.u32 %v3715, 7
        %v3717 = vsub.s32 0, %v3716
        %v3718 = vrot.slane %v3693, %v3717
        %v3720 = vadd.f32 %v3713, %v3718
        %s3721 = scalar_lea.vmem [#allocation17], 32
        %v3722 = vld [vmem:[%s3721] sm:$0xff]
        %v3723 = vld [vmem:[%s3721 + $0x8] sm:$0xff]
        %v3724 = vld [vmem:[%s3721 + $0x10] sm:$0xff]
        %v3725 = vld [vmem:[%s3721 + $0x18] sm:$0xff]
        %s3726 = scalar_lea.vmem [#allocation19], 1
        %v3727 = vld [vmem:[%s3726] sm:$0x1]
        %v3729 = vlaneseq
        %v3730 = vshrl.u32 %v3729, 7
        %v3731 = vsub.s32 0, %v3730
        %v3732 = vrot.slane %v3727, %v3731
        %v3735 = vsel %vm954, %v3720, 0
        %3737 = vmatprep.subr.mxu0 0.0
        %3738 = vmatpush1.msra.mxu0 0.0
        %3739 = vmatprep.subr.mxu0 0.0
        %3740 = vmatpush1.msra.mxu0 0.0
        %3741 = vmatprep.subr.mxu0 0.0
        %3742 = vmatpush1.msra.mxu0 0.0
        %3743 = vmatprep.subr.mxu0 0.0
        %3744 = vmatpush1.msra.mxu0 0.0
        %3745 = vmatprep.subr.mxu0 0.0
        %3746 = vmatpush1.msra.mxu0 0.0
        %3747 = vmatprep.subr.mxu0 0.0
        %3748 = vmatpush1.msra.mxu0 0.0
        %3749 = vmatprep.subr.mxu0 0.0
        %3750 = vmatpush1.msra.mxu0 0.0
        %3751 = vmatprep.subr.mxu0 0.0
        %3752 = vmatpush1.msra.mxu0 0.0
        %3753 = vmatprep.subr.mxu0 0.0
        %3754 = vmatpush1.msra.mxu0 0.0
        %3755 = vmatprep.subr.mxu0 0.0
        %3756 = vmatpush1.msra.mxu0 0.0
        %3757 = vmatprep.subr.mxu0 0.0
        %3758 = vmatpush1.msra.mxu0 0.0
        %3759 = vmatprep.subr.mxu0 0.0
        %3760 = vmatpush1.msra.mxu0 0.0
        %3761 = vmatprep.subr.mxu0 0.0
        %3762 = vmatpush1.msra.mxu0 %v3725
        %3763 = vmatprep.subr.mxu0 0.0
        %3764 = vmatpush1.msra.mxu0 %v3724
        %3765 = vmatprep.subr.mxu0 0.0
        %3766 = vmatpush1.msra.mxu0 %v3723
        %3767 = vmatprep.subr.mxu0 0.0
        %3768 = vmatpush1.msra.mxu0 %v3722
        %3769 = vmatprep.subr.mxu0 0.0
        %3770 = vmatpush2.msra.mxu0 0.0
        %3771 = vmatprep.subr.mxu0 0.0
        %3772 = vmatpush2.msra.mxu0 0.0
        %3773 = vmatprep.subr.mxu0 0.0
        %3774 = vmatpush2.msra.mxu0 0.0
        %3775 = vmatprep.subr.mxu0 0.0
        %3776 = vmatpush2.msra.mxu0 0.0
        %3777 = vmatprep.subr.mxu0 0.0
        %3778 = vmatpush2.msra.mxu0 0.0
        %3779 = vmatprep.subr.mxu0 0.0
        %3780 = vmatpush2.msra.mxu0 0.0
        %3781 = vmatprep.subr.mxu0 0.0
        %3782 = vmatpush2.msra.mxu0 0.0
        %3783 = vmatprep.subr.mxu0 0.0
        %3784 = vmatpush2.msra.mxu0 0.0
        %3785 = vmatprep.subr.mxu0 0.0
        %3786 = vmatpush2.msra.mxu0 0.0
        %3787 = vmatprep.subr.mxu0 0.0
        %3788 = vmatpush2.msra.mxu0 0.0
        %3789 = vmatprep.subr.mxu0 0.0
        %3790 = vmatpush2.msra.mxu0 0.0
        %3791 = vmatprep.subr.mxu0 0.0
        %3792 = vmatpush2.msra.mxu0 0.0
        %3793 = vmatprep.subr.mxu0 0.0
        %3794 = vmatpush2.msra.mxu0 0.0
        %3795 = vmatprep.subr.mxu0 0.0
        %3796 = vmatpush2.msra.mxu0 0.0
        %3797 = vmatprep.subr.mxu0 0.0
        %3798 = vmatpush2.msra.mxu0 0.0
        %3799 = vmatprep.subr.mxu0 0.0
        %3800 = vmatpush2.msra.mxu0 0.0
        %3801 = vmatprep.mubr.f32.mxu0 0.0
        %3802 = vmatmul.mubr.f32.gmra.mxu0 %v3735
        %v3803 = vpop.f32.mrf.mxu0
        %v3804 = vadd.f32 %v3732, %v3803
        %v3805 = vpop.f32.mrf.mxu0
        %3806 = vdwg.mxu0
        %v3807 = vmax.f32 %v3804, 0.0
        %s3808 = scalar_lea.vmem %s14, 64
        %v3809 = vld [vmem:[%s3808] sm:$0xff]
        %v3810 = vld [vmem:[%s3808 + $0x8] sm:$0xff]
        %v3811 = vld [vmem:[%s3808 + $0x10] sm:$0xff]
        %v3812 = vld [vmem:[%s3808 + $0x18] sm:$0xff]
        %v3813 = vld [vmem:[%s3808 + $0x20] sm:$0xff]
        %v3814 = vld [vmem:[%s3808 + $0x28] sm:$0xff]
        %v3815 = vld [vmem:[%s3808 + $0x30] sm:$0xff]
        %v3816 = vld [vmem:[%s3808 + $0x38] sm:$0xff]
        %s3817 = scalar_lea.vmem [#allocation20], 1
        %v3818 = vld [vmem:[%s3817] sm:$0x1]
        %v3820 = vlaneseq
        %v3821 = vshrl.u32 %v3820, 7
        %v3822 = vsub.s32 0, %v3821
        %v3823 = vrot.slane %v3818, %v3822
        %v3826 = vsel %vm2329, %v3807, 0
        %3828 = vmatprep.subr.mxu0 0.0
        %3829 = vmatpush1.msra.mxu0 0.0
        %3830 = vmatprep.subr.mxu0 0.0
        %3831 = vmatpush1.msra.mxu0 0.0
        %3832 = vmatprep.subr.mxu0 0.0
        %3833 = vmatpush1.msra.mxu0 0.0
        %3834 = vmatprep.subr.mxu0 0.0
        %3835 = vmatpush1.msra.mxu0 0.0
        %3836 = vmatprep.subr.mxu0 0.0
        %3837 = vmatpush1.msra.mxu0 0.0
        %3838 = vmatprep.subr.mxu0 0.0
        %3839 = vmatpush1.msra.mxu0 0.0
        %3840 = vmatprep.subr.mxu0 0.0
        %3841 = vmatpush1.msra.mxu0 0.0
        %3842 = vmatprep.subr.mxu0 0.0
        %3843 = vmatpush1.msra.mxu0 0.0
        %3844 = vmatprep.subr.mxu0 0.0
        %3845 = vmatpush1.msra.mxu0 %v3816
        %3846 = vmatprep.subr.mxu0 0.0
        %3847 = vmatpush1.msra.mxu0 %v3815
        %3848 = vmatprep.subr.mxu0 0.0
        %3849 = vmatpush1.msra.mxu0 %v3814
        %3850 = vmatprep.subr.mxu0 0.0
        %3851 = vmatpush1.msra.mxu0 %v3813
        %3852 = vmatprep.subr.mxu0 0.0
        %3853 = vmatpush1.msra.mxu0 %v3812
        %3854 = vmatprep.subr.mxu0 0.0
        %3855 = vmatpush1.msra.mxu0 %v3811
        %3856 = vmatprep.subr.mxu0 0.0
        %3857 = vmatpush1.msra.mxu0 %v3810
        %3858 = vmatprep.subr.mxu0 0.0
        %3859 = vmatpush1.msra.mxu0 %v3809
        %3860 = vmatprep.subr.mxu0 0.0
        %3861 = vmatpush2.msra.mxu0 0.0
        %3862 = vmatprep.subr.mxu0 0.0
        %3863 = vmatpush2.msra.mxu0 0.0
        %3864 = vmatprep.subr.mxu0 0.0
        %3865 = vmatpush2.msra.mxu0 0.0
        %3866 = vmatprep.subr.mxu0 0.0
        %3867 = vmatpush2.msra.mxu0 0.0
        %3868 = vmatprep.subr.mxu0 0.0
        %3869 = vmatpush2.msra.mxu0 0.0
        %3870 = vmatprep.subr.mxu0 0.0
        %3871 = vmatpush2.msra.mxu0 0.0
        %3872 = vmatprep.subr.mxu0 0.0
        %3873 = vmatpush2.msra.mxu0 0.0
        %3874 = vmatprep.subr.mxu0 0.0
        %3875 = vmatpush2.msra.mxu0 0.0
        %3876 = vmatprep.subr.mxu0 0.0
        %3877 = vmatpush2.msra.mxu0 0.0
        %3878 = vmatprep.subr.mxu0 0.0
        %3879 = vmatpush2.msra.mxu0 0.0
        %3880 = vmatprep.subr.mxu0 0.0
        %3881 = vmatpush2.msra.mxu0 0.0
        %3882 = vmatprep.subr.mxu0 0.0
        %3883 = vmatpush2.msra.mxu0 0.0
        %3884 = vmatprep.subr.mxu0 0.0
        %3885 = vmatpush2.msra.mxu0 0.0
        %3886 = vmatprep.subr.mxu0 0.0
        %3887 = vmatpush2.msra.mxu0 0.0
        %3888 = vmatprep.subr.mxu0 0.0
        %3889 = vmatpush2.msra.mxu0 0.0
        %3890 = vmatprep.subr.mxu0 0.0
        %3891 = vmatpush2.msra.mxu0 0.0
        %3892 = vmatprep.mubr.f32.mxu0 0.0
        %3893 = vmatmul.mubr.f32.gmra.mxu0 %v3826
        %v3894 = vpop.f32.mrf.mxu0
        %v3895 = vadd.f32 %v3823, %v3894
        %v3896 = vpop.f32.mrf.mxu0
        %3897 = vdwg.mxu0
        %v3898 = vadd.f32 %v3720, %v3895
        %s3899 = scalar_lea.vmem [#allocation22], 1
        %v3900 = vld [vmem:[%s3899] sm:$0x1]
        %s3901 = scalar_lea.vmem [#allocation23], 1
        %v3902 = vld [vmem:[%s3901] sm:$0x1]
        %v3903 = vsel %vm954, %v3898, 0.0
        %3904 = vadd.xlane.f32.xlu0 %v3903
        %v3905 = vpop.xlane.xlu0 %3904
        %v3906 = vmul.f32 %v3905, %v2204
        %v3907 = vsub.f32 %v3898, %v3906
        %v3908 = vmul.f32 %v3907, %v3907
        %v3909 = vsel %vm954, %v3908, 0.0
        %3910 = vadd.xlane.f32.xlu0 %v3909
        %v3911 = vpop.xlane.xlu0 %3910
        %v3912 = vmul.f32 %v3911, %v2204
        %v3913 = vadd.f32 %v3912, 1e-05
        %v3914 = vrsqrt.pop %v3913
        %v3915 = vmul.f32 %v3907, %v3914
        %v3917 = vlaneseq
        %v3918 = vshrl.u32 %v3917, 7
        %v3919 = vsub.s32 0, %v3918
        %v3920 = vrot.slane %v3900, %v3919
        %v3922 = vmul.f32 %v3915, %v3920
        %v3924 = vlaneseq
        %v3925 = vshrl.u32 %v3924, 7
        %v3926 = vsub.s32 0, %v3925
        %v3927 = vrot.slane %v3902, %v3926
        %v3929 = vadd.f32 %v3922, %v3927
        %v3930 = vld [vmem:[%s18] sm:$0xff]
        %v3931 = vld [vmem:[%s18 + $0x8] sm:$0xff]
        %v3932 = vld [vmem:[%s18 + $0x10] sm:$0xff]
        %v3933 = vld [vmem:[%s18 + $0x18] sm:$0xff]
        %v3934 = vld [vmem:[#allocation25] sm:$0x1]
        %v3936 = vlaneseq
        %v3937 = vshrl.u32 %v3936, 7
        %v3938 = vsub.s32 0, %v3937
        %v3939 = vrot.slane %v3934, %v3938
        %v3942 = vsel %vm954, %v3929, 0
        %3944 = vmatprep.subr.mxu0 0.0
        %3945 = vmatpush1.msra.mxu0 0.0
        %3946 = vmatprep.subr.mxu0 0.0
        %3947 = vmatpush1.msra.mxu0 0.0
        %3948 = vmatprep.subr.mxu0 0.0
        %3949 = vmatpush1.msra.mxu0 0.0
        %3950 = vmatprep.subr.mxu0 0.0
        %3951 = vmatpush1.msra.mxu0 0.0
        %3952 = vmatprep.subr.mxu0 0.0
        %3953 = vmatpush1.msra.mxu0 0.0
        %3954 = vmatprep.subr.mxu0 0.0
        %3955 = vmatpush1.msra.mxu0 0.0
        %3956 = vmatprep.subr.mxu0 0.0
        %3957 = vmatpush1.msra.mxu0 0.0
        %3958 = vmatprep.subr.mxu0 0.0
        %3959 = vmatpush1.msra.mxu0 0.0
        %3960 = vmatprep.subr.mxu0 0.0
        %3961 = vmatpush1.msra.mxu0 0.0
        %3962 = vmatprep.subr.mxu0 0.0
        %3963 = vmatpush1.msra.mxu0 0.0
        %3964 = vmatprep.subr.mxu0 0.0
        %3965 = vmatpush1.msra.mxu0 0.0
        %3966 = vmatprep.subr.mxu0 0.0
        %3967 = vmatpush1.msra.mxu0 0.0
        %3968 = vmatprep.subr.mxu0 0.0
        %3969 = vmatpush1.msra.mxu0 %v3933
        %3970 = vmatprep.subr.mxu0 0.0
        %3971 = vmatpush1.msra.mxu0 %v3932
        %3972 = vmatprep.subr.mxu0 0.0
        %3973 = vmatpush1.msra.mxu0 %v3931
        %3974 = vmatprep.subr.mxu0 0.0
        %3975 = vmatpush1.msra.mxu0 %v3930
        %3976 = vmatprep.subr.mxu0 0.0
        %3977 = vmatpush2.msra.mxu0 0.0
        %3978 = vmatprep.subr.mxu0 0.0
        %3979 = vmatpush2.msra.mxu0 0.0
        %3980 = vmatprep.subr.mxu0 0.0
        %3981 = vmatpush2.msra.mxu0 0.0
        %3982 = vmatprep.subr.mxu0 0.0
        %3983 = vmatpush2.msra.mxu0 0.0
        %3984 = vmatprep.subr.mxu0 0.0
        %3985 = vmatpush2.msra.mxu0 0.0
        %3986 = vmatprep.subr.mxu0 0.0
        %3987 = vmatpush2.msra.mxu0 0.0
        %3988 = vmatprep.subr.mxu0 0.0
        %3989 = vmatpush2.msra.mxu0 0.0
        %3990 = vmatprep.subr.mxu0 0.0
        %3991 = vmatpush2.msra.mxu0 0.0
        %3992 = vmatprep.subr.mxu0 0.0
        %3993 = vmatpush2.msra.mxu0 0.0
        %3994 = vmatprep.subr.mxu0 0.0
        %3995 = vmatpush2.msra.mxu0 0.0
        %3996 = vmatprep.subr.mxu0 0.0
        %3997 = vmatpush2.msra.mxu0 0.0
        %3998 = vmatprep.subr.mxu0 0.0
        %3999 = vmatpush2.msra.mxu0 0.0
        %4000 = vmatprep.subr.mxu0 0.0
        %4001 = vmatpush2.msra.mxu0 0.0
        %4002 = vmatprep.subr.mxu0 0.0
        %4003 = vmatpush2.msra.mxu0 0.0
        %4004 = vmatprep.subr.mxu0 0.0
        %4005 = vmatpush2.msra.mxu0 0.0
        %4006 = vmatprep.subr.mxu0 0.0
        %4007 = vmatpush2.msra.mxu0 0.0
        %4008 = vmatprep.mubr.f32.mxu0 0.0
        %4009 = vmatmul.mubr.f32.gmra.mxu0 %v3942
        %v4010 = vpop.f32.mrf.mxu0
        %v4011 = vadd.f32 %v3939, %v4010
        %v4012 = vpop.f32.mrf.mxu0
        %4013 = vdwg.mxu0
        %v4014 = vmax.f32 %v4011, 0.0
        %v4015 = vld [vmem:[#allocation26] sm:$0xff]
        %v4016 = vld [vmem:[#allocation26 + $0x8] sm:$0xff]
        %v4017 = vld [vmem:[#allocation26 + $0x10] sm:$0xff]
        %v4018 = vld [vmem:[#allocation26 + $0x18] sm:$0xff]
        %v4019 = vld [vmem:[%s21] sm:$0x1]
        %v4021 = vlaneseq
        %v4022 = vshrl.u32 %v4021, 7
        %v4023 = vsub.s32 0, %v4022
        %v4024 = vrot.slane %v4019, %v4023
        %v4027 = vsel %vm954, %v4014, 0
        %4029 = vmatprep.subr.mxu0 0.0
        %4030 = vmatpush1.msra.mxu0 0.0
        %4031 = vmatprep.subr.mxu0 0.0
        %4032 = vmatpush1.msra.mxu0 0.0
        %4033 = vmatprep.subr.mxu0 0.0
        %4034 = vmatpush1.msra.mxu0 0.0
        %4035 = vmatprep.subr.mxu0 0.0
        %4036 = vmatpush1.msra.mxu0 0.0
        %4037 = vmatprep.subr.mxu0 0.0
        %4038 = vmatpush1.msra.mxu0 0.0
        %4039 = vmatprep.subr.mxu0 0.0
        %4040 = vmatpush1.msra.mxu0 0.0
        %4041 = vmatprep.subr.mxu0 0.0
        %4042 = vmatpush1.msra.mxu0 0.0
        %4043 = vmatprep.subr.mxu0 0.0
        %4044 = vmatpush1.msra.mxu0 0.0
        %4045 = vmatprep.subr.mxu0 0.0
        %4046 = vmatpush1.msra.mxu0 0.0
        %4047 = vmatprep.subr.mxu0 0.0
        %4048 = vmatpush1.msra.mxu0 0.0
        %4049 = vmatprep.subr.mxu0 0.0
        %4050 = vmatpush1.msra.mxu0 0.0
        %4051 = vmatprep.subr.mxu0 0.0
        %4052 = vmatpush1.msra.mxu0 0.0
        %4053 = vmatprep.subr.mxu0 0.0
        %4054 = vmatpush1.msra.mxu0 %v4018
        %4055 = vmatprep.subr.mxu0 0.0
        %4056 = vmatpush1.msra.mxu0 %v4017
        %4057 = vmatprep.subr.mxu0 0.0
        %4058 = vmatpush1.msra.mxu0 %v4016
        %4059 = vmatprep.subr.mxu0 0.0
        %4060 = vmatpush1.msra.mxu0 %v4015
        %4061 = vmatprep.subr.mxu0 0.0
        %4062 = vmatpush2.msra.mxu0 0.0
        %4063 = vmatprep.subr.mxu0 0.0
        %4064 = vmatpush2.msra.mxu0 0.0
        %4065 = vmatprep.subr.mxu0 0.0
        %4066 = vmatpush2.msra.mxu0 0.0
        %4067 = vmatprep.subr.mxu0 0.0
        %4068 = vmatpush2.msra.mxu0 0.0
        %4069 = vmatprep.subr.mxu0 0.0
        %4070 = vmatpush2.msra.mxu0 0.0
        %4071 = vmatprep.subr.mxu0 0.0
        %4072 = vmatpush2.msra.mxu0 0.0
        %4073 = vmatprep.subr.mxu0 0.0
        %4074 = vmatpush2.msra.mxu0 0.0
        %4075 = vmatprep.subr.mxu0 0.0
        %4076 = vmatpush2.msra.mxu0 0.0
        %4077 = vmatprep.subr.mxu0 0.0
        %4078 = vmatpush2.msra.mxu0 0.0
        %4079 = vmatprep.subr.mxu0 0.0
        %4080 = vmatpush2.msra.mxu0 0.0
        %4081 = vmatprep.subr.mxu0 0.0
        %4082 = vmatpush2.msra.mxu0 0.0
        %4083 = vmatprep.subr.mxu0 0.0
        %4084 = vmatpush2.msra.mxu0 0.0
        %4085 = vmatprep.subr.mxu0 0.0
        %4086 = vmatpush2.msra.mxu0 0.0
        %4087 = vmatprep.subr.mxu0 0.0
        %4088 = vmatpush2.msra.mxu0 0.0
        %4089 = vmatprep.subr.mxu0 0.0
        %4090 = vmatpush2.msra.mxu0 0.0
        %4091 = vmatprep.subr.mxu0 0.0
        %4092 = vmatpush2.msra.mxu0 0.0
        %4093 = vmatprep.mubr.f32.mxu0 0.0
        %4094 = vmatmul.mubr.f32.gmra.mxu0 %v4027
        %v4095 = vpop.f32.mrf.mxu0
        %v4096 = vadd.f32 %v4024, %v4095
        %v4097 = vpop.f32.mrf.mxu0
        %4098 = vdwg.mxu0
        %4099 = vst.msk [vmem:[%s939] sm:$0xff] %vm954, %v4096
        %s4100 = sand.u32 %s529, 1
        %s4101 = scalar_lea.sflag [#allocation4], %s4100
        %s4102 = sand.u32 %s529, 1
        %s4103 = smul.addr %s4102, 8
        %s4104 = scalar_lea.vmem [#allocation28], %s4103
        // Predicated region
        $region173: #{tpu_custom_call.1} parent=107 // pred_check
          %p4105 = pneg %p539
        $region174: #{tpu_custom_call.1} parent=107 // pred_check_branch
          %4107 = sbr.rel (%p4105) target = $region176
        $region175: #{tpu_custom_call.1} parent=107 // pred_region
          %s4109 = ssub.s32 128, 128
          %4110 = vsyncadd %s4101, %s4109
          %s4111 = smul.addr %s49, 128
          %s4112 = scalar_lea.hbm %s22, %s4111
          %s4114 = sshll.u32 %s4104, 4
          %s4115 = int_to_ptr.vmem [resolvable:$true] %s4114
          %4117 = dma.vmem_to_hbm [thread:$0]  %s4115, 128, %s4112, %s4101
        $region176: #{tpu_custom_call.1} parent=107 // pred_fallthru
          _
      $region108: #{tpu_custom_call.1} parent=5 // pred_fallthru
        _
      %p4118 = scmp.le.s32.totalorder 2, %s44
      // Predicated region
      $region177: #{tpu_custom_call.1} parent=5 // pred_check
        %p4119 = pneg %p4118
      $region178: #{tpu_custom_call.1} parent=5 // pred_check_branch
        %4121 = sbr.rel (%p4119) target = $region180
      $region179: #{tpu_custom_call.1} parent=5 // pred_region
        %s4122 = ssub.s32 %s44, 2
        // Predicated region
        $region181: #{tpu_custom_call.1} parent=179 // pred_check
          %p4123 = pneg %p545
        $region182: #{tpu_custom_call.1} parent=179 // pred_check_branch
          %4125 = sbr.rel (%p4123) target = $region184
        $region183: #{tpu_custom_call.1} parent=179 // pred_region
          %s4126 = sand.u32 %s530, 1
          %s4127 = scalar_lea.sflag [#allocation4], %s4126
          %s4128 = sand.u32 %s530, 1
          %s4129 = smul.addr %s4128, 8
          %s4130 = scalar_lea.vmem [#allocation28], %s4129
          %4131 = dma.done %s4127, 128
        $region184: #{tpu_custom_call.1} parent=179 // pred_fallthru
          _
      $region180: #{tpu_custom_call.1} parent=5 // pred_fallthru
        _
    $region6: #{tpu_custom_call.1} parent=1 // loop_footer
      %s48 = sadd.s32 1, %s44
    $region7: #{tpu_custom_call.1} parent=1 // loop_footer_branch
      %43 = sbr.rel target = $region3
    $region8: #{tpu_custom_call.1} parent=1 // loop_exit
      _
    %4132 = vsyncpa [#allocation3], 1
    %s4133 = scalar_lea.sflag [#allocation3], 1
    %4134 = vsyncpa %s4133, 1
    %4135 = vsyncpa [#allocation6], 1
    %s4136 = scalar_lea.sflag [#allocation6], 1
    %4137 = vsyncpa %s4136, 1
    %4138 = vsyncpa [#allocation9], 1
    %4139 = vsyncpa [#allocation12], 1
    %4140 = vsyncpa [#allocation15], 1
    %4141 = vsyncpa [#allocation18], 1
    %4142 = vsyncpa [#allocation21], 1
    %4143 = vsyncpa [#allocation24], 1
    %4144 = vsyncpa [#allocation27], 1
    %4145 = vsyncpa [#allocation4], 1
    %s4146 = scalar_lea.sflag [#allocation4], 1
    %4147 = vsyncpa %s4146, 1

</llo_original>
